<compile_context>
chip_gen: v5e
topology: v5e:2x2
jax: 0.10.0
libtpu: 0.0.40
codegen_flags: <defaults>
</compile_context>

<pallas_src>
import functools

import numpy as np
import jax
import jax.numpy as jnp
from jax import lax
from jax.experimental import pallas as pl
from jax.experimental.pallas import tpu as pltpu

_LANES = 128
_CHUNK_ROWS = 256      # register-resident accumulator target (~32 f32 vregs)
_M_CAP = 2048          # output rows per grid step
_FOLD_KW_MAX = 64      # fold kw taps into matmul-K when cin * k <= this
_STATIC_TAP_MAX = 128  # fully unroll the tap loop when #taps <= this


def _round_up(v, m):
    return ((v + m - 1) // m) * m


def _largest_divisor(n, cap):
    for cand in range(max(1, min(n, cap)), 0, -1):
        if n % cand == 0:
            return cand
    return 1


# ----------------------------------------------------------------------------
# Fused direct Conv3d Pallas kernel (stride 1, "valid" on a pre-padded input)
# ----------------------------------------------------------------------------
def _conv3d_kernel(x_ref, w_ref, b_ref, y_ref, st_ref, *,
                   k, td, th, wo_p, wo, kin_p, cout_store, fold, act):
    """One (sample, cout-tile, D-tile, H-tile) step of a direct 3-D conv.

    x_ref : (1, Dp, Hp, Wx, kin_p)   bf16  whole (padded) per-sample volume
    w_ref : (1, taps, kin_p, 128)    bf16  one 128-wide Cout tile of weights
    b_ref : (1, 1, 128)              f32
    y_ref : (1, td, th, wo_p, cout_store)  output tile (bf16 or f32)
    st_ref: (1, 1, 2, 128)           f32   per-(sample, cout-tile) [sum, sumsq]
    """
    dt = pl.program_id(2)
    ht = pl.program_id(3)
    d0 = dt * td
    h0 = ht * th
    mc = th * wo_p
    bias = b_ref[0]                                      # (1, 128), hoisted

    @pl.when(jnp.logical_and(dt == 0, ht == 0))
    def _():
        st_ref[...] = jnp.zeros_like(st_ref)

    if wo_p != wo:                                       # mask W-padding cols
        col = jax.lax.broadcasted_iota(jnp.int32, (mc, 1), 0) % wo_p
        live = col < wo
    else:
        live = None

    s1 = jnp.zeros((1, _LANES), jnp.float32)
    s2 = jnp.zeros((1, _LANES), jnp.float32)

    def tap_dot(acc, dd, kd, kh, kw):
        if fold:                                         # kw folded into K
            slab = x_ref[0, pl.ds(d0 + dd + kd, 1), pl.ds(h0 + kh, th), :, :]
            widx = kd * k + kh
        else:
            slab = x_ref[0, pl.ds(d0 + dd + kd, 1), pl.ds(h0 + kh, th),
                         pl.ds(kw, wo_p), :]
            widx = (kd * k + kh) * k + kw
        slab = slab.reshape(mc, kin_p)                   # tile-aligned reshape
        wtap = w_ref[0, pl.ds(widx, 1)].reshape(kin_p, _LANES)
        return acc + jnp.dot(slab, wtap, preferred_element_type=jnp.float32)

    n_taps = (k * k) if fold else (k ** 3)

    for dd in range(td):                                 # static chunk loop
        # register-resident partial sum over all taps (no per-tap VMEM traffic)
        acc = jnp.zeros((mc, _LANES), jnp.float32)
        if n_taps <= _STATIC_TAP_MAX:                    # fully unrolled taps
            for kd in range(k):
                for kh in range(k):
                    if fold:
                        acc = tap_dot(acc, dd, kd, kh, 0)
                    else:
                        for kw in range(k):
                            acc = tap_dot(acc, dd, kd, kh, kw)
        else:                                            # 7^3, large Cin: fori
            def kd_body(kd, a):
                for kh in range(k):
                    for kw in range(k):
                        a = tap_dot(a, dd, kd, kh, kw)
                return a
            acc = lax.fori_loop(0, k, kd_body, acc)

        y = acc + bias                                   # (mc, 128)
        ys = y if live is None else jnp.where(live, y, 0.0)
        s1 = s1 + jnp.sum(ys, axis=0, keepdims=True)     # fused IN stats
        s2 = s2 + jnp.sum(ys * ys, axis=0, keepdims=True)

        if act == "relu":
            y = jnp.maximum(y, 0.0)
        elif act == "tanh":
            y = jnp.tanh(y)
        y_ref[0, dd] = (y[:, :cout_store]
                        .reshape(th, wo_p, cout_store).astype(y_ref.dtype))

    st_ref[...] += jnp.concatenate([s1, s2], axis=0).reshape(st_ref.shape)


def pack_conv3d(w, b):
    """One-time repack of PyTorch-layout Conv3d params into the kernel layout.

    w : (Cout, Cin, k, k, k) float32,  b : (Cout,) float32
    Done at parameter-init time so the per-call wrapper does no weight work.
    """
    cout, cin, k = int(w.shape[0]), int(w.shape[1]), int(w.shape[2])
    fold = cin * k <= _FOLD_KW_MAX
    if fold:    # fold the kw taps into the matmul K dimension (low-Cin layers)
        wt = jnp.transpose(w, (2, 3, 4, 1, 0)).reshape(k * k, k * cin, cout)
        kin = k * cin
    else:
        wt = jnp.transpose(w, (2, 3, 4, 1, 0)).reshape(k * k * k, cin, cout)
        kin = cin
    taps = int(wt.shape[0])
    kin_p = _round_up(max(kin, 8), 8)
    co_tiles = max(1, -(-cout // _LANES))
    cout_store = 8 if (cout <= 8 and co_tiles == 1) else _LANES
    wt = jnp.pad(wt, ((0, 0), (0, kin_p - kin), (0, co_tiles * _LANES - cout)))
    wt = wt.reshape(taps, kin_p, co_tiles, _LANES)
    wt = jnp.transpose(wt, (2, 0, 1, 3)).astype(jnp.bfloat16)
    bias = jnp.pad(b, (0, co_tiles * _LANES - cout)).astype(jnp.float32)
    bias = bias.reshape(co_tiles, 1, _LANES)
    return {"w": wt, "b": bias, "k": k, "cin": cin, "cout": cout, "fold": fold,
            "kin_p": kin_p, "co_tiles": co_tiles, "cout_store": cout_store,
            "taps": taps}


def conv3d_pallas(x_cl, cp, act=None, out_dtype=jnp.bfloat16):
    """Direct stride-1 Conv3d on an already spatially padded channels-last input.

    x_cl : (N, Dp, Hp, Wp, Cin)  (spatial padding already applied by caller)
    cp   : packed params from pack_conv3d
    act  : None | 'relu' | 'tanh'   fused epilogue activation

    Returns (y, stats):
      y     : (N, Do, Ho, Wo, Cout) out_dtype
      stats : (N, 2, Cout) float32  [sum, sum of squares] of the pre-activation
              output over the spatial dims (for InstanceNorm).
    """
    n, dp, hp, wp, cin = x_cl.shape
    k, kin_p = cp["k"], cp["kin_p"]
    cout, co_tiles, cout_store = cp["cout"], cp["co_tiles"], cp["cout_store"]
    assert cin == cp["cin"]
    do, ho, wo = dp - k + 1, hp - k + 1, wp - k + 1
    wo_p = _round_up(wo, 8)                       # tile-aligned kernel reshapes

    x_in = jnp.pad(x_cl, ((0, 0),) * 3 + ((0, wo_p + k - 1 - wp), (0, 0)))
    x_in = x_in.astype(jnp.bfloat16)
    if cp["fold"]:                                # stack k shifted W-slices
        x_in = jnp.concatenate(
            [x_in[:, :, :, kw:kw + wo_p, :] for kw in range(k)], axis=-1)
    cin_k = x_in.shape[-1]
    if kin_p != cin_k:
        x_in = jnp.pad(x_in, ((0, 0),) * 4 + ((0, kin_p - cin_k),))
    w_ext = x_in.shape[3]

    # Tile sizes: in-kernel register chunk = th*wo_p <= ~256 rows; grid-step
    # output tile = td*th*wo_p <= ~2048 rows (m_cap is honored via the H axis).
    th = _largest_divisor(ho, max(1, _CHUNK_ROWS // wo_p))
    td = _largest_divisor(do, max(1, _M_CAP // (th * wo_p)))

    kern = functools.partial(
        _conv3d_kernel, k=k, td=td, th=th, wo_p=wo_p, wo=wo, kin_p=kin_p,
        cout_store=cout_store, fold=cp["fold"], act=act)

    # VMEM limit from the actual (double-buffered) block sizes.
    # TODO(synk): for very large volumes the resident per-sample input should be
    # halo-tiled along D (manual DMA) and single-buffered to fit v7x's 64 MiB.
    blk_bytes = 2 * (dp * hp * w_ext * kin_p * 2
                     + cp["taps"] * kin_p * _LANES * 2
                     + td * th * wo_p * cout_store * jnp.dtype(out_dtype).itemsize
                     + 3 * _LANES * 4)
    vmem_limit = min(100 * 2 ** 20, max(32 * 2 ** 20, int(blk_bytes * 1.25)))

    y, stats = pl.pallas_call(
        kern,
        out_shape=(
            jax.ShapeDtypeStruct((n, do, ho, wo_p, co_tiles * cout_store),
                                 out_dtype),
            jax.ShapeDtypeStruct((n, co_tiles, 2, _LANES), jnp.float32)),
        grid=(n, co_tiles, do // td, ho // th),
        in_specs=[
            pl.BlockSpec((1, dp, hp, w_ext, kin_p),
                         lambda i, co, d, h: (i, 0, 0, 0, 0)),
            pl.BlockSpec((1, cp["taps"], kin_p, _LANES),
                         lambda i, co, d, h: (co, 0, 0, 0)),
            pl.BlockSpec((1, 1, _LANES), lambda i, co, d, h: (co, 0, 0)),
        ],
        out_specs=(
            pl.BlockSpec((1, td, th, wo_p, cout_store),
                         lambda i, co, d, h: (i, d, h, 0, co)),
            pl.BlockSpec((1, 1, 2, _LANES), lambda i, co, d, h: (i, co, 0, 0)),
        ),
        compiler_params=pltpu.CompilerParams(
            dimension_semantics=("parallel", "parallel", "arbitrary",
                                 "arbitrary"),
            vmem_limit_bytes=vmem_limit),
    )(x_in, cp["w"], cp["b"])

    y = y[:, :, :, :wo, :cout]
    stats = jnp.swapaxes(stats, 1, 2).reshape(n, 2, co_tiles * _LANES)[:, :, :cout]
    return y, stats


# ----------------------------------------------------------------------------
# JAX glue (memory-bound ops, fused by XLA under the single jit)
# ----------------------------------------------------------------------------
def _get_filter_np(filt_size):
    coeffs = {1: [1.], 2: [1., 1.], 3: [1., 2., 1.], 4: [1., 3., 3., 1.],
              5: [1., 4., 6., 4., 1.], 6: [1., 5., 10., 10., 5., 1.],
              7: [1., 6., 15., 20., 15., 6., 1.]}
    a = np.asarray(coeffs[filt_size], dtype=np.float64)
    f2 = a[:, None] * a[None, :]
    f3 = f2[:, None, :] * f2[None, :, :]         # matches filt[:,None]*filt[None,:]
    return (f3 / f3.sum()).astype(np.float32)


_DOWN_FILT_NP = _get_filter_np(3)
_UP_FILT_NP = _get_filter_np(4) * 4.0            # * stride**2


def _pad_spatial(x, p, mode):
    cfg = ((0, 0), (p, p), (p, p), (p, p), (0, 0))
    if mode == "zero":
        return jnp.pad(x, cfg)
    return jnp.pad(x, cfg, mode=mode)            # 'reflect' or 'edge' (replicate)


def _instance_norm(y, stats, eps=1e-5):
    """(x - mean) / sqrt(var + eps) per (sample, channel) from fused conv stats."""
    # TODO(synk): one-pass E[x^2]-E[x]^2 in f32 is fine at these sizes; consider a
    # two-pass variant for very large volumes, and folding the apply+ReLU into the
    # next conv kernel's prologue to save one full-volume HBM pass per layer.
    cnt = y.shape[1] * y.shape[2] * y.shape[3]
    mean = stats[:, 0, :] / cnt
    var = jnp.maximum(stats[:, 1, :] / cnt - mean * mean, 0.0)
    rstd = jax.lax.rsqrt(var + eps)
    out = (y.astype(jnp.float32) - mean[:, None, None, None, :]) \
        * rstd[:, None, None, None, :]
    return out.astype(y.dtype)


# TODO(synk): depthwise anti-alias Downsample / Upsample stay in JAX glue (tiny
# FLOP fraction); a dedicated Pallas depthwise kernel needs strided sublane loads.
def _blur_downsample(x):
    xp = _pad_spatial(x, 1, "reflect")
    _, dp, hp, wp, _ = xp.shape
    do, ho, wo = (dp - 3) // 2 + 1, (hp - 3) // 2 + 1, (wp - 3) // 2 + 1
    acc = jnp.zeros(x.shape[:1] + (do, ho, wo, x.shape[-1]), jnp.float32)
    for kd in range(3):
        for kh in range(3):
            for kw in range(3):
                acc = acc + float(_DOWN_FILT_NP[kd, kh, kw]) * xp[
                    :, kd:kd + 2 * do - 1:2, kh:kh + 2 * ho - 1:2,
                    kw:kw + 2 * wo - 1:2, :].astype(jnp.float32)
    return acc.astype(x.dtype)


def _upsample_aa(x):
    """Upsample module: repl-pad 1, depthwise conv_transpose3d(k=4, s=2, p=2), crop."""
    xp = _pad_spatial(x, 1, "edge")
    n, d, h, w, c = xp.shape
    xd = jnp.zeros((n, 2 * d + 1, 2 * h + 1, 2 * w + 1, c), jnp.float32)
    xd = xd.at[:, 1:2 * d:2, 1:2 * h:2, 1:2 * w:2, :].set(xp.astype(jnp.float32))
    do, ho, wo = 2 * d - 2, 2 * h - 2, 2 * w - 2
    acc = jnp.zeros((n, do, ho, wo, c), jnp.float32)
    for kd in range(4):
        for kh in range(4):
            for kw in range(4):
                acc = acc + float(_UP_FILT_NP[kd, kh, kw]) * xd[
                    :, kd:kd + do, kh:kh + ho, kw:kw + wo, :]
    return acc[:, 1:-1, 1:-1, 1:-1, :].astype(x.dtype)


# ----------------------------------------------------------------------------
# Generator (JAX / Pallas version of the PyTorch module)
# ----------------------------------------------------------------------------
def _conv_param(key, cout, cin, k, gain=0.02):
    kw_, kb_ = jax.random.split(key)
    w = gain * jax.random.normal(kw_, (cout, cin, k, k, k), jnp.float32)
    b = gain * jax.random.normal(kb_, (cout,), jnp.float32)
    return pack_conv3d(w, b)


def init_generator_params(key, input_nc, output_nc, ngf, n_blocks, seg_output_nc):
    keys = iter(jax.random.split(key, 2 * n_blocks + 12))
    return {
        "enc0": _conv_param(next(keys), ngf, input_nc, 7),
        "enc_down": [_conv_param(next(keys), ngf * 2, ngf, 3),
                     _conv_param(next(keys), ngf * 4, ngf * 2, 3)],
        "resnet": [{"c1": _conv_param(next(keys), ngf * 4, ngf * 4, 3),
                    "c2": _conv_param(next(keys), ngf * 4, ngf * 4, 3)}
                   for _ in range(n_blocks)],
        "syn0": _conv_param(next(keys), ngf * 2, ngf * 4, 3),
        "syn1": _conv_param(next(keys), ngf, ngf * 2, 3),
        "dyn_ctrl": {"w": 0.02 * jax.random.normal(next(keys), (2 * ngf, 3),
                                                   jnp.float32),
                     "b": 0.02 * jax.random.normal(next(keys), (2 * ngf,),
                                                   jnp.float32)},
        "syn_out": _conv_param(next(keys), output_nc, ngf, 7),
        "seg0": _conv_param(next(keys), ngf * 2, ngf * 4, 3),
        "seg1": _conv_param(next(keys), ngf, ngf * 2, 3),
        "seg_out": _conv_param(next(keys), seg_output_nc, ngf, 3),
    }


def _conv_in_relu(h, cp):
    y, st = conv3d_pallas(_pad_spatial(h, 1, "zero"), cp)
    return jax.nn.relu(_instance_norm(y, st))


def generator_forward(params, x_ncdhw, code):
    """x_ncdhw: (N, C, D, H, W); code: (N, 3). Returns (syn, seg) in NCDHW."""
    h = jnp.transpose(x_ncdhw, (0, 2, 3, 4, 1)).astype(jnp.bfloat16)

    # ---------------- encoder ----------------
    y, st = conv3d_pallas(_pad_spatial(h, 3, "reflect"), params["enc0"])
    h = jax.nn.relu(_instance_norm(y, st))
    for cp in params["enc_down"]:
        h = _conv_in_relu(h, cp)
        h = _blur_downsample(h)
    for blk in params["resnet"]:
        y, st = conv3d_pallas(_pad_spatial(h, 1, "reflect"), blk["c1"])
        r = jax.nn.relu(_instance_norm(y, st))
        y, st = conv3d_pallas(_pad_spatial(r, 1, "reflect"), blk["c2"])
        h = h + _instance_norm(y, st)
    bottleneck = h

    # ---------------- synthesis head ----------------
    h = _upsample_aa(bottleneck)
    h = _conv_in_relu(h, params["syn0"])
    h = _upsample_aa(h)
    y, st = conv3d_pallas(_pad_spatial(h, 1, "zero"), params["syn1"])
    nf = params["syn1"]["cout"]
    dyn = code.astype(jnp.float32) @ params["dyn_ctrl"]["w"].T + params["dyn_ctrl"]["b"]
    gamma, beta = dyn[:, :nf], dyn[:, nf:]
    h = _instance_norm(y, st).astype(jnp.float32)                 # DynamicIN
    h = jax.nn.relu(h * gamma[:, None, None, None, :]
                    + beta[:, None, None, None, :]).astype(jnp.bfloat16)
    syn, _ = conv3d_pallas(_pad_spatial(h, 3, "reflect"), params["syn_out"],
                           act="tanh")

    # ---------------- segmentation head ----------------
    h = _upsample_aa(bottleneck)
    h = _conv_in_relu(h, params["seg0"])
    h = _upsample_aa(h)
    h = _conv_in_relu(h, params["seg1"])
    seg, _ = conv3d_pallas(_pad_spatial(h, 1, "zero"), params["seg_out"])

    return (jnp.transpose(syn.astype(jnp.float32), (0, 4, 1, 2, 3)),
            jnp.transpose(seg.astype(jnp.float32), (0, 4, 1, 2, 3)))


class Generator:
    """JAX/Pallas port of the PyTorch Generator (n_downsampling=2, antialias path).

    __call__(x, code) -> (syn, seg), both NCDHW.
    # TODO(synk): the `layers` / `encode_only` feature-extraction path is not implemented.
    """

    def __init__(self, input_nc, output_nc, ngf=64, n_blocks=9, seg_output_nc=2,
                 key=None):
        key = jax.random.PRNGKey(0) if key is None else key
        self.params = init_generator_params(key, input_nc, output_nc, ngf,
                                            n_blocks, seg_output_nc)
        # Params are closed over so the packed-weight metadata stays Python-static.
        self._fwd = jax.jit(functools.partial(generator_forward, self.params))

    def __call__(self, x, code):
        return self._fwd(x, code)


# ----------------------------------------------------------------------------
# Self-checks + demo
# ----------------------------------------------------------------------------
def _conv_ref(x, w, b):
    xb = x.astype(jnp.bfloat16).astype(jnp.float32)
    wb = w.astype(jnp.bfloat16).astype(jnp.float32)
    k = w.shape[2]
    n, dp, hp, wp, _ = x.shape
    do, ho, wo = dp - k + 1, hp - k + 1, wp - k + 1
    acc = jnp.zeros((n, do, ho, wo, w.shape[0]), jnp.float32)
    for kd in range(k):
        for kh in range(k):
            for kw in range(k):
                acc = acc + jnp.einsum(
                    "ndhwc,oc->ndhwo",
                    xb[:, kd:kd + do, kh:kh + ho, kw:kw + wo, :],
                    wb[:, :, kd, kh, kw],
                    precision=jax.lax.Precision.HIGHEST)
    return acc + b


def _check_conv(key, n, spatial, cin, cout, k, tol=2e-2):
    ka, kb_, kc = jax.random.split(key, 3)
    x = jax.random.normal(ka, (n, spatial, spatial, spatial, cin), jnp.float32)
    w = 0.1 * jax.random.normal(kb_, (cout, cin, k, k, k), jnp.float32)
    b = 0.1 * jax.random.normal(kc, (cout,), jnp.float32)
    y, _ = conv3d_pallas(x, pack_conv3d(w, b), out_dtype=jnp.float32)
    err = float(jnp.max(jnp.abs(y - _conv_ref(x, w, b))))
    assert err < tol, f"conv3d mismatch (cin={cin}, cout={cout}, k={k}): {err}"


if __name__ == "__main__":
    key = jax.random.PRNGKey(0)
    k1, k2, k3, k4 = jax.random.split(key, 4)

    # folded-kw path (cin*k small)
    _check_conv(k1, n=1, spatial=8, cin=8, cout=16, k=3)
    # non-folded path + Cout > 128 (two Cout grid tiles)
    _check_conv(k2, n=1, spatial=6, cin=32, cout=160, k=3)
    # 7^3 path (fori over kd) + narrow (<=8 lane) output store
    _check_conv(k3, n=1, spatial=9, cin=16, cout=4, k=7)

    # --- full Generator forward on small shapes ---
    model = Generator(input_nc=1, output_nc=1, ngf=16, n_blocks=2,
                      seg_output_nc=2, key=jax.random.PRNGKey(0))
    kx, kcode = jax.random.split(k4, 2)
    x = jax.random.normal(kx, (2, 1, 16, 16, 16), jnp.float32)
    code = jax.random.normal(kcode, (2, 3), jnp.float32)
    syn, seg = model(x, code)
    syn, seg = jax.block_until_ready((syn, seg))

    assert syn.shape == (2, 1, 16, 16, 16), syn.shape
    assert seg.shape == (2, 2, 16, 16, 16), seg.shape
    assert bool(jnp.all(jnp.isfinite(syn)))
    assert bool(jnp.all(jnp.isfinite(seg)))
    assert float(jnp.max(jnp.abs(syn))) <= 1.0 + 1e-5   # Tanh output range
    print("KERNEL_OK")
</pallas_src>

<mosaic_0001>
module attributes {stable_mosaic.version = 11 : i64} {
  func.func @_conv3d_kernel(%arg0: i32, %arg1: i32, %arg2: i32, %arg3: i32, %arg4: memref<1x8x8x8x24xbf16, #tpu.memory_space<vmem>>, %arg5: memref<1x9x24x128xbf16, #tpu.memory_space<vmem>>, %arg6: memref<1x1x128xf32, #tpu.memory_space<vmem>>, %arg7: memref<1x6x6x8x128xf32, #tpu.memory_space<vmem>>, %arg8: memref<1x1x2x128xf32, #tpu.memory_space<vmem>>) attributes {dimension_semantics = [#tpu.dimension_semantics<parallel>, #tpu.dimension_semantics<parallel>, #tpu.dimension_semantics<arbitrary>, #tpu.dimension_semantics<arbitrary>], iteration_bounds = array<i64: 1, 1, 1, 1>, scalar_prefetch = 0 : i64, scratch_operands = 0 : i64, tpu.core_type = #tpu.core_type<tc>, window_params = [{transform_indices = @transform_0, window_bounds = array<i64: 1, 8, 8, 8, 24>}, {transform_indices = @transform_1, window_bounds = array<i64: 1, 9, 24, 128>}, {transform_indices = @transform_2, window_bounds = array<i64: 1, 1, 128>}, {transform_indices = @transform_3, window_bounds = array<i64: 1, 6, 6, 8, 128>}, {transform_indices = @transform_4, window_bounds = array<i64: 1, 1, 2, 128>}]} {
    %c6_i32 = arith.constant 6 : i32
    %0 = arith.muli %arg2, %c6_i32 : i32
    %c6_i32_0 = arith.constant 6 : i32
    %1 = arith.muli %arg3, %c6_i32_0 : i32
    %c0 = arith.constant 0 : index
    %c0_1 = arith.constant 0 : index
    %c0_2 = arith.constant 0 : index
    %2 = vector.load %arg6[%c0, %c0_1, %c0_2] : memref<1x1x128xf32, #tpu.memory_space<vmem>>, vector<1x1x128xf32>
    %3 = vector.shape_cast %2 : vector<1x1x128xf32> to vector<1x128xf32>
    %c0_i32 = arith.constant 0 : i32
    %4 = arith.cmpi eq, %arg2, %c0_i32 : i32
    %c0_i32_3 = arith.constant 0 : i32
    %5 = arith.cmpi eq, %arg3, %c0_i32_3 : i32
    %6 = arith.andi %4, %5 : i1
    %7 = arith.extui %6 : i1 to i32
    %c0_i32_4 = arith.constant 0 : i32
    %8 = arith.cmpi ne, %7, %c0_i32_4 : i32
    scf.if %8 {
      %cst_655 = arith.constant 0.000000e+00 : f32
      %845 = vector.broadcast %cst_655 : f32 to vector<1x1x2x128xf32>
      %c0_656 = arith.constant 0 : index
      %c0_657 = arith.constant 0 : index
      %c0_658 = arith.constant 0 : index
      %c0_659 = arith.constant 0 : index
      %846 = vector.load %arg8[%c0_656, %c0_657, %c0_658, %c0_659] : memref<1x1x2x128xf32, #tpu.memory_space<vmem>>, vector<1x1x2x128xf32>
      tpu.vector_store %arg8[%c0_656, %c0_657, %c0_658, %c0_659], %845 {strides = array<i32>} : memref<1x1x2x128xf32, #tpu.memory_space<vmem>>, vector<1x1x2x128xf32>,
    } else {
    }
    %9 = tpu.iota {dimensions = array<i32: 0>} : vector<48x1xi32>
    %c8_i32 = arith.constant 8 : i32
    %c0_i32_5 = arith.constant 0 : i32
    %10 = arith.cmpi eq, %c8_i32, %c0_i32_5 : i32
    %c1_i32 = arith.constant 1 : i32
    %11 = arith.select %10, %c1_i32, %c8_i32 : i32
    %12 = vector.broadcast %11 : i32 to vector<48x1xi32>
    %13 = arith.remsi %9, %12 : vector<48x1xi32>
    %c0_i32_6 = arith.constant 0 : i32
    %14 = vector.broadcast %c0_i32_6 : i32 to vector<48x1xi32>
    %15 = arith.cmpi ne, %13, %14 : vector<48x1xi32>
    %c0_i32_7 = arith.constant 0 : i32
    %16 = vector.broadcast %c0_i32_7 : i32 to vector<48x1xi32>
    %17 = arith.cmpi slt, %13, %16 : vector<48x1xi32>
    %c0_i32_8 = arith.constant 0 : i32
    %18 = arith.cmpi slt, %11, %c0_i32_8 : i32
    %19 = vector.broadcast %18 : i1 to vector<48x1xi1>
    %20 = vector.broadcast %19 : vector<48x1xi1> to vector<48x1xi1>
    %21 = arith.xori %17, %20 : vector<48x1xi1>
    %22 = arith.andi %21, %15 : vector<48x1xi1>
    %23 = vector.broadcast %11 : i32 to vector<48x1xi32>
    %24 = arith.addi %13, %23 : vector<48x1xi32>
    %25 = arith.select %22, %24, %13 : vector<48x1xi1>, vector<48x1xi32>
    %c6_i32_9 = arith.constant 6 : i32
    %26 = vector.broadcast %c6_i32_9 : i32 to vector<48x1xi32>
    %27 = arith.cmpi slt, %25, %26 : vector<48x1xi32>
    %cst = arith.constant 0.000000e+00 : f32
    %28 = vector.broadcast %cst : f32 to vector<1x128xf32>
    %cst_10 = arith.constant 0.000000e+00 : f32
    %29 = vector.broadcast %cst_10 : f32 to vector<1x128xf32>
    %cst_11 = arith.constant 0.000000e+00 : f32
    %30 = vector.broadcast %cst_11 : f32 to vector<48x128xf32>
    %c0_i32_12 = arith.constant 0 : i32
    %31 = arith.addi %0, %c0_i32_12 : i32
    %c0_i32_13 = arith.constant 0 : i32
    %32 = arith.addi %31, %c0_i32_13 : i32
    %c0_i32_14 = arith.constant 0 : i32
    %33 = arith.addi %1, %c0_i32_14 : i32
    %c0_15 = arith.constant 0 : index
    %34 = arith.index_cast %32 : i32 to index
    %35 = arith.index_cast %33 : i32 to index
    %c0_16 = arith.constant 0 : index
    %c0_17 = arith.constant 0 : index
    %36 = vector.load %arg4[%c0_15, %34, %35, %c0_16, %c0_17] : memref<1x8x8x8x24xbf16, #tpu.memory_space<vmem>>, vector<1x1x6x8x24xbf16>
    %37 = vector.shape_cast %36 : vector<1x1x6x8x24xbf16> to vector<1x6x8x24xbf16>
    %38 = vector.shape_cast %37 : vector<1x6x8x24xbf16> to vector<48x24xbf16>
    %c0_18 = arith.constant 0 : index
    %c0_19 = arith.constant 0 : index
    %c0_20 = arith.constant 0 : index
    %c0_21 = arith.constant 0 : index
    %39 = vector.load %arg5[%c0_18, %c0_19, %c0_20, %c0_21] : memref<1x9x24x128xbf16, #tpu.memory_space<vmem>>, vector<1x1x24x128xbf16>
    %40 = vector.shape_cast %39 : vector<1x1x24x128xbf16> to vector<1x24x128xbf16>
    %41 = vector.shape_cast %40 : vector<1x24x128xbf16> to vector<24x128xbf16>
    %cst_22 = arith.constant dense<0.000000e+00> : vector<48x128xf32>
    %42 = tpu.matmul %38, %41, %cst_22 {dimension_numbers = #tpu.dot_dimension_numbers<[1], [0], [0], [1], [0, 0, 1, 1], [], []>} : vector<48x24xbf16>, vector<24x128xbf16>, vector<48x128xf32> -> vector<48x128xf32>
    %43 = arith.addf %30, %42 : vector<48x128xf32>
    %c0_i32_23 = arith.constant 0 : i32
    %44 = arith.addi %0, %c0_i32_23 : i32
    %c0_i32_24 = arith.constant 0 : i32
    %45 = arith.addi %44, %c0_i32_24 : i32
    %c1_i32_25 = arith.constant 1 : i32
    %46 = arith.addi %1, %c1_i32_25 : i32
    %c0_26 = arith.constant 0 : index
    %47 = arith.index_cast %45 : i32 to index
    %48 = arith.index_cast %46 : i32 to index
    %c0_27 = arith.constant 0 : index
    %c0_28 = arith.constant 0 : index
    %49 = vector.load %arg4[%c0_26, %47, %48, %c0_27, %c0_28] : memref<1x8x8x8x24xbf16, #tpu.memory_space<vmem>>, vector<1x1x6x8x24xbf16>
    %50 = vector.shape_cast %49 : vector<1x1x6x8x24xbf16> to vector<1x6x8x24xbf16>
    %51 = vector.shape_cast %50 : vector<1x6x8x24xbf16> to vector<48x24xbf16>
    %c0_29 = arith.constant 0 : index
    %c1 = arith.constant 1 : index
    %c0_30 = arith.constant 0 : index
    %c0_31 = arith.constant 0 : index
    %52 = vector.load %arg5[%c0_29, %c1, %c0_30, %c0_31] : memref<1x9x24x128xbf16, #tpu.memory_space<vmem>>, vector<1x1x24x128xbf16>
    %53 = vector.shape_cast %52 : vector<1x1x24x128xbf16> to vector<1x24x128xbf16>
    %54 = vector.shape_cast %53 : vector<1x24x128xbf16> to vector<24x128xbf16>
    %cst_32 = arith.constant dense<0.000000e+00> : vector<48x128xf32>
    %55 = tpu.matmul %51, %54, %cst_32 {dimension_numbers = #tpu.dot_dimension_numbers<[1], [0], [0], [1], [0, 0, 1, 1], [], []>} : vector<48x24xbf16>, vector<24x128xbf16>, vector<48x128xf32> -> vector<48x128xf32>
    %56 = arith.addf %43, %55 : vector<48x128xf32>
    %c0_i32_33 = arith.constant 0 : i32
    %57 = arith.addi %0, %c0_i32_33 : i32
    %c0_i32_34 = arith.constant 0 : i32
    %58 = arith.addi %57, %c0_i32_34 : i32
    %c2_i32 = arith.constant 2 : i32
    %59 = arith.addi %1, %c2_i32 : i32
    %c0_35 = arith.constant 0 : index
    %60 = arith.index_cast %58 : i32 to index
    %61 = arith.index_cast %59 : i32 to index
    %c0_36 = arith.constant 0 : index
    %c0_37 = arith.constant 0 : index
    %62 = vector.load %arg4[%c0_35, %60, %61, %c0_36, %c0_37] : memref<1x8x8x8x24xbf16, #tpu.memory_space<vmem>>, vector<1x1x6x8x24xbf16>
    %63 = vector.shape_cast %62 : vector<1x1x6x8x24xbf16> to vector<1x6x8x24xbf16>
    %64 = vector.shape_cast %63 : vector<1x6x8x24xbf16> to vector<48x24xbf16>
    %c0_38 = arith.constant 0 : index
    %c2 = arith.constant 2 : index
    %c0_39 = arith.constant 0 : index
    %c0_40 = arith.constant 0 : index
    %65 = vector.load %arg5[%c0_38, %c2, %c0_39, %c0_40] : memref<1x9x24x128xbf16, #tpu.memory_space<vmem>>, vector<1x1x24x128xbf16>
    %66 = vector.shape_cast %65 : vector<1x1x24x128xbf16> to vector<1x24x128xbf16>
    %67 = vector.shape_cast %66 : vector<1x24x128xbf16> to vector<24x128xbf16>
    %cst_41 = arith.constant dense<0.000000e+00> : vector<48x128xf32>
    %68 = tpu.matmul %64, %67, %cst_41 {dimension_numbers = #tpu.dot_dimension_numbers<[1], [0], [0], [1], [0, 0, 1, 1], [], []>} : vector<48x24xbf16>, vector<24x128xbf16>, vector<48x128xf32> -> vector<48x128xf32>
    %69 = arith.addf %56, %68 : vector<48x128xf32>
    %c0_i32_42 = arith.constant 0 : i32
    %70 = arith.addi %0, %c0_i32_42 : i32
    %c1_i32_43 = arith.constant 1 : i32
    %71 = arith.addi %70, %c1_i32_43 : i32
    %c0_i32_44 = arith.constant 0 : i32
    %72 = arith.addi %1, %c0_i32_44 : i32
    %c0_45 = arith.constant 0 : index
    %73 = arith.index_cast %71 : i32 to index
    %74 = arith.index_cast %72 : i32 to index
    %c0_46 = arith.constant 0 : index
    %c0_47 = arith.constant 0 : index
    %75 = vector.load %arg4[%c0_45, %73, %74, %c0_46, %c0_47] : memref<1x8x8x8x24xbf16, #tpu.memory_space<vmem>>, vector<1x1x6x8x24xbf16>
    %76 = vector.shape_cast %75 : vector<1x1x6x8x24xbf16> to vector<1x6x8x24xbf16>
    %77 = vector.shape_cast %76 : vector<1x6x8x24xbf16> to vector<48x24xbf16>
    %c0_48 = arith.constant 0 : index
    %c3 = arith.constant 3 : index
    %c0_49 = arith.constant 0 : index
    %c0_50 = arith.constant 0 : index
    %78 = vector.load %arg5[%c0_48, %c3, %c0_49, %c0_50] : memref<1x9x24x128xbf16, #tpu.memory_space<vmem>>, vector<1x1x24x128xbf16>
    %79 = vector.shape_cast %78 : vector<1x1x24x128xbf16> to vector<1x24x128xbf16>
    %80 = vector.shape_cast %79 : vector<1x24x128xbf16> to vector<24x128xbf16>
    %cst_51 = arith.constant dense<0.000000e+00> : vector<48x128xf32>
    %81 = tpu.matmul %77, %80, %cst_51 {dimension_numbers = #tpu.dot_dimension_numbers<[1], [0], [0], [1], [0, 0, 1, 1], [], []>} : vector<48x24xbf16>, vector<24x128xbf16>, vector<48x128xf32> -> vector<48x128xf32>
    %82 = arith.addf %69, %81 : vector<48x128xf32>
    %c0_i32_52 = arith.constant 0 : i32
    %83 = arith.addi %0, %c0_i32_52 : i32
    %c1_i32_53 = arith.constant 1 : i32
    %84 = arith.addi %83, %c1_i32_53 : i32
    %c1_i32_54 = arith.constant 1 : i32
    %85 = arith.addi %1, %c1_i32_54 : i32
    %c0_55 = arith.constant 0 : index
    %86 = arith.index_cast %84 : i32 to index
    %87 = arith.index_cast %85 : i32 to index
    %c0_56 = arith.constant 0 : index
    %c0_57 = arith.constant 0 : index
    %88 = vector.load %arg4[%c0_55, %86, %87, %c0_56, %c0_57] : memref<1x8x8x8x24xbf16, #tpu.memory_space<vmem>>, vector<1x1x6x8x24xbf16>
    %89 = vector.shape_cast %88 : vector<1x1x6x8x24xbf16> to vector<1x6x8x24xbf16>
    %90 = vector.shape_cast %89 : vector<1x6x8x24xbf16> to vector<48x24xbf16>
    %c0_58 = arith.constant 0 : index
    %c4 = arith.constant 4 : index
    %c0_59 = arith.constant 0 : index
    %c0_60 = arith.constant 0 : index
    %91 = vector.load %arg5[%c0_58, %c4, %c0_59, %c0_60] : memref<1x9x24x128xbf16, #tpu.memory_space<vmem>>, vector<1x1x24x128xbf16>
    %92 = vector.shape_cast %91 : vector<1x1x24x128xbf16> to vector<1x24x128xbf16>
    %93 = vector.shape_cast %92 : vector<1x24x128xbf16> to vector<24x128xbf16>
    %cst_61 = arith.constant dense<0.000000e+00> : vector<48x128xf32>
    %94 = tpu.matmul %90, %93, %cst_61 {dimension_numbers = #tpu.dot_dimension_numbers<[1], [0], [0], [1], [0, 0, 1, 1], [], []>} : vector<48x24xbf16>, vector<24x128xbf16>, vector<48x128xf32> -> vector<48x128xf32>
    %95 = arith.addf %82, %94 : vector<48x128xf32>
    %c0_i32_62 = arith.constant 0 : i32
    %96 = arith.addi %0, %c0_i32_62 : i32
    %c1_i32_63 = arith.constant 1 : i32
    %97 = arith.addi %96, %c1_i32_63 : i32
    %c2_i32_64 = arith.constant 2 : i32
    %98 = arith.addi %1, %c2_i32_64 : i32
    %c0_65 = arith.constant 0 : index
    %99 = arith.index_cast %97 : i32 to index
    %100 = arith.index_cast %98 : i32 to index
    %c0_66 = arith.constant 0 : index
    %c0_67 = arith.constant 0 : index
    %101 = vector.load %arg4[%c0_65, %99, %100, %c0_66, %c0_67] : memref<1x8x8x8x24xbf16, #tpu.memory_space<vmem>>, vector<1x1x6x8x24xbf16>
    %102 = vector.shape_cast %101 : vector<1x1x6x8x24xbf16> to vector<1x6x8x24xbf16>
    %103 = vector.shape_cast %102 : vector<1x6x8x24xbf16> to vector<48x24xbf16>
    %c0_68 = arith.constant 0 : index
    %c5 = arith.constant 5 : index
    %c0_69 = arith.constant 0 : index
    %c0_70 = arith.constant 0 : index
    %104 = vector.load %arg5[%c0_68, %c5, %c0_69, %c0_70] : memref<1x9x24x128xbf16, #tpu.memory_space<vmem>>, vector<1x1x24x128xbf16>
    %105 = vector.shape_cast %104 : vector<1x1x24x128xbf16> to vector<1x24x128xbf16>
    %106 = vector.shape_cast %105 : vector<1x24x128xbf16> to vector<24x128xbf16>
    %cst_71 = arith.constant dense<0.000000e+00> : vector<48x128xf32>
    %107 = tpu.matmul %103, %106, %cst_71 {dimension_numbers = #tpu.dot_dimension_numbers<[1], [0], [0], [1], [0, 0, 1, 1], [], []>} : vector<48x24xbf16>, vector<24x128xbf16>, vector<48x128xf32> -> vector<48x128xf32>
    %108 = arith.addf %95, %107 : vector<48x128xf32>
    %c0_i32_72 = arith.constant 0 : i32
    %109 = arith.addi %0, %c0_i32_72 : i32
    %c2_i32_73 = arith.constant 2 : i32
    %110 = arith.addi %109, %c2_i32_73 : i32
    %c0_i32_74 = arith.constant 0 : i32
    %111 = arith.addi %1, %c0_i32_74 : i32
    %c0_75 = arith.constant 0 : index
    %112 = arith.index_cast %110 : i32 to index
    %113 = arith.index_cast %111 : i32 to index
    %c0_76 = arith.constant 0 : index
    %c0_77 = arith.constant 0 : index
    %114 = vector.load %arg4[%c0_75, %112, %113, %c0_76, %c0_77] : memref<1x8x8x8x24xbf16, #tpu.memory_space<vmem>>, vector<1x1x6x8x24xbf16>
    %115 = vector.shape_cast %114 : vector<1x1x6x8x24xbf16> to vector<1x6x8x24xbf16>
    %116 = vector.shape_cast %115 : vector<1x6x8x24xbf16> to vector<48x24xbf16>
    %c0_78 = arith.constant 0 : index
    %c6 = arith.constant 6 : index
    %c0_79 = arith.constant 0 : index
    %c0_80 = arith.constant 0 : index
    %117 = vector.load %arg5[%c0_78, %c6, %c0_79, %c0_80] : memref<1x9x24x128xbf16, #tpu.memory_space<vmem>>, vector<1x1x24x128xbf16>
    %118 = vector.shape_cast %117 : vector<1x1x24x128xbf16> to vector<1x24x128xbf16>
    %119 = vector.shape_cast %118 : vector<1x24x128xbf16> to vector<24x128xbf16>
    %cst_81 = arith.constant dense<0.000000e+00> : vector<48x128xf32>
    %120 = tpu.matmul %116, %119, %cst_81 {dimension_numbers = #tpu.dot_dimension_numbers<[1], [0], [0], [1], [0, 0, 1, 1], [], []>} : vector<48x24xbf16>, vector<24x128xbf16>, vector<48x128xf32> -> vector<48x128xf32>
    %121 = arith.addf %108, %120 : vector<48x128xf32>
    %c0_i32_82 = arith.constant 0 : i32
    %122 = arith.addi %0, %c0_i32_82 : i32
    %c2_i32_83 = arith.constant 2 : i32
    %123 = arith.addi %122, %c2_i32_83 : i32
    %c1_i32_84 = arith.constant 1 : i32
    %124 = arith.addi %1, %c1_i32_84 : i32
    %c0_85 = arith.constant 0 : index
    %125 = arith.index_cast %123 : i32 to index
    %126 = arith.index_cast %124 : i32 to index
    %c0_86 = arith.constant 0 : index
    %c0_87 = arith.constant 0 : index
    %127 = vector.load %arg4[%c0_85, %125, %126, %c0_86, %c0_87] : memref<1x8x8x8x24xbf16, #tpu.memory_space<vmem>>, vector<1x1x6x8x24xbf16>
    %128 = vector.shape_cast %127 : vector<1x1x6x8x24xbf16> to vector<1x6x8x24xbf16>
    %129 = vector.shape_cast %128 : vector<1x6x8x24xbf16> to vector<48x24xbf16>
    %c0_88 = arith.constant 0 : index
    %c7 = arith.constant 7 : index
    %c0_89 = arith.constant 0 : index
    %c0_90 = arith.constant 0 : index
    %130 = vector.load %arg5[%c0_88, %c7, %c0_89, %c0_90] : memref<1x9x24x128xbf16, #tpu.memory_space<vmem>>, vector<1x1x24x128xbf16>
    %131 = vector.shape_cast %130 : vector<1x1x24x128xbf16> to vector<1x24x128xbf16>
    %132 = vector.shape_cast %131 : vector<1x24x128xbf16> to vector<24x128xbf16>
    %cst_91 = arith.constant dense<0.000000e+00> : vector<48x128xf32>
    %133 = tpu.matmul %129, %132, %cst_91 {dimension_numbers = #tpu.dot_dimension_numbers<[1], [0], [0], [1], [0, 0, 1, 1], [], []>} : vector<48x24xbf16>, vector<24x128xbf16>, vector<48x128xf32> -> vector<48x128xf32>
    %134 = arith.addf %121, %133 : vector<48x128xf32>
    %c0_i32_92 = arith.constant 0 : i32
    %135 = arith.addi %0, %c0_i32_92 : i32
    %c2_i32_93 = arith.constant 2 : i32
    %136 = arith.addi %135, %c2_i32_93 : i32
    %c2_i32_94 = arith.constant 2 : i32
    %137 = arith.addi %1, %c2_i32_94 : i32
    %c0_95 = arith.constant 0 : index
    %138 = arith.index_cast %136 : i32 to index
    %139 = arith.index_cast %137 : i32 to index
    %c0_96 = arith.constant 0 : index
    %c0_97 = arith.constant 0 : index
    %140 = vector.load %arg4[%c0_95, %138, %139, %c0_96, %c0_97] : memref<1x8x8x8x24xbf16, #tpu.memory_space<vmem>>, vector<1x1x6x8x24xbf16>
    %141 = vector.shape_cast %140 : vector<1x1x6x8x24xbf16> to vector<1x6x8x24xbf16>
    %142 = vector.shape_cast %141 : vector<1x6x8x24xbf16> to vector<48x24xbf16>
    %c0_98 = arith.constant 0 : index
    %c8 = arith.constant 8 : index
    %c0_99 = arith.constant 0 : index
    %c0_100 = arith.constant 0 : index
    %143 = vector.load %arg5[%c0_98, %c8, %c0_99, %c0_100] : memref<1x9x24x128xbf16, #tpu.memory_space<vmem>>, vector<1x1x24x128xbf16>
    %144 = vector.shape_cast %143 : vector<1x1x24x128xbf16> to vector<1x24x128xbf16>
    %145 = vector.shape_cast %144 : vector<1x24x128xbf16> to vector<24x128xbf16>
    %cst_101 = arith.constant dense<0.000000e+00> : vector<48x128xf32>
    %146 = tpu.matmul %142, %145, %cst_101 {dimension_numbers = #tpu.dot_dimension_numbers<[1], [0], [0], [1], [0, 0, 1, 1], [], []>} : vector<48x24xbf16>, vector<24x128xbf16>, vector<48x128xf32> -> vector<48x128xf32>
    %147 = arith.addf %134, %146 : vector<48x128xf32>
    %148 = vector.broadcast %3 : vector<1x128xf32> to vector<48x128xf32>
    %149 = arith.addf %147, %148 : vector<48x128xf32>
    %cst_102 = arith.constant 0.000000e+00 : f32
    %150 = vector.shape_cast %27 : vector<48x1xi1> to vector<48x1xi1>
    %151 = vector.broadcast %150 : vector<48x1xi1> to vector<48x128xi1>
    %152 = vector.broadcast %cst_102 : f32 to vector<48x128xf32>
    %153 = arith.select %151, %149, %152 : vector<48x128xi1>, vector<48x128xf32>
    %cst_103 = arith.constant dense<0.000000e+00> : vector<128xf32>
    %154 = vector.multi_reduction <add>, %153, %cst_103 [0] : vector<48x128xf32> to vector<128xf32>
    %155 = vector.shape_cast %154 : vector<128xf32> to vector<1x128xf32>
    %156 = arith.addf %28, %155 : vector<1x128xf32>
    %157 = arith.mulf %153, %153 : vector<48x128xf32>
    %cst_104 = arith.constant dense<0.000000e+00> : vector<128xf32>
    %158 = vector.multi_reduction <add>, %157, %cst_104 [0] : vector<48x128xf32> to vector<128xf32>
    %159 = vector.shape_cast %158 : vector<128xf32> to vector<1x128xf32>
    %160 = arith.addf %29, %159 : vector<1x128xf32>
    %161 = vector.shape_cast %149 : vector<48x128xf32> to vector<6x8x128xf32>
    %c0_105 = arith.constant 0 : index
    %c0_106 = arith.constant 0 : index
    %c0_107 = arith.constant 0 : index
    %c0_108 = arith.constant 0 : index
    %c0_109 = arith.constant 0 : index
    %162 = vector.load %arg7[%c0_105, %c0_106, %c0_107, %c0_108, %c0_109] : memref<1x6x6x8x128xf32, #tpu.memory_space<vmem>>, vector<1x1x6x8x128xf32>
    %163 = vector.shape_cast %162 : vector<1x1x6x8x128xf32> to vector<6x8x128xf32>
    %164 = vector.shape_cast %161 : vector<6x8x128xf32> to vector<1x1x6x8x128xf32>
    tpu.vector_store %arg7[%c0_105, %c0_106, %c0_107, %c0_108, %c0_109], %164 {strides = array<i32>} : memref<1x6x6x8x128xf32, #tpu.memory_space<vmem>>, vector<1x1x6x8x128xf32>,
    %cst_110 = arith.constant 0.000000e+00 : f32
    %165 = vector.broadcast %cst_110 : f32 to vector<48x128xf32>
    %c1_i32_111 = arith.constant 1 : i32
    %166 = arith.addi %0, %c1_i32_111 : i32
    %c0_i32_112 = arith.constant 0 : i32
    %167 = arith.addi %166, %c0_i32_112 : i32
    %c0_i32_113 = arith.constant 0 : i32
    %168 = arith.addi %1, %c0_i32_113 : i32
    %c0_114 = arith.constant 0 : index
    %169 = arith.index_cast %167 : i32 to index
    %170 = arith.index_cast %168 : i32 to index
    %c0_115 = arith.constant 0 : index
    %c0_116 = arith.constant 0 : index
    %171 = vector.load %arg4[%c0_114, %169, %170, %c0_115, %c0_116] : memref<1x8x8x8x24xbf16, #tpu.memory_space<vmem>>, vector<1x1x6x8x24xbf16>
    %172 = vector.shape_cast %171 : vector<1x1x6x8x24xbf16> to vector<1x6x8x24xbf16>
    %173 = vector.shape_cast %172 : vector<1x6x8x24xbf16> to vector<48x24xbf16>
    %c0_117 = arith.constant 0 : index
    %c0_118 = arith.constant 0 : index
    %c0_119 = arith.constant 0 : index
    %c0_120 = arith.constant 0 : index
    %174 = vector.load %arg5[%c0_117, %c0_118, %c0_119, %c0_120] : memref<1x9x24x128xbf16, #tpu.memory_space<vmem>>, vector<1x1x24x128xbf16>
    %175 = vector.shape_cast %174 : vector<1x1x24x128xbf16> to vector<1x24x128xbf16>
    %176 = vector.shape_cast %175 : vector<1x24x128xbf16> to vector<24x128xbf16>
    %cst_121 = arith.constant dense<0.000000e+00> : vector<48x128xf32>
    %177 = tpu.matmul %173, %176, %cst_121 {dimension_numbers = #tpu.dot_dimension_numbers<[1], [0], [0], [1], [0, 0, 1, 1], [], []>} : vector<48x24xbf16>, vector<24x128xbf16>, vector<48x128xf32> -> vector<48x128xf32>
    %178 = arith.addf %165, %177 : vector<48x128xf32>
    %c1_i32_122 = arith.constant 1 : i32
    %179 = arith.addi %0, %c1_i32_122 : i32
    %c0_i32_123 = arith.constant 0 : i32
    %180 = arith.addi %179, %c0_i32_123 : i32
    %c1_i32_124 = arith.constant 1 : i32
    %181 = arith.addi %1, %c1_i32_124 : i32
    %c0_125 = arith.constant 0 : index
    %182 = arith.index_cast %180 : i32 to index
    %183 = arith.index_cast %181 : i32 to index
    %c0_126 = arith.constant 0 : index
    %c0_127 = arith.constant 0 : index
    %184 = vector.load %arg4[%c0_125, %182, %183, %c0_126, %c0_127] : memref<1x8x8x8x24xbf16, #tpu.memory_space<vmem>>, vector<1x1x6x8x24xbf16>
    %185 = vector.shape_cast %184 : vector<1x1x6x8x24xbf16> to vector<1x6x8x24xbf16>
    %186 = vector.shape_cast %185 : vector<1x6x8x24xbf16> to vector<48x24xbf16>
    %c0_128 = arith.constant 0 : index
    %c1_129 = arith.constant 1 : index
    %c0_130 = arith.constant 0 : index
    %c0_131 = arith.constant 0 : index
    %187 = vector.load %arg5[%c0_128, %c1_129, %c0_130, %c0_131] : memref<1x9x24x128xbf16, #tpu.memory_space<vmem>>, vector<1x1x24x128xbf16>
    %188 = vector.shape_cast %187 : vector<1x1x24x128xbf16> to vector<1x24x128xbf16>
    %189 = vector.shape_cast %188 : vector<1x24x128xbf16> to vector<24x128xbf16>
    %cst_132 = arith.constant dense<0.000000e+00> : vector<48x128xf32>
    %190 = tpu.matmul %186, %189, %cst_132 {dimension_numbers = #tpu.dot_dimension_numbers<[1], [0], [0], [1], [0, 0, 1, 1], [], []>} : vector<48x24xbf16>, vector<24x128xbf16>, vector<48x128xf32> -> vector<48x128xf32>
    %191 = arith.addf %178, %190 : vector<48x128xf32>
    %c1_i32_133 = arith.constant 1 : i32
    %192 = arith.addi %0, %c1_i32_133 : i32
    %c0_i32_134 = arith.constant 0 : i32
    %193 = arith.addi %192, %c0_i32_134 : i32
    %c2_i32_135 = arith.constant 2 : i32
    %194 = arith.addi %1, %c2_i32_135 : i32
    %c0_136 = arith.constant 0 : index
    %195 = arith.index_cast %193 : i32 to index
    %196 = arith.index_cast %194 : i32 to index
    %c0_137 = arith.constant 0 : index
    %c0_138 = arith.constant 0 : index
    %197 = vector.load %arg4[%c0_136, %195, %196, %c0_137, %c0_138] : memref<1x8x8x8x24xbf16, #tpu.memory_space<vmem>>, vector<1x1x6x8x24xbf16>
    %198 = vector.shape_cast %197 : vector<1x1x6x8x24xbf16> to vector<1x6x8x24xbf16>
    %199 = vector.shape_cast %198 : vector<1x6x8x24xbf16> to vector<48x24xbf16>
    %c0_139 = arith.constant 0 : index
    %c2_140 = arith.constant 2 : index
    %c0_141 = arith.constant 0 : index
    %c0_142 = arith.constant 0 : index
    %200 = vector.load %arg5[%c0_139, %c2_140, %c0_141, %c0_142] : memref<1x9x24x128xbf16, #tpu.memory_space<vmem>>, vector<1x1x24x128xbf16>
    %201 = vector.shape_cast %200 : vector<1x1x24x128xbf16> to vector<1x24x128xbf16>
    %202 = vector.shape_cast %201 : vector<1x24x128xbf16> to vector<24x128xbf16>
    %cst_143 = arith.constant dense<0.000000e+00> : vector<48x128xf32>
    %203 = tpu.matmul %199, %202, %cst_143 {dimension_numbers = #tpu.dot_dimension_numbers<[1], [0], [0], [1], [0, 0, 1, 1], [], []>} : vector<48x24xbf16>, vector<24x128xbf16>, vector<48x128xf32> -> vector<48x128xf32>
    %204 = arith.addf %191, %203 : vector<48x128xf32>
    %c1_i32_144 = arith.constant 1 : i32
    %205 = arith.addi %0, %c1_i32_144 : i32
    %c1_i32_145 = arith.constant 1 : i32
    %206 = arith.addi %205, %c1_i32_145 : i32
    %c0_i32_146 = arith.constant 0 : i32
    %207 = arith.addi %1, %c0_i32_146 : i32
    %c0_147 = arith.constant 0 : index
    %208 = arith.index_cast %206 : i32 to index
    %209 = arith.index_cast %207 : i32 to index
    %c0_148 = arith.constant 0 : index
    %c0_149 = arith.constant 0 : index
    %210 = vector.load %arg4[%c0_147, %208, %209, %c0_148, %c0_149] : memref<1x8x8x8x24xbf16, #tpu.memory_space<vmem>>, vector<1x1x6x8x24xbf16>
    %211 = vector.shape_cast %210 : vector<1x1x6x8x24xbf16> to vector<1x6x8x24xbf16>
    %212 = vector.shape_cast %211 : vector<1x6x8x24xbf16> to vector<48x24xbf16>
    %c0_150 = arith.constant 0 : index
    %c3_151 = arith.constant 3 : index
    %c0_152 = arith.constant 0 : index
    %c0_153 = arith.constant 0 : index
    %213 = vector.load %arg5[%c0_150, %c3_151, %c0_152, %c0_153] : memref<1x9x24x128xbf16, #tpu.memory_space<vmem>>, vector<1x1x24x128xbf16>
    %214 = vector.shape_cast %213 : vector<1x1x24x128xbf16> to vector<1x24x128xbf16>
    %215 = vector.shape_cast %214 : vector<1x24x128xbf16> to vector<24x128xbf16>
    %cst_154 = arith.constant dense<0.000000e+00> : vector<48x128xf32>
    %216 = tpu.matmul %212, %215, %cst_154 {dimension_numbers = #tpu.dot_dimension_numbers<[1], [0], [0], [1], [0, 0, 1, 1], [], []>} : vector<48x24xbf16>, vector<24x128xbf16>, vector<48x128xf32> -> vector<48x128xf32>
    %217 = arith.addf %204, %216 : vector<48x128xf32>
    %c1_i32_155 = arith.constant 1 : i32
    %218 = arith.addi %0, %c1_i32_155 : i32
    %c1_i32_156 = arith.constant 1 : i32
    %219 = arith.addi %218, %c1_i32_156 : i32
    %c1_i32_157 = arith.constant 1 : i32
    %220 = arith.addi %1, %c1_i32_157 : i32
    %c0_158 = arith.constant 0 : index
    %221 = arith.index_cast %219 : i32 to index
    %222 = arith.index_cast %220 : i32 to index
    %c0_159 = arith.constant 0 : index
    %c0_160 = arith.constant 0 : index
    %223 = vector.load %arg4[%c0_158, %221, %222, %c0_159, %c0_160] : memref<1x8x8x8x24xbf16, #tpu.memory_space<vmem>>, vector<1x1x6x8x24xbf16>
    %224 = vector.shape_cast %223 : vector<1x1x6x8x24xbf16> to vector<1x6x8x24xbf16>
    %225 = vector.shape_cast %224 : vector<1x6x8x24xbf16> to vector<48x24xbf16>
    %c0_161 = arith.constant 0 : index
    %c4_162 = arith.constant 4 : index
    %c0_163 = arith.constant 0 : index
    %c0_164 = arith.constant 0 : index
    %226 = vector.load %arg5[%c0_161, %c4_162, %c0_163, %c0_164] : memref<1x9x24x128xbf16, #tpu.memory_space<vmem>>, vector<1x1x24x128xbf16>
    %227 = vector.shape_cast %226 : vector<1x1x24x128xbf16> to vector<1x24x128xbf16>
    %228 = vector.shape_cast %227 : vector<1x24x128xbf16> to vector<24x128xbf16>
    %cst_165 = arith.constant dense<0.000000e+00> : vector<48x128xf32>
    %229 = tpu.matmul %225, %228, %cst_165 {dimension_numbers = #tpu.dot_dimension_numbers<[1], [0], [0], [1], [0, 0, 1, 1], [], []>} : vector<48x24xbf16>, vector<24x128xbf16>, vector<48x128xf32> -> vector<48x128xf32>
    %230 = arith.addf %217, %229 : vector<48x128xf32>
    %c1_i32_166 = arith.constant 1 : i32
    %231 = arith.addi %0, %c1_i32_166 : i32
    %c1_i32_167 = arith.constant 1 : i32
    %232 = arith.addi %231, %c1_i32_167 : i32
    %c2_i32_168 = arith.constant 2 : i32
    %233 = arith.addi %1, %c2_i32_168 : i32
    %c0_169 = arith.constant 0 : index
    %234 = arith.index_cast %232 : i32 to index
    %235 = arith.index_cast %233 : i32 to index
    %c0_170 = arith.constant 0 : index
    %c0_171 = arith.constant 0 : index
    %236 = vector.load %arg4[%c0_169, %234, %235, %c0_170, %c0_171] : memref<1x8x8x8x24xbf16, #tpu.memory_space<vmem>>, vector<1x1x6x8x24xbf16>
    %237 = vector.shape_cast %236 : vector<1x1x6x8x24xbf16> to vector<1x6x8x24xbf16>
    %238 = vector.shape_cast %237 : vector<1x6x8x24xbf16> to vector<48x24xbf16>
    %c0_172 = arith.constant 0 : index
    %c5_173 = arith.constant 5 : index
    %c0_174 = arith.constant 0 : index
    %c0_175 = arith.constant 0 : index
    %239 = vector.load %arg5[%c0_172, %c5_173, %c0_174, %c0_175] : memref<1x9x24x128xbf16, #tpu.memory_space<vmem>>, vector<1x1x24x128xbf16>
    %240 = vector.shape_cast %239 : vector<1x1x24x128xbf16> to vector<1x24x128xbf16>
    %241 = vector.shape_cast %240 : vector<1x24x128xbf16> to vector<24x128xbf16>
    %cst_176 = arith.constant dense<0.000000e+00> : vector<48x128xf32>
    %242 = tpu.matmul %238, %241, %cst_176 {dimension_numbers = #tpu.dot_dimension_numbers<[1], [0], [0], [1], [0, 0, 1, 1], [], []>} : vector<48x24xbf16>, vector<24x128xbf16>, vector<48x128xf32> -> vector<48x128xf32>
    %243 = arith.addf %230, %242 : vector<48x128xf32>
    %c1_i32_177 = arith.constant 1 : i32
    %244 = arith.addi %0, %c1_i32_177 : i32
    %c2_i32_178 = arith.constant 2 : i32
    %245 = arith.addi %244, %c2_i32_178 : i32
    %c0_i32_179 = arith.constant 0 : i32
    %246 = arith.addi %1, %c0_i32_179 : i32
    %c0_180 = arith.constant 0 : index
    %247 = arith.index_cast %245 : i32 to index
    %248 = arith.index_cast %246 : i32 to index
    %c0_181 = arith.constant 0 : index
    %c0_182 = arith.constant 0 : index
    %249 = vector.load %arg4[%c0_180, %247, %248, %c0_181, %c0_182] : memref<1x8x8x8x24xbf16, #tpu.memory_space<vmem>>, vector<1x1x6x8x24xbf16>
    %250 = vector.shape_cast %249 : vector<1x1x6x8x24xbf16> to vector<1x6x8x24xbf16>
    %251 = vector.shape_cast %250 : vector<1x6x8x24xbf16> to vector<48x24xbf16>
    %c0_183 = arith.constant 0 : index
    %c6_184 = arith.constant 6 : index
    %c0_185 = arith.constant 0 : index
    %c0_186 = arith.constant 0 : index
    %252 = vector.load %arg5[%c0_183, %c6_184, %c0_185, %c0_186] : memref<1x9x24x128xbf16, #tpu.memory_space<vmem>>, vector<1x1x24x128xbf16>
    %253 = vector.shape_cast %252 : vector<1x1x24x128xbf16> to vector<1x24x128xbf16>
    %254 = vector.shape_cast %253 : vector<1x24x128xbf16> to vector<24x128xbf16>
    %cst_187 = arith.constant dense<0.000000e+00> : vector<48x128xf32>
    %255 = tpu.matmul %251, %254, %cst_187 {dimension_numbers = #tpu.dot_dimension_numbers<[1], [0], [0], [1], [0, 0, 1, 1], [], []>} : vector<48x24xbf16>, vector<24x128xbf16>, vector<48x128xf32> -> vector<48x128xf32>
    %256 = arith.addf %243, %255 : vector<48x128xf32>
    %c1_i32_188 = arith.constant 1 : i32
    %257 = arith.addi %0, %c1_i32_188 : i32
    %c2_i32_189 = arith.constant 2 : i32
    %258 = arith.addi %257, %c2_i32_189 : i32
    %c1_i32_190 = arith.constant 1 : i32
    %259 = arith.addi %1, %c1_i32_190 : i32
    %c0_191 = arith.constant 0 : index
    %260 = arith.index_cast %258 : i32 to index
    %261 = arith.index_cast %259 : i32 to index
    %c0_192 = arith.constant 0 : index
    %c0_193 = arith.constant 0 : index
    %262 = vector.load %arg4[%c0_191, %260, %261, %c0_192, %c0_193] : memref<1x8x8x8x24xbf16, #tpu.memory_space<vmem>>, vector<1x1x6x8x24xbf16>
    %263 = vector.shape_cast %262 : vector<1x1x6x8x24xbf16> to vector<1x6x8x24xbf16>
    %264 = vector.shape_cast %263 : vector<1x6x8x24xbf16> to vector<48x24xbf16>
    %c0_194 = arith.constant 0 : index
    %c7_195 = arith.constant 7 : index
    %c0_196 = arith.constant 0 : index
    %c0_197 = arith.constant 0 : index
    %265 = vector.load %arg5[%c0_194, %c7_195, %c0_196, %c0_197] : memref<1x9x24x128xbf16, #tpu.memory_space<vmem>>, vector<1x1x24x128xbf16>
    %266 = vector.shape_cast %265 : vector<1x1x24x128xbf16> to vector<1x24x128xbf16>
    %267 = vector.shape_cast %266 : vector<1x24x128xbf16> to vector<24x128xbf16>
    %cst_198 = arith.constant dense<0.000000e+00> : vector<48x128xf32>
    %268 = tpu.matmul %264, %267, %cst_198 {dimension_numbers = #tpu.dot_dimension_numbers<[1], [0], [0], [1], [0, 0, 1, 1], [], []>} : vector<48x24xbf16>, vector<24x128xbf16>, vector<48x128xf32> -> vector<48x128xf32>
    %269 = arith.addf %256, %268 : vector<48x128xf32>
    %c1_i32_199 = arith.constant 1 : i32
    %270 = arith.addi %0, %c1_i32_199 : i32
    %c2_i32_200 = arith.constant 2 : i32
    %271 = arith.addi %270, %c2_i32_200 : i32
    %c2_i32_201 = arith.constant 2 : i32
    %272 = arith.addi %1, %c2_i32_201 : i32
    %c0_202 = arith.constant 0 : index
    %273 = arith.index_cast %271 : i32 to index
    %274 = arith.index_cast %272 : i32 to index
    %c0_203 = arith.constant 0 : index
    %c0_204 = arith.constant 0 : index
    %275 = vector.load %arg4[%c0_202, %273, %274, %c0_203, %c0_204] : memref<1x8x8x8x24xbf16, #tpu.memory_space<vmem>>, vector<1x1x6x8x24xbf16>
    %276 = vector.shape_cast %275 : vector<1x1x6x8x24xbf16> to vector<1x6x8x24xbf16>
    %277 = vector.shape_cast %276 : vector<1x6x8x24xbf16> to vector<48x24xbf16>
    %c0_205 = arith.constant 0 : index
    %c8_206 = arith.constant 8 : index
    %c0_207 = arith.constant 0 : index
    %c0_208 = arith.constant 0 : index
    %278 = vector.load %arg5[%c0_205, %c8_206, %c0_207, %c0_208] : memref<1x9x24x128xbf16, #tpu.memory_space<vmem>>, vector<1x1x24x128xbf16>
    %279 = vector.shape_cast %278 : vector<1x1x24x128xbf16> to vector<1x24x128xbf16>
    %280 = vector.shape_cast %279 : vector<1x24x128xbf16> to vector<24x128xbf16>
    %cst_209 = arith.constant dense<0.000000e+00> : vector<48x128xf32>
    %281 = tpu.matmul %277, %280, %cst_209 {dimension_numbers = #tpu.dot_dimension_numbers<[1], [0], [0], [1], [0, 0, 1, 1], [], []>} : vector<48x24xbf16>, vector<24x128xbf16>, vector<48x128xf32> -> vector<48x128xf32>
    %282 = arith.addf %269, %281 : vector<48x128xf32>
    %283 = vector.broadcast %3 : vector<1x128xf32> to vector<48x128xf32>
    %284 = arith.addf %282, %283 : vector<48x128xf32>
    %cst_210 = arith.constant 0.000000e+00 : f32
    %285 = vector.shape_cast %27 : vector<48x1xi1> to vector<48x1xi1>
    %286 = vector.broadcast %285 : vector<48x1xi1> to vector<48x128xi1>
    %287 = vector.broadcast %cst_210 : f32 to vector<48x128xf32>
    %288 = arith.select %286, %284, %287 : vector<48x128xi1>, vector<48x128xf32>
    %cst_211 = arith.constant dense<0.000000e+00> : vector<128xf32>
    %289 = vector.multi_reduction <add>, %288, %cst_211 [0] : vector<48x128xf32> to vector<128xf32>
    %290 = vector.shape_cast %289 : vector<128xf32> to vector<1x128xf32>
    %291 = arith.addf %156, %290 : vector<1x128xf32>
    %292 = arith.mulf %288, %288 : vector<48x128xf32>
    %cst_212 = arith.constant dense<0.000000e+00> : vector<128xf32>
    %293 = vector.multi_reduction <add>, %292, %cst_212 [0] : vector<48x128xf32> to vector<128xf32>
    %294 = vector.shape_cast %293 : vector<128xf32> to vector<1x128xf32>
    %295 = arith.addf %160, %294 : vector<1x128xf32>
    %296 = vector.shape_cast %284 : vector<48x128xf32> to vector<6x8x128xf32>
    %c0_213 = arith.constant 0 : index
    %c1_214 = arith.constant 1 : index
    %c0_215 = arith.constant 0 : index
    %c0_216 = arith.constant 0 : index
    %c0_217 = arith.constant 0 : index
    %297 = vector.load %arg7[%c0_213, %c1_214, %c0_215, %c0_216, %c0_217] : memref<1x6x6x8x128xf32, #tpu.memory_space<vmem>>, vector<1x1x6x8x128xf32>
    %298 = vector.shape_cast %297 : vector<1x1x6x8x128xf32> to vector<6x8x128xf32>
    %299 = vector.shape_cast %296 : vector<6x8x128xf32> to vector<1x1x6x8x128xf32>
    tpu.vector_store %arg7[%c0_213, %c1_214, %c0_215, %c0_216, %c0_217], %299 {strides = array<i32>} : memref<1x6x6x8x128xf32, #tpu.memory_space<vmem>>, vector<1x1x6x8x128xf32>,
    %cst_218 = arith.constant 0.000000e+00 : f32
    %300 = vector.broadcast %cst_218 : f32 to vector<48x128xf32>
    %c2_i32_219 = arith.constant 2 : i32
    %301 = arith.addi %0, %c2_i32_219 : i32
    %c0_i32_220 = arith.constant 0 : i32
    %302 = arith.addi %301, %c0_i32_220 : i32
    %c0_i32_221 = arith.constant 0 : i32
    %303 = arith.addi %1, %c0_i32_221 : i32
    %c0_222 = arith.constant 0 : index
    %304 = arith.index_cast %302 : i32 to index
    %305 = arith.index_cast %303 : i32 to index
    %c0_223 = arith.constant 0 : index
    %c0_224 = arith.constant 0 : index
    %306 = vector.load %arg4[%c0_222, %304, %305, %c0_223, %c0_224] : memref<1x8x8x8x24xbf16, #tpu.memory_space<vmem>>, vector<1x1x6x8x24xbf16>
    %307 = vector.shape_cast %306 : vector<1x1x6x8x24xbf16> to vector<1x6x8x24xbf16>
    %308 = vector.shape_cast %307 : vector<1x6x8x24xbf16> to vector<48x24xbf16>
    %c0_225 = arith.constant 0 : index
    %c0_226 = arith.constant 0 : index
    %c0_227 = arith.constant 0 : index
    %c0_228 = arith.constant 0 : index
    %309 = vector.load %arg5[%c0_225, %c0_226, %c0_227, %c0_228] : memref<1x9x24x128xbf16, #tpu.memory_space<vmem>>, vector<1x1x24x128xbf16>
    %310 = vector.shape_cast %309 : vector<1x1x24x128xbf16> to vector<1x24x128xbf16>
    %311 = vector.shape_cast %310 : vector<1x24x128xbf16> to vector<24x128xbf16>
    %cst_229 = arith.constant dense<0.000000e+00> : vector<48x128xf32>
    %312 = tpu.matmul %308, %311, %cst_229 {dimension_numbers = #tpu.dot_dimension_numbers<[1], [0], [0], [1], [0, 0, 1, 1], [], []>} : vector<48x24xbf16>, vector<24x128xbf16>, vector<48x128xf32> -> vector<48x128xf32>
    %313 = arith.addf %300, %312 : vector<48x128xf32>
    %c2_i32_230 = arith.constant 2 : i32
    %314 = arith.addi %0, %c2_i32_230 : i32
    %c0_i32_231 = arith.constant 0 : i32
    %315 = arith.addi %314, %c0_i32_231 : i32
    %c1_i32_232 = arith.constant 1 : i32
    %316 = arith.addi %1, %c1_i32_232 : i32
    %c0_233 = arith.constant 0 : index
    %317 = arith.index_cast %315 : i32 to index
    %318 = arith.index_cast %316 : i32 to index
    %c0_234 = arith.constant 0 : index
    %c0_235 = arith.constant 0 : index
    %319 = vector.load %arg4[%c0_233, %317, %318, %c0_234, %c0_235] : memref<1x8x8x8x24xbf16, #tpu.memory_space<vmem>>, vector<1x1x6x8x24xbf16>
    %320 = vector.shape_cast %319 : vector<1x1x6x8x24xbf16> to vector<1x6x8x24xbf16>
    %321 = vector.shape_cast %320 : vector<1x6x8x24xbf16> to vector<48x24xbf16>
    %c0_236 = arith.constant 0 : index
    %c1_237 = arith.constant 1 : index
    %c0_238 = arith.constant 0 : index
    %c0_239 = arith.constant 0 : index
    %322 = vector.load %arg5[%c0_236, %c1_237, %c0_238, %c0_239] : memref<1x9x24x128xbf16, #tpu.memory_space<vmem>>, vector<1x1x24x128xbf16>
    %323 = vector.shape_cast %322 : vector<1x1x24x128xbf16> to vector<1x24x128xbf16>
    %324 = vector.shape_cast %323 : vector<1x24x128xbf16> to vector<24x128xbf16>
    %cst_240 = arith.constant dense<0.000000e+00> : vector<48x128xf32>
    %325 = tpu.matmul %321, %324, %cst_240 {dimension_numbers = #tpu.dot_dimension_numbers<[1], [0], [0], [1], [0, 0, 1, 1], [], []>} : vector<48x24xbf16>, vector<24x128xbf16>, vector<48x128xf32> -> vector<48x128xf32>
    %326 = arith.addf %313, %325 : vector<48x128xf32>
    %c2_i32_241 = arith.constant 2 : i32
    %327 = arith.addi %0, %c2_i32_241 : i32
    %c0_i32_242 = arith.constant 0 : i32
    %328 = arith.addi %327, %c0_i32_242 : i32
    %c2_i32_243 = arith.constant 2 : i32
    %329 = arith.addi %1, %c2_i32_243 : i32
    %c0_244 = arith.constant 0 : index
    %330 = arith.index_cast %328 : i32 to index
    %331 = arith.index_cast %329 : i32 to index
    %c0_245 = arith.constant 0 : index
    %c0_246 = arith.constant 0 : index
    %332 = vector.load %arg4[%c0_244, %330, %331, %c0_245, %c0_246] : memref<1x8x8x8x24xbf16, #tpu.memory_space<vmem>>, vector<1x1x6x8x24xbf16>
    %333 = vector.shape_cast %332 : vector<1x1x6x8x24xbf16> to vector<1x6x8x24xbf16>
    %334 = vector.shape_cast %333 : vector<1x6x8x24xbf16> to vector<48x24xbf16>
    %c0_247 = arith.constant 0 : index
    %c2_248 = arith.constant 2 : index
    %c0_249 = arith.constant 0 : index
    %c0_250 = arith.constant 0 : index
    %335 = vector.load %arg5[%c0_247, %c2_248, %c0_249, %c0_250] : memref<1x9x24x128xbf16, #tpu.memory_space<vmem>>, vector<1x1x24x128xbf16>
    %336 = vector.shape_cast %335 : vector<1x1x24x128xbf16> to vector<1x24x128xbf16>
    %337 = vector.shape_cast %336 : vector<1x24x128xbf16> to vector<24x128xbf16>
    %cst_251 = arith.constant dense<0.000000e+00> : vector<48x128xf32>
    %338 = tpu.matmul %334, %337, %cst_251 {dimension_numbers = #tpu.dot_dimension_numbers<[1], [0], [0], [1], [0, 0, 1, 1], [], []>} : vector<48x24xbf16>, vector<24x128xbf16>, vector<48x128xf32> -> vector<48x128xf32>
    %339 = arith.addf %326, %338 : vector<48x128xf32>
    %c2_i32_252 = arith.constant 2 : i32
    %340 = arith.addi %0, %c2_i32_252 : i32
    %c1_i32_253 = arith.constant 1 : i32
    %341 = arith.addi %340, %c1_i32_253 : i32
    %c0_i32_254 = arith.constant 0 : i32
    %342 = arith.addi %1, %c0_i32_254 : i32
    %c0_255 = arith.constant 0 : index
    %343 = arith.index_cast %341 : i32 to index
    %344 = arith.index_cast %342 : i32 to index
    %c0_256 = arith.constant 0 : index
    %c0_257 = arith.constant 0 : index
    %345 = vector.load %arg4[%c0_255, %343, %344, %c0_256, %c0_257] : memref<1x8x8x8x24xbf16, #tpu.memory_space<vmem>>, vector<1x1x6x8x24xbf16>
    %346 = vector.shape_cast %345 : vector<1x1x6x8x24xbf16> to vector<1x6x8x24xbf16>
    %347 = vector.shape_cast %346 : vector<1x6x8x24xbf16> to vector<48x24xbf16>
    %c0_258 = arith.constant 0 : index
    %c3_259 = arith.constant 3 : index
    %c0_260 = arith.constant 0 : index
    %c0_261 = arith.constant 0 : index
    %348 = vector.load %arg5[%c0_258, %c3_259, %c0_260, %c0_261] : memref<1x9x24x128xbf16, #tpu.memory_space<vmem>>, vector<1x1x24x128xbf16>
    %349 = vector.shape_cast %348 : vector<1x1x24x128xbf16> to vector<1x24x128xbf16>
    %350 = vector.shape_cast %349 : vector<1x24x128xbf16> to vector<24x128xbf16>
    %cst_262 = arith.constant dense<0.000000e+00> : vector<48x128xf32>
    %351 = tpu.matmul %347, %350, %cst_262 {dimension_numbers = #tpu.dot_dimension_numbers<[1], [0], [0], [1], [0, 0, 1, 1], [], []>} : vector<48x24xbf16>, vector<24x128xbf16>, vector<48x128xf32> -> vector<48x128xf32>
    %352 = arith.addf %339, %351 : vector<48x128xf32>
    %c2_i32_263 = arith.constant 2 : i32
    %353 = arith.addi %0, %c2_i32_263 : i32
    %c1_i32_264 = arith.constant 1 : i32
    %354 = arith.addi %353, %c1_i32_264 : i32
    %c1_i32_265 = arith.constant 1 : i32
    %355 = arith.addi %1, %c1_i32_265 : i32
    %c0_266 = arith.constant 0 : index
    %356 = arith.index_cast %354 : i32 to index
    %357 = arith.index_cast %355 : i32 to index
    %c0_267 = arith.constant 0 : index
    %c0_268 = arith.constant 0 : index
    %358 = vector.load %arg4[%c0_266, %356, %357, %c0_267, %c0_268] : memref<1x8x8x8x24xbf16, #tpu.memory_space<vmem>>, vector<1x1x6x8x24xbf16>
    %359 = vector.shape_cast %358 : vector<1x1x6x8x24xbf16> to vector<1x6x8x24xbf16>
    %360 = vector.shape_cast %359 : vector<1x6x8x24xbf16> to vector<48x24xbf16>
    %c0_269 = arith.constant 0 : index
    %c4_270 = arith.constant 4 : index
    %c0_271 = arith.constant 0 : index
    %c0_272 = arith.constant 0 : index
    %361 = vector.load %arg5[%c0_269, %c4_270, %c0_271, %c0_272] : memref<1x9x24x128xbf16, #tpu.memory_space<vmem>>, vector<1x1x24x128xbf16>
    %362 = vector.shape_cast %361 : vector<1x1x24x128xbf16> to vector<1x24x128xbf16>
    %363 = vector.shape_cast %362 : vector<1x24x128xbf16> to vector<24x128xbf16>
    %cst_273 = arith.constant dense<0.000000e+00> : vector<48x128xf32>
    %364 = tpu.matmul %360, %363, %cst_273 {dimension_numbers = #tpu.dot_dimension_numbers<[1], [0], [0], [1], [0, 0, 1, 1], [], []>} : vector<48x24xbf16>, vector<24x128xbf16>, vector<48x128xf32> -> vector<48x128xf32>
    %365 = arith.addf %352, %364 : vector<48x128xf32>
    %c2_i32_274 = arith.constant 2 : i32
    %366 = arith.addi %0, %c2_i32_274 : i32
    %c1_i32_275 = arith.constant 1 : i32
    %367 = arith.addi %366, %c1_i32_275 : i32
    %c2_i32_276 = arith.constant 2 : i32
    %368 = arith.addi %1, %c2_i32_276 : i32
    %c0_277 = arith.constant 0 : index
    %369 = arith.index_cast %367 : i32 to index
    %370 = arith.index_cast %368 : i32 to index
    %c0_278 = arith.constant 0 : index
    %c0_279 = arith.constant 0 : index
    %371 = vector.load %arg4[%c0_277, %369, %370, %c0_278, %c0_279] : memref<1x8x8x8x24xbf16, #tpu.memory_space<vmem>>, vector<1x1x6x8x24xbf16>
    %372 = vector.shape_cast %371 : vector<1x1x6x8x24xbf16> to vector<1x6x8x24xbf16>
    %373 = vector.shape_cast %372 : vector<1x6x8x24xbf16> to vector<48x24xbf16>
    %c0_280 = arith.constant 0 : index
    %c5_281 = arith.constant 5 : index
    %c0_282 = arith.constant 0 : index
    %c0_283 = arith.constant 0 : index
    %374 = vector.load %arg5[%c0_280, %c5_281, %c0_282, %c0_283] : memref<1x9x24x128xbf16, #tpu.memory_space<vmem>>, vector<1x1x24x128xbf16>
    %375 = vector.shape_cast %374 : vector<1x1x24x128xbf16> to vector<1x24x128xbf16>
    %376 = vector.shape_cast %375 : vector<1x24x128xbf16> to vector<24x128xbf16>
    %cst_284 = arith.constant dense<0.000000e+00> : vector<48x128xf32>
    %377 = tpu.matmul %373, %376, %cst_284 {dimension_numbers = #tpu.dot_dimension_numbers<[1], [0], [0], [1], [0, 0, 1, 1], [], []>} : vector<48x24xbf16>, vector<24x128xbf16>, vector<48x128xf32> -> vector<48x128xf32>
    %378 = arith.addf %365, %377 : vector<48x128xf32>
    %c2_i32_285 = arith.constant 2 : i32
    %379 = arith.addi %0, %c2_i32_285 : i32
    %c2_i32_286 = arith.constant 2 : i32
    %380 = arith.addi %379, %c2_i32_286 : i32
    %c0_i32_287 = arith.constant 0 : i32
    %381 = arith.addi %1, %c0_i32_287 : i32
    %c0_288 = arith.constant 0 : index
    %382 = arith.index_cast %380 : i32 to index
    %383 = arith.index_cast %381 : i32 to index
    %c0_289 = arith.constant 0 : index
    %c0_290 = arith.constant 0 : index
    %384 = vector.load %arg4[%c0_288, %382, %383, %c0_289, %c0_290] : memref<1x8x8x8x24xbf16, #tpu.memory_space<vmem>>, vector<1x1x6x8x24xbf16>
    %385 = vector.shape_cast %384 : vector<1x1x6x8x24xbf16> to vector<1x6x8x24xbf16>
    %386 = vector.shape_cast %385 : vector<1x6x8x24xbf16> to vector<48x24xbf16>
    %c0_291 = arith.constant 0 : index
    %c6_292 = arith.constant 6 : index
    %c0_293 = arith.constant 0 : index
    %c0_294 = arith.constant 0 : index
    %387 = vector.load %arg5[%c0_291, %c6_292, %c0_293, %c0_294] : memref<1x9x24x128xbf16, #tpu.memory_space<vmem>>, vector<1x1x24x128xbf16>
    %388 = vector.shape_cast %387 : vector<1x1x24x128xbf16> to vector<1x24x128xbf16>
    %389 = vector.shape_cast %388 : vector<1x24x128xbf16> to vector<24x128xbf16>
    %cst_295 = arith.constant dense<0.000000e+00> : vector<48x128xf32>
    %390 = tpu.matmul %386, %389, %cst_295 {dimension_numbers = #tpu.dot_dimension_numbers<[1], [0], [0], [1], [0, 0, 1, 1], [], []>} : vector<48x24xbf16>, vector<24x128xbf16>, vector<48x128xf32> -> vector<48x128xf32>
    %391 = arith.addf %378, %390 : vector<48x128xf32>
    %c2_i32_296 = arith.constant 2 : i32
    %392 = arith.addi %0, %c2_i32_296 : i32
    %c2_i32_297 = arith.constant 2 : i32
    %393 = arith.addi %392, %c2_i32_297 : i32
    %c1_i32_298 = arith.constant 1 : i32
    %394 = arith.addi %1, %c1_i32_298 : i32
    %c0_299 = arith.constant 0 : index
    %395 = arith.index_cast %393 : i32 to index
    %396 = arith.index_cast %394 : i32 to index
    %c0_300 = arith.constant 0 : index
    %c0_301 = arith.constant 0 : index
    %397 = vector.load %arg4[%c0_299, %395, %396, %c0_300, %c0_301] : memref<1x8x8x8x24xbf16, #tpu.memory_space<vmem>>, vector<1x1x6x8x24xbf16>
    %398 = vector.shape_cast %397 : vector<1x1x6x8x24xbf16> to vector<1x6x8x24xbf16>
    %399 = vector.shape_cast %398 : vector<1x6x8x24xbf16> to vector<48x24xbf16>
    %c0_302 = arith.constant 0 : index
    %c7_303 = arith.constant 7 : index
    %c0_304 = arith.constant 0 : index
    %c0_305 = arith.constant 0 : index
    %400 = vector.load %arg5[%c0_302, %c7_303, %c0_304, %c0_305] : memref<1x9x24x128xbf16, #tpu.memory_space<vmem>>, vector<1x1x24x128xbf16>
    %401 = vector.shape_cast %400 : vector<1x1x24x128xbf16> to vector<1x24x128xbf16>
    %402 = vector.shape_cast %401 : vector<1x24x128xbf16> to vector<24x128xbf16>
    %cst_306 = arith.constant dense<0.000000e+00> : vector<48x128xf32>
    %403 = tpu.matmul %399, %402, %cst_306 {dimension_numbers = #tpu.dot_dimension_numbers<[1], [0], [0], [1], [0, 0, 1, 1], [], []>} : vector<48x24xbf16>, vector<24x128xbf16>, vector<48x128xf32> -> vector<48x128xf32>
    %404 = arith.addf %391, %403 : vector<48x128xf32>
    %c2_i32_307 = arith.constant 2 : i32
    %405 = arith.addi %0, %c2_i32_307 : i32
    %c2_i32_308 = arith.constant 2 : i32
    %406 = arith.addi %405, %c2_i32_308 : i32
    %c2_i32_309 = arith.constant 2 : i32
    %407 = arith.addi %1, %c2_i32_309 : i32
    %c0_310 = arith.constant 0 : index
    %408 = arith.index_cast %406 : i32 to index
    %409 = arith.index_cast %407 : i32 to index
    %c0_311 = arith.constant 0 : index
    %c0_312 = arith.constant 0 : index
    %410 = vector.load %arg4[%c0_310, %408, %409, %c0_311, %c0_312] : memref<1x8x8x8x24xbf16, #tpu.memory_space<vmem>>, vector<1x1x6x8x24xbf16>
    %411 = vector.shape_cast %410 : vector<1x1x6x8x24xbf16> to vector<1x6x8x24xbf16>
    %412 = vector.shape_cast %411 : vector<1x6x8x24xbf16> to vector<48x24xbf16>
    %c0_313 = arith.constant 0 : index
    %c8_314 = arith.constant 8 : index
    %c0_315 = arith.constant 0 : index
    %c0_316 = arith.constant 0 : index
    %413 = vector.load %arg5[%c0_313, %c8_314, %c0_315, %c0_316] : memref<1x9x24x128xbf16, #tpu.memory_space<vmem>>, vector<1x1x24x128xbf16>
    %414 = vector.shape_cast %413 : vector<1x1x24x128xbf16> to vector<1x24x128xbf16>
    %415 = vector.shape_cast %414 : vector<1x24x128xbf16> to vector<24x128xbf16>
    %cst_317 = arith.constant dense<0.000000e+00> : vector<48x128xf32>
    %416 = tpu.matmul %412, %415, %cst_317 {dimension_numbers = #tpu.dot_dimension_numbers<[1], [0], [0], [1], [0, 0, 1, 1], [], []>} : vector<48x24xbf16>, vector<24x128xbf16>, vector<48x128xf32> -> vector<48x128xf32>
    %417 = arith.addf %404, %416 : vector<48x128xf32>
    %418 = vector.broadcast %3 : vector<1x128xf32> to vector<48x128xf32>
    %419 = arith.addf %417, %418 : vector<48x128xf32>
    %cst_318 = arith.constant 0.000000e+00 : f32
    %420 = vector.shape_cast %27 : vector<48x1xi1> to vector<48x1xi1>
    %421 = vector.broadcast %420 : vector<48x1xi1> to vector<48x128xi1>
    %422 = vector.broadcast %cst_318 : f32 to vector<48x128xf32>
    %423 = arith.select %421, %419, %422 : vector<48x128xi1>, vector<48x128xf32>
    %cst_319 = arith.constant dense<0.000000e+00> : vector<128xf32>
    %424 = vector.multi_reduction <add>, %423, %cst_319 [0] : vector<48x128xf32> to vector<128xf32>
    %425 = vector.shape_cast %424 : vector<128xf32> to vector<1x128xf32>
    %426 = arith.addf %291, %425 : vector<1x128xf32>
    %427 = arith.mulf %423, %423 : vector<48x128xf32>
    %cst_320 = arith.constant dense<0.000000e+00> : vector<128xf32>
    %428 = vector.multi_reduction <add>, %427, %cst_320 [0] : vector<48x128xf32> to vector<128xf32>
    %429 = vector.shape_cast %428 : vector<128xf32> to vector<1x128xf32>
    %430 = arith.addf %295, %429 : vector<1x128xf32>
    %431 = vector.shape_cast %419 : vector<48x128xf32> to vector<6x8x128xf32>
    %c0_321 = arith.constant 0 : index
    %c2_322 = arith.constant 2 : index
    %c0_323 = arith.constant 0 : index
    %c0_324 = arith.constant 0 : index
    %c0_325 = arith.constant 0 : index
    %432 = vector.load %arg7[%c0_321, %c2_322, %c0_323, %c0_324, %c0_325] : memref<1x6x6x8x128xf32, #tpu.memory_space<vmem>>, vector<1x1x6x8x128xf32>
    %433 = vector.shape_cast %432 : vector<1x1x6x8x128xf32> to vector<6x8x128xf32>
    %434 = vector.shape_cast %431 : vector<6x8x128xf32> to vector<1x1x6x8x128xf32>
    tpu.vector_store %arg7[%c0_321, %c2_322, %c0_323, %c0_324, %c0_325], %434 {strides = array<i32>} : memref<1x6x6x8x128xf32, #tpu.memory_space<vmem>>, vector<1x1x6x8x128xf32>,
    %cst_326 = arith.constant 0.000000e+00 : f32
    %435 = vector.broadcast %cst_326 : f32 to vector<48x128xf32>
    %c3_i32 = arith.constant 3 : i32
    %436 = arith.addi %0, %c3_i32 : i32
    %c0_i32_327 = arith.constant 0 : i32
    %437 = arith.addi %436, %c0_i32_327 : i32
    %c0_i32_328 = arith.constant 0 : i32
    %438 = arith.addi %1, %c0_i32_328 : i32
    %c0_329 = arith.constant 0 : index
    %439 = arith.index_cast %437 : i32 to index
    %440 = arith.index_cast %438 : i32 to index
    %c0_330 = arith.constant 0 : index
    %c0_331 = arith.constant 0 : index
    %441 = vector.load %arg4[%c0_329, %439, %440, %c0_330, %c0_331] : memref<1x8x8x8x24xbf16, #tpu.memory_space<vmem>>, vector<1x1x6x8x24xbf16>
    %442 = vector.shape_cast %441 : vector<1x1x6x8x24xbf16> to vector<1x6x8x24xbf16>
    %443 = vector.shape_cast %442 : vector<1x6x8x24xbf16> to vector<48x24xbf16>
    %c0_332 = arith.constant 0 : index
    %c0_333 = arith.constant 0 : index
    %c0_334 = arith.constant 0 : index
    %c0_335 = arith.constant 0 : index
    %444 = vector.load %arg5[%c0_332, %c0_333, %c0_334, %c0_335] : memref<1x9x24x128xbf16, #tpu.memory_space<vmem>>, vector<1x1x24x128xbf16>
    %445 = vector.shape_cast %444 : vector<1x1x24x128xbf16> to vector<1x24x128xbf16>
    %446 = vector.shape_cast %445 : vector<1x24x128xbf16> to vector<24x128xbf16>
    %cst_336 = arith.constant dense<0.000000e+00> : vector<48x128xf32>
    %447 = tpu.matmul %443, %446, %cst_336 {dimension_numbers = #tpu.dot_dimension_numbers<[1], [0], [0], [1], [0, 0, 1, 1], [], []>} : vector<48x24xbf16>, vector<24x128xbf16>, vector<48x128xf32> -> vector<48x128xf32>
    %448 = arith.addf %435, %447 : vector<48x128xf32>
    %c3_i32_337 = arith.constant 3 : i32
    %449 = arith.addi %0, %c3_i32_337 : i32
    %c0_i32_338 = arith.constant 0 : i32
    %450 = arith.addi %449, %c0_i32_338 : i32
    %c1_i32_339 = arith.constant 1 : i32
    %451 = arith.addi %1, %c1_i32_339 : i32
    %c0_340 = arith.constant 0 : index
    %452 = arith.index_cast %450 : i32 to index
    %453 = arith.index_cast %451 : i32 to index
    %c0_341 = arith.constant 0 : index
    %c0_342 = arith.constant 0 : index
    %454 = vector.load %arg4[%c0_340, %452, %453, %c0_341, %c0_342] : memref<1x8x8x8x24xbf16, #tpu.memory_space<vmem>>, vector<1x1x6x8x24xbf16>
    %455 = vector.shape_cast %454 : vector<1x1x6x8x24xbf16> to vector<1x6x8x24xbf16>
    %456 = vector.shape_cast %455 : vector<1x6x8x24xbf16> to vector<48x24xbf16>
    %c0_343 = arith.constant 0 : index
    %c1_344 = arith.constant 1 : index
    %c0_345 = arith.constant 0 : index
    %c0_346 = arith.constant 0 : index
    %457 = vector.load %arg5[%c0_343, %c1_344, %c0_345, %c0_346] : memref<1x9x24x128xbf16, #tpu.memory_space<vmem>>, vector<1x1x24x128xbf16>
    %458 = vector.shape_cast %457 : vector<1x1x24x128xbf16> to vector<1x24x128xbf16>
    %459 = vector.shape_cast %458 : vector<1x24x128xbf16> to vector<24x128xbf16>
    %cst_347 = arith.constant dense<0.000000e+00> : vector<48x128xf32>
    %460 = tpu.matmul %456, %459, %cst_347 {dimension_numbers = #tpu.dot_dimension_numbers<[1], [0], [0], [1], [0, 0, 1, 1], [], []>} : vector<48x24xbf16>, vector<24x128xbf16>, vector<48x128xf32> -> vector<48x128xf32>
    %461 = arith.addf %448, %460 : vector<48x128xf32>
    %c3_i32_348 = arith.constant 3 : i32
    %462 = arith.addi %0, %c3_i32_348 : i32
    %c0_i32_349 = arith.constant 0 : i32
    %463 = arith.addi %462, %c0_i32_349 : i32
    %c2_i32_350 = arith.constant 2 : i32
    %464 = arith.addi %1, %c2_i32_350 : i32
    %c0_351 = arith.constant 0 : index
    %465 = arith.index_cast %463 : i32 to index
    %466 = arith.index_cast %464 : i32 to index
    %c0_352 = arith.constant 0 : index
    %c0_353 = arith.constant 0 : index
    %467 = vector.load %arg4[%c0_351, %465, %466, %c0_352, %c0_353] : memref<1x8x8x8x24xbf16, #tpu.memory_space<vmem>>, vector<1x1x6x8x24xbf16>
    %468 = vector.shape_cast %467 : vector<1x1x6x8x24xbf16> to vector<1x6x8x24xbf16>
    %469 = vector.shape_cast %468 : vector<1x6x8x24xbf16> to vector<48x24xbf16>
    %c0_354 = arith.constant 0 : index
    %c2_355 = arith.constant 2 : index
    %c0_356 = arith.constant 0 : index
    %c0_357 = arith.constant 0 : index
    %470 = vector.load %arg5[%c0_354, %c2_355, %c0_356, %c0_357] : memref<1x9x24x128xbf16, #tpu.memory_space<vmem>>, vector<1x1x24x128xbf16>
    %471 = vector.shape_cast %470 : vector<1x1x24x128xbf16> to vector<1x24x128xbf16>
    %472 = vector.shape_cast %471 : vector<1x24x128xbf16> to vector<24x128xbf16>
    %cst_358 = arith.constant dense<0.000000e+00> : vector<48x128xf32>
    %473 = tpu.matmul %469, %472, %cst_358 {dimension_numbers = #tpu.dot_dimension_numbers<[1], [0], [0], [1], [0, 0, 1, 1], [], []>} : vector<48x24xbf16>, vector<24x128xbf16>, vector<48x128xf32> -> vector<48x128xf32>
    %474 = arith.addf %461, %473 : vector<48x128xf32>
    %c3_i32_359 = arith.constant 3 : i32
    %475 = arith.addi %0, %c3_i32_359 : i32
    %c1_i32_360 = arith.constant 1 : i32
    %476 = arith.addi %475, %c1_i32_360 : i32
    %c0_i32_361 = arith.constant 0 : i32
    %477 = arith.addi %1, %c0_i32_361 : i32
    %c0_362 = arith.constant 0 : index
    %478 = arith.index_cast %476 : i32 to index
    %479 = arith.index_cast %477 : i32 to index
    %c0_363 = arith.constant 0 : index
    %c0_364 = arith.constant 0 : index
    %480 = vector.load %arg4[%c0_362, %478, %479, %c0_363, %c0_364] : memref<1x8x8x8x24xbf16, #tpu.memory_space<vmem>>, vector<1x1x6x8x24xbf16>
    %481 = vector.shape_cast %480 : vector<1x1x6x8x24xbf16> to vector<1x6x8x24xbf16>
    %482 = vector.shape_cast %481 : vector<1x6x8x24xbf16> to vector<48x24xbf16>
    %c0_365 = arith.constant 0 : index
    %c3_366 = arith.constant 3 : index
    %c0_367 = arith.constant 0 : index
    %c0_368 = arith.constant 0 : index
    %483 = vector.load %arg5[%c0_365, %c3_366, %c0_367, %c0_368] : memref<1x9x24x128xbf16, #tpu.memory_space<vmem>>, vector<1x1x24x128xbf16>
    %484 = vector.shape_cast %483 : vector<1x1x24x128xbf16> to vector<1x24x128xbf16>
    %485 = vector.shape_cast %484 : vector<1x24x128xbf16> to vector<24x128xbf16>
    %cst_369 = arith.constant dense<0.000000e+00> : vector<48x128xf32>
    %486 = tpu.matmul %482, %485, %cst_369 {dimension_numbers = #tpu.dot_dimension_numbers<[1], [0], [0], [1], [0, 0, 1, 1], [], []>} : vector<48x24xbf16>, vector<24x128xbf16>, vector<48x128xf32> -> vector<48x128xf32>
    %487 = arith.addf %474, %486 : vector<48x128xf32>
    %c3_i32_370 = arith.constant 3 : i32
    %488 = arith.addi %0, %c3_i32_370 : i32
    %c1_i32_371 = arith.constant 1 : i32
    %489 = arith.addi %488, %c1_i32_371 : i32
    %c1_i32_372 = arith.constant 1 : i32
    %490 = arith.addi %1, %c1_i32_372 : i32
    %c0_373 = arith.constant 0 : index
    %491 = arith.index_cast %489 : i32 to index
    %492 = arith.index_cast %490 : i32 to index
    %c0_374 = arith.constant 0 : index
    %c0_375 = arith.constant 0 : index
    %493 = vector.load %arg4[%c0_373, %491, %492, %c0_374, %c0_375] : memref<1x8x8x8x24xbf16, #tpu.memory_space<vmem>>, vector<1x1x6x8x24xbf16>
    %494 = vector.shape_cast %493 : vector<1x1x6x8x24xbf16> to vector<1x6x8x24xbf16>
    %495 = vector.shape_cast %494 : vector<1x6x8x24xbf16> to vector<48x24xbf16>
    %c0_376 = arith.constant 0 : index
    %c4_377 = arith.constant 4 : index
    %c0_378 = arith.constant 0 : index
    %c0_379 = arith.constant 0 : index
    %496 = vector.load %arg5[%c0_376, %c4_377, %c0_378, %c0_379] : memref<1x9x24x128xbf16, #tpu.memory_space<vmem>>, vector<1x1x24x128xbf16>
    %497 = vector.shape_cast %496 : vector<1x1x24x128xbf16> to vector<1x24x128xbf16>
    %498 = vector.shape_cast %497 : vector<1x24x128xbf16> to vector<24x128xbf16>
    %cst_380 = arith.constant dense<0.000000e+00> : vector<48x128xf32>
    %499 = tpu.matmul %495, %498, %cst_380 {dimension_numbers = #tpu.dot_dimension_numbers<[1], [0], [0], [1], [0, 0, 1, 1], [], []>} : vector<48x24xbf16>, vector<24x128xbf16>, vector<48x128xf32> -> vector<48x128xf32>
    %500 = arith.addf %487, %499 : vector<48x128xf32>
    %c3_i32_381 = arith.constant 3 : i32
    %501 = arith.addi %0, %c3_i32_381 : i32
    %c1_i32_382 = arith.constant 1 : i32
    %502 = arith.addi %501, %c1_i32_382 : i32
    %c2_i32_383 = arith.constant 2 : i32
    %503 = arith.addi %1, %c2_i32_383 : i32
    %c0_384 = arith.constant 0 : index
    %504 = arith.index_cast %502 : i32 to index
    %505 = arith.index_cast %503 : i32 to index
    %c0_385 = arith.constant 0 : index
    %c0_386 = arith.constant 0 : index
    %506 = vector.load %arg4[%c0_384, %504, %505, %c0_385, %c0_386] : memref<1x8x8x8x24xbf16, #tpu.memory_space<vmem>>, vector<1x1x6x8x24xbf16>
    %507 = vector.shape_cast %506 : vector<1x1x6x8x24xbf16> to vector<1x6x8x24xbf16>
    %508 = vector.shape_cast %507 : vector<1x6x8x24xbf16> to vector<48x24xbf16>
    %c0_387 = arith.constant 0 : index
    %c5_388 = arith.constant 5 : index
    %c0_389 = arith.constant 0 : index
    %c0_390 = arith.constant 0 : index
    %509 = vector.load %arg5[%c0_387, %c5_388, %c0_389, %c0_390] : memref<1x9x24x128xbf16, #tpu.memory_space<vmem>>, vector<1x1x24x128xbf16>
    %510 = vector.shape_cast %509 : vector<1x1x24x128xbf16> to vector<1x24x128xbf16>
    %511 = vector.shape_cast %510 : vector<1x24x128xbf16> to vector<24x128xbf16>
    %cst_391 = arith.constant dense<0.000000e+00> : vector<48x128xf32>
    %512 = tpu.matmul %508, %511, %cst_391 {dimension_numbers = #tpu.dot_dimension_numbers<[1], [0], [0], [1], [0, 0, 1, 1], [], []>} : vector<48x24xbf16>, vector<24x128xbf16>, vector<48x128xf32> -> vector<48x128xf32>
    %513 = arith.addf %500, %512 : vector<48x128xf32>
    %c3_i32_392 = arith.constant 3 : i32
    %514 = arith.addi %0, %c3_i32_392 : i32
    %c2_i32_393 = arith.constant 2 : i32
    %515 = arith.addi %514, %c2_i32_393 : i32
    %c0_i32_394 = arith.constant 0 : i32
    %516 = arith.addi %1, %c0_i32_394 : i32
    %c0_395 = arith.constant 0 : index
    %517 = arith.index_cast %515 : i32 to index
    %518 = arith.index_cast %516 : i32 to index
    %c0_396 = arith.constant 0 : index
    %c0_397 = arith.constant 0 : index
    %519 = vector.load %arg4[%c0_395, %517, %518, %c0_396, %c0_397] : memref<1x8x8x8x24xbf16, #tpu.memory_space<vmem>>, vector<1x1x6x8x24xbf16>
    %520 = vector.shape_cast %519 : vector<1x1x6x8x24xbf16> to vector<1x6x8x24xbf16>
    %521 = vector.shape_cast %520 : vector<1x6x8x24xbf16> to vector<48x24xbf16>
    %c0_398 = arith.constant 0 : index
    %c6_399 = arith.constant 6 : index
    %c0_400 = arith.constant 0 : index
    %c0_401 = arith.constant 0 : index
    %522 = vector.load %arg5[%c0_398, %c6_399, %c0_400, %c0_401] : memref<1x9x24x128xbf16, #tpu.memory_space<vmem>>, vector<1x1x24x128xbf16>
    %523 = vector.shape_cast %522 : vector<1x1x24x128xbf16> to vector<1x24x128xbf16>
    %524 = vector.shape_cast %523 : vector<1x24x128xbf16> to vector<24x128xbf16>
    %cst_402 = arith.constant dense<0.000000e+00> : vector<48x128xf32>
    %525 = tpu.matmul %521, %524, %cst_402 {dimension_numbers = #tpu.dot_dimension_numbers<[1], [0], [0], [1], [0, 0, 1, 1], [], []>} : vector<48x24xbf16>, vector<24x128xbf16>, vector<48x128xf32> -> vector<48x128xf32>
    %526 = arith.addf %513, %525 : vector<48x128xf32>
    %c3_i32_403 = arith.constant 3 : i32
    %527 = arith.addi %0, %c3_i32_403 : i32
    %c2_i32_404 = arith.constant 2 : i32
    %528 = arith.addi %527, %c2_i32_404 : i32
    %c1_i32_405 = arith.constant 1 : i32
    %529 = arith.addi %1, %c1_i32_405 : i32
    %c0_406 = arith.constant 0 : index
    %530 = arith.index_cast %528 : i32 to index
    %531 = arith.index_cast %529 : i32 to index
    %c0_407 = arith.constant 0 : index
    %c0_408 = arith.constant 0 : index
    %532 = vector.load %arg4[%c0_406, %530, %531, %c0_407, %c0_408] : memref<1x8x8x8x24xbf16, #tpu.memory_space<vmem>>, vector<1x1x6x8x24xbf16>
    %533 = vector.shape_cast %532 : vector<1x1x6x8x24xbf16> to vector<1x6x8x24xbf16>
    %534 = vector.shape_cast %533 : vector<1x6x8x24xbf16> to vector<48x24xbf16>
    %c0_409 = arith.constant 0 : index
    %c7_410 = arith.constant 7 : index
    %c0_411 = arith.constant 0 : index
    %c0_412 = arith.constant 0 : index
    %535 = vector.load %arg5[%c0_409, %c7_410, %c0_411, %c0_412] : memref<1x9x24x128xbf16, #tpu.memory_space<vmem>>, vector<1x1x24x128xbf16>
    %536 = vector.shape_cast %535 : vector<1x1x24x128xbf16> to vector<1x24x128xbf16>
    %537 = vector.shape_cast %536 : vector<1x24x128xbf16> to vector<24x128xbf16>
    %cst_413 = arith.constant dense<0.000000e+00> : vector<48x128xf32>
    %538 = tpu.matmul %534, %537, %cst_413 {dimension_numbers = #tpu.dot_dimension_numbers<[1], [0], [0], [1], [0, 0, 1, 1], [], []>} : vector<48x24xbf16>, vector<24x128xbf16>, vector<48x128xf32> -> vector<48x128xf32>
    %539 = arith.addf %526, %538 : vector<48x128xf32>
    %c3_i32_414 = arith.constant 3 : i32
    %540 = arith.addi %0, %c3_i32_414 : i32
    %c2_i32_415 = arith.constant 2 : i32
    %541 = arith.addi %540, %c2_i32_415 : i32
    %c2_i32_416 = arith.constant 2 : i32
    %542 = arith.addi %1, %c2_i32_416 : i32
    %c0_417 = arith.constant 0 : index
    %543 = arith.index_cast %541 : i32 to index
    %544 = arith.index_cast %542 : i32 to index
    %c0_418 = arith.constant 0 : index
    %c0_419 = arith.constant 0 : index
    %545 = vector.load %arg4[%c0_417, %543, %544, %c0_418, %c0_419] : memref<1x8x8x8x24xbf16, #tpu.memory_space<vmem>>, vector<1x1x6x8x24xbf16>
    %546 = vector.shape_cast %545 : vector<1x1x6x8x24xbf16> to vector<1x6x8x24xbf16>
    %547 = vector.shape_cast %546 : vector<1x6x8x24xbf16> to vector<48x24xbf16>
    %c0_420 = arith.constant 0 : index
    %c8_421 = arith.constant 8 : index
    %c0_422 = arith.constant 0 : index
    %c0_423 = arith.constant 0 : index
    %548 = vector.load %arg5[%c0_420, %c8_421, %c0_422, %c0_423] : memref<1x9x24x128xbf16, #tpu.memory_space<vmem>>, vector<1x1x24x128xbf16>
    %549 = vector.shape_cast %548 : vector<1x1x24x128xbf16> to vector<1x24x128xbf16>
    %550 = vector.shape_cast %549 : vector<1x24x128xbf16> to vector<24x128xbf16>
    %cst_424 = arith.constant dense<0.000000e+00> : vector<48x128xf32>
    %551 = tpu.matmul %547, %550, %cst_424 {dimension_numbers = #tpu.dot_dimension_numbers<[1], [0], [0], [1], [0, 0, 1, 1], [], []>} : vector<48x24xbf16>, vector<24x128xbf16>, vector<48x128xf32> -> vector<48x128xf32>
    %552 = arith.addf %539, %551 : vector<48x128xf32>
    %553 = vector.broadcast %3 : vector<1x128xf32> to vector<48x128xf32>
    %554 = arith.addf %552, %553 : vector<48x128xf32>
    %cst_425 = arith.constant 0.000000e+00 : f32
    %555 = vector.shape_cast %27 : vector<48x1xi1> to vector<48x1xi1>
    %556 = vector.broadcast %555 : vector<48x1xi1> to vector<48x128xi1>
    %557 = vector.broadcast %cst_425 : f32 to vector<48x128xf32>
    %558 = arith.select %556, %554, %557 : vector<48x128xi1>, vector<48x128xf32>
    %cst_426 = arith.constant dense<0.000000e+00> : vector<128xf32>
    %559 = vector.multi_reduction <add>, %558, %cst_426 [0] : vector<48x128xf32> to vector<128xf32>
    %560 = vector.shape_cast %559 : vector<128xf32> to vector<1x128xf32>
    %561 = arith.addf %426, %560 : vector<1x128xf32>
    %562 = arith.mulf %558, %558 : vector<48x128xf32>
    %cst_427 = arith.constant dense<0.000000e+00> : vector<128xf32>
    %563 = vector.multi_reduction <add>, %562, %cst_427 [0] : vector<48x128xf32> to vector<128xf32>
    %564 = vector.shape_cast %563 : vector<128xf32> to vector<1x128xf32>
    %565 = arith.addf %430, %564 : vector<1x128xf32>
    %566 = vector.shape_cast %554 : vector<48x128xf32> to vector<6x8x128xf32>
    %c0_428 = arith.constant 0 : index
    %c3_429 = arith.constant 3 : index
    %c0_430 = arith.constant 0 : index
    %c0_431 = arith.constant 0 : index
    %c0_432 = arith.constant 0 : index
    %567 = vector.load %arg7[%c0_428, %c3_429, %c0_430, %c0_431, %c0_432] : memref<1x6x6x8x128xf32, #tpu.memory_space<vmem>>, vector<1x1x6x8x128xf32>
    %568 = vector.shape_cast %567 : vector<1x1x6x8x128xf32> to vector<6x8x128xf32>
    %569 = vector.shape_cast %566 : vector<6x8x128xf32> to vector<1x1x6x8x128xf32>
    tpu.vector_store %arg7[%c0_428, %c3_429, %c0_430, %c0_431, %c0_432], %569 {strides = array<i32>} : memref<1x6x6x8x128xf32, #tpu.memory_space<vmem>>, vector<1x1x6x8x128xf32>,
    %cst_433 = arith.constant 0.000000e+00 : f32
    %570 = vector.broadcast %cst_433 : f32 to vector<48x128xf32>
    %c4_i32 = arith.constant 4 : i32
    %571 = arith.addi %0, %c4_i32 : i32
    %c0_i32_434 = arith.constant 0 : i32
    %572 = arith.addi %571, %c0_i32_434 : i32
    %c0_i32_435 = arith.constant 0 : i32
    %573 = arith.addi %1, %c0_i32_435 : i32
    %c0_436 = arith.constant 0 : index
    %574 = arith.index_cast %572 : i32 to index
    %575 = arith.index_cast %573 : i32 to index
    %c0_437 = arith.constant 0 : index
    %c0_438 = arith.constant 0 : index
    %576 = vector.load %arg4[%c0_436, %574, %575, %c0_437, %c0_438] : memref<1x8x8x8x24xbf16, #tpu.memory_space<vmem>>, vector<1x1x6x8x24xbf16>
    %577 = vector.shape_cast %576 : vector<1x1x6x8x24xbf16> to vector<1x6x8x24xbf16>
    %578 = vector.shape_cast %577 : vector<1x6x8x24xbf16> to vector<48x24xbf16>
    %c0_439 = arith.constant 0 : index
    %c0_440 = arith.constant 0 : index
    %c0_441 = arith.constant 0 : index
    %c0_442 = arith.constant 0 : index
    %579 = vector.load %arg5[%c0_439, %c0_440, %c0_441, %c0_442] : memref<1x9x24x128xbf16, #tpu.memory_space<vmem>>, vector<1x1x24x128xbf16>
    %580 = vector.shape_cast %579 : vector<1x1x24x128xbf16> to vector<1x24x128xbf16>
    %581 = vector.shape_cast %580 : vector<1x24x128xbf16> to vector<24x128xbf16>
    %cst_443 = arith.constant dense<0.000000e+00> : vector<48x128xf32>
    %582 = tpu.matmul %578, %581, %cst_443 {dimension_numbers = #tpu.dot_dimension_numbers<[1], [0], [0], [1], [0, 0, 1, 1], [], []>} : vector<48x24xbf16>, vector<24x128xbf16>, vector<48x128xf32> -> vector<48x128xf32>
    %583 = arith.addf %570, %582 : vector<48x128xf32>
    %c4_i32_444 = arith.constant 4 : i32
    %584 = arith.addi %0, %c4_i32_444 : i32
    %c0_i32_445 = arith.constant 0 : i32
    %585 = arith.addi %584, %c0_i32_445 : i32
    %c1_i32_446 = arith.constant 1 : i32
    %586 = arith.addi %1, %c1_i32_446 : i32
    %c0_447 = arith.constant 0 : index
    %587 = arith.index_cast %585 : i32 to index
    %588 = arith.index_cast %586 : i32 to index
    %c0_448 = arith.constant 0 : index
    %c0_449 = arith.constant 0 : index
    %589 = vector.load %arg4[%c0_447, %587, %588, %c0_448, %c0_449] : memref<1x8x8x8x24xbf16, #tpu.memory_space<vmem>>, vector<1x1x6x8x24xbf16>
    %590 = vector.shape_cast %589 : vector<1x1x6x8x24xbf16> to vector<1x6x8x24xbf16>
    %591 = vector.shape_cast %590 : vector<1x6x8x24xbf16> to vector<48x24xbf16>
    %c0_450 = arith.constant 0 : index
    %c1_451 = arith.constant 1 : index
    %c0_452 = arith.constant 0 : index
    %c0_453 = arith.constant 0 : index
    %592 = vector.load %arg5[%c0_450, %c1_451, %c0_452, %c0_453] : memref<1x9x24x128xbf16, #tpu.memory_space<vmem>>, vector<1x1x24x128xbf16>
    %593 = vector.shape_cast %592 : vector<1x1x24x128xbf16> to vector<1x24x128xbf16>
    %594 = vector.shape_cast %593 : vector<1x24x128xbf16> to vector<24x128xbf16>
    %cst_454 = arith.constant dense<0.000000e+00> : vector<48x128xf32>
    %595 = tpu.matmul %591, %594, %cst_454 {dimension_numbers = #tpu.dot_dimension_numbers<[1], [0], [0], [1], [0, 0, 1, 1], [], []>} : vector<48x24xbf16>, vector<24x128xbf16>, vector<48x128xf32> -> vector<48x128xf32>
    %596 = arith.addf %583, %595 : vector<48x128xf32>
    %c4_i32_455 = arith.constant 4 : i32
    %597 = arith.addi %0, %c4_i32_455 : i32
    %c0_i32_456 = arith.constant 0 : i32
    %598 = arith.addi %597, %c0_i32_456 : i32
    %c2_i32_457 = arith.constant 2 : i32
    %599 = arith.addi %1, %c2_i32_457 : i32
    %c0_458 = arith.constant 0 : index
    %600 = arith.index_cast %598 : i32 to index
    %601 = arith.index_cast %599 : i32 to index
    %c0_459 = arith.constant 0 : index
    %c0_460 = arith.constant 0 : index
    %602 = vector.load %arg4[%c0_458, %600, %601, %c0_459, %c0_460] : memref<1x8x8x8x24xbf16, #tpu.memory_space<vmem>>, vector<1x1x6x8x24xbf16>
    %603 = vector.shape_cast %602 : vector<1x1x6x8x24xbf16> to vector<1x6x8x24xbf16>
    %604 = vector.shape_cast %603 : vector<1x6x8x24xbf16> to vector<48x24xbf16>
    %c0_461 = arith.constant 0 : index
    %c2_462 = arith.constant 2 : index
    %c0_463 = arith.constant 0 : index
    %c0_464 = arith.constant 0 : index
    %605 = vector.load %arg5[%c0_461, %c2_462, %c0_463, %c0_464] : memref<1x9x24x128xbf16, #tpu.memory_space<vmem>>, vector<1x1x24x128xbf16>
    %606 = vector.shape_cast %605 : vector<1x1x24x128xbf16> to vector<1x24x128xbf16>
    %607 = vector.shape_cast %606 : vector<1x24x128xbf16> to vector<24x128xbf16>
    %cst_465 = arith.constant dense<0.000000e+00> : vector<48x128xf32>
    %608 = tpu.matmul %604, %607, %cst_465 {dimension_numbers = #tpu.dot_dimension_numbers<[1], [0], [0], [1], [0, 0, 1, 1], [], []>} : vector<48x24xbf16>, vector<24x128xbf16>, vector<48x128xf32> -> vector<48x128xf32>
    %609 = arith.addf %596, %608 : vector<48x128xf32>
    %c4_i32_466 = arith.constant 4 : i32
    %610 = arith.addi %0, %c4_i32_466 : i32
    %c1_i32_467 = arith.constant 1 : i32
    %611 = arith.addi %610, %c1_i32_467 : i32
    %c0_i32_468 = arith.constant 0 : i32
    %612 = arith.addi %1, %c0_i32_468 : i32
    %c0_469 = arith.constant 0 : index
    %613 = arith.index_cast %611 : i32 to index
    %614 = arith.index_cast %612 : i32 to index
    %c0_470 = arith.constant 0 : index
    %c0_471 = arith.constant 0 : index
    %615 = vector.load %arg4[%c0_469, %613, %614, %c0_470, %c0_471] : memref<1x8x8x8x24xbf16, #tpu.memory_space<vmem>>, vector<1x1x6x8x24xbf16>
    %616 = vector.shape_cast %615 : vector<1x1x6x8x24xbf16> to vector<1x6x8x24xbf16>
    %617 = vector.shape_cast %616 : vector<1x6x8x24xbf16> to vector<48x24xbf16>
    %c0_472 = arith.constant 0 : index
    %c3_473 = arith.constant 3 : index
    %c0_474 = arith.constant 0 : index
    %c0_475 = arith.constant 0 : index
    %618 = vector.load %arg5[%c0_472, %c3_473, %c0_474, %c0_475] : memref<1x9x24x128xbf16, #tpu.memory_space<vmem>>, vector<1x1x24x128xbf16>
    %619 = vector.shape_cast %618 : vector<1x1x24x128xbf16> to vector<1x24x128xbf16>
    %620 = vector.shape_cast %619 : vector<1x24x128xbf16> to vector<24x128xbf16>
    %cst_476 = arith.constant dense<0.000000e+00> : vector<48x128xf32>
    %621 = tpu.matmul %617, %620, %cst_476 {dimension_numbers = #tpu.dot_dimension_numbers<[1], [0], [0], [1], [0, 0, 1, 1], [], []>} : vector<48x24xbf16>, vector<24x128xbf16>, vector<48x128xf32> -> vector<48x128xf32>
    %622 = arith.addf %609, %621 : vector<48x128xf32>
    %c4_i32_477 = arith.constant 4 : i32
    %623 = arith.addi %0, %c4_i32_477 : i32
    %c1_i32_478 = arith.constant 1 : i32
    %624 = arith.addi %623, %c1_i32_478 : i32
    %c1_i32_479 = arith.constant 1 : i32
    %625 = arith.addi %1, %c1_i32_479 : i32
    %c0_480 = arith.constant 0 : index
    %626 = arith.index_cast %624 : i32 to index
    %627 = arith.index_cast %625 : i32 to index
    %c0_481 = arith.constant 0 : index
    %c0_482 = arith.constant 0 : index
    %628 = vector.load %arg4[%c0_480, %626, %627, %c0_481, %c0_482] : memref<1x8x8x8x24xbf16, #tpu.memory_space<vmem>>, vector<1x1x6x8x24xbf16>
    %629 = vector.shape_cast %628 : vector<1x1x6x8x24xbf16> to vector<1x6x8x24xbf16>
    %630 = vector.shape_cast %629 : vector<1x6x8x24xbf16> to vector<48x24xbf16>
    %c0_483 = arith.constant 0 : index
    %c4_484 = arith.constant 4 : index
    %c0_485 = arith.constant 0 : index
    %c0_486 = arith.constant 0 : index
    %631 = vector.load %arg5[%c0_483, %c4_484, %c0_485, %c0_486] : memref<1x9x24x128xbf16, #tpu.memory_space<vmem>>, vector<1x1x24x128xbf16>
    %632 = vector.shape_cast %631 : vector<1x1x24x128xbf16> to vector<1x24x128xbf16>
    %633 = vector.shape_cast %632 : vector<1x24x128xbf16> to vector<24x128xbf16>
    %cst_487 = arith.constant dense<0.000000e+00> : vector<48x128xf32>
    %634 = tpu.matmul %630, %633, %cst_487 {dimension_numbers = #tpu.dot_dimension_numbers<[1], [0], [0], [1], [0, 0, 1, 1], [], []>} : vector<48x24xbf16>, vector<24x128xbf16>, vector<48x128xf32> -> vector<48x128xf32>
    %635 = arith.addf %622, %634 : vector<48x128xf32>
    %c4_i32_488 = arith.constant 4 : i32
    %636 = arith.addi %0, %c4_i32_488 : i32
    %c1_i32_489 = arith.constant 1 : i32
    %637 = arith.addi %636, %c1_i32_489 : i32
    %c2_i32_490 = arith.constant 2 : i32
    %638 = arith.addi %1, %c2_i32_490 : i32
    %c0_491 = arith.constant 0 : index
    %639 = arith.index_cast %637 : i32 to index
    %640 = arith.index_cast %638 : i32 to index
    %c0_492 = arith.constant 0 : index
    %c0_493 = arith.constant 0 : index
    %641 = vector.load %arg4[%c0_491, %639, %640, %c0_492, %c0_493] : memref<1x8x8x8x24xbf16, #tpu.memory_space<vmem>>, vector<1x1x6x8x24xbf16>
    %642 = vector.shape_cast %641 : vector<1x1x6x8x24xbf16> to vector<1x6x8x24xbf16>
    %643 = vector.shape_cast %642 : vector<1x6x8x24xbf16> to vector<48x24xbf16>
    %c0_494 = arith.constant 0 : index
    %c5_495 = arith.constant 5 : index
    %c0_496 = arith.constant 0 : index
    %c0_497 = arith.constant 0 : index
    %644 = vector.load %arg5[%c0_494, %c5_495, %c0_496, %c0_497] : memref<1x9x24x128xbf16, #tpu.memory_space<vmem>>, vector<1x1x24x128xbf16>
    %645 = vector.shape_cast %644 : vector<1x1x24x128xbf16> to vector<1x24x128xbf16>
    %646 = vector.shape_cast %645 : vector<1x24x128xbf16> to vector<24x128xbf16>
    %cst_498 = arith.constant dense<0.000000e+00> : vector<48x128xf32>
    %647 = tpu.matmul %643, %646, %cst_498 {dimension_numbers = #tpu.dot_dimension_numbers<[1], [0], [0], [1], [0, 0, 1, 1], [], []>} : vector<48x24xbf16>, vector<24x128xbf16>, vector<48x128xf32> -> vector<48x128xf32>
    %648 = arith.addf %635, %647 : vector<48x128xf32>
    %c4_i32_499 = arith.constant 4 : i32
    %649 = arith.addi %0, %c4_i32_499 : i32
    %c2_i32_500 = arith.constant 2 : i32
    %650 = arith.addi %649, %c2_i32_500 : i32
    %c0_i32_501 = arith.constant 0 : i32
    %651 = arith.addi %1, %c0_i32_501 : i32
    %c0_502 = arith.constant 0 : index
    %652 = arith.index_cast %650 : i32 to index
    %653 = arith.index_cast %651 : i32 to index
    %c0_503 = arith.constant 0 : index
    %c0_504 = arith.constant 0 : index
    %654 = vector.load %arg4[%c0_502, %652, %653, %c0_503, %c0_504] : memref<1x8x8x8x24xbf16, #tpu.memory_space<vmem>>, vector<1x1x6x8x24xbf16>
    %655 = vector.shape_cast %654 : vector<1x1x6x8x24xbf16> to vector<1x6x8x24xbf16>
    %656 = vector.shape_cast %655 : vector<1x6x8x24xbf16> to vector<48x24xbf16>
    %c0_505 = arith.constant 0 : index
    %c6_506 = arith.constant 6 : index
    %c0_507 = arith.constant 0 : index
    %c0_508 = arith.constant 0 : index
    %657 = vector.load %arg5[%c0_505, %c6_506, %c0_507, %c0_508] : memref<1x9x24x128xbf16, #tpu.memory_space<vmem>>, vector<1x1x24x128xbf16>
    %658 = vector.shape_cast %657 : vector<1x1x24x128xbf16> to vector<1x24x128xbf16>
    %659 = vector.shape_cast %658 : vector<1x24x128xbf16> to vector<24x128xbf16>
    %cst_509 = arith.constant dense<0.000000e+00> : vector<48x128xf32>
    %660 = tpu.matmul %656, %659, %cst_509 {dimension_numbers = #tpu.dot_dimension_numbers<[1], [0], [0], [1], [0, 0, 1, 1], [], []>} : vector<48x24xbf16>, vector<24x128xbf16>, vector<48x128xf32> -> vector<48x128xf32>
    %661 = arith.addf %648, %660 : vector<48x128xf32>
    %c4_i32_510 = arith.constant 4 : i32
    %662 = arith.addi %0, %c4_i32_510 : i32
    %c2_i32_511 = arith.constant 2 : i32
    %663 = arith.addi %662, %c2_i32_511 : i32
    %c1_i32_512 = arith.constant 1 : i32
    %664 = arith.addi %1, %c1_i32_512 : i32
    %c0_513 = arith.constant 0 : index
    %665 = arith.index_cast %663 : i32 to index
    %666 = arith.index_cast %664 : i32 to index
    %c0_514 = arith.constant 0 : index
    %c0_515 = arith.constant 0 : index
    %667 = vector.load %arg4[%c0_513, %665, %666, %c0_514, %c0_515] : memref<1x8x8x8x24xbf16, #tpu.memory_space<vmem>>, vector<1x1x6x8x24xbf16>
    %668 = vector.shape_cast %667 : vector<1x1x6x8x24xbf16> to vector<1x6x8x24xbf16>
    %669 = vector.shape_cast %668 : vector<1x6x8x24xbf16> to vector<48x24xbf16>
    %c0_516 = arith.constant 0 : index
    %c7_517 = arith.constant 7 : index
    %c0_518 = arith.constant 0 : index
    %c0_519 = arith.constant 0 : index
    %670 = vector.load %arg5[%c0_516, %c7_517, %c0_518, %c0_519] : memref<1x9x24x128xbf16, #tpu.memory_space<vmem>>, vector<1x1x24x128xbf16>
    %671 = vector.shape_cast %670 : vector<1x1x24x128xbf16> to vector<1x24x128xbf16>
    %672 = vector.shape_cast %671 : vector<1x24x128xbf16> to vector<24x128xbf16>
    %cst_520 = arith.constant dense<0.000000e+00> : vector<48x128xf32>
    %673 = tpu.matmul %669, %672, %cst_520 {dimension_numbers = #tpu.dot_dimension_numbers<[1], [0], [0], [1], [0, 0, 1, 1], [], []>} : vector<48x24xbf16>, vector<24x128xbf16>, vector<48x128xf32> -> vector<48x128xf32>
    %674 = arith.addf %661, %673 : vector<48x128xf32>
    %c4_i32_521 = arith.constant 4 : i32
    %675 = arith.addi %0, %c4_i32_521 : i32
    %c2_i32_522 = arith.constant 2 : i32
    %676 = arith.addi %675, %c2_i32_522 : i32
    %c2_i32_523 = arith.constant 2 : i32
    %677 = arith.addi %1, %c2_i32_523 : i32
    %c0_524 = arith.constant 0 : index
    %678 = arith.index_cast %676 : i32 to index
    %679 = arith.index_cast %677 : i32 to index
    %c0_525 = arith.constant 0 : index
    %c0_526 = arith.constant 0 : index
    %680 = vector.load %arg4[%c0_524, %678, %679, %c0_525, %c0_526] : memref<1x8x8x8x24xbf16, #tpu.memory_space<vmem>>, vector<1x1x6x8x24xbf16>
    %681 = vector.shape_cast %680 : vector<1x1x6x8x24xbf16> to vector<1x6x8x24xbf16>
    %682 = vector.shape_cast %681 : vector<1x6x8x24xbf16> to vector<48x24xbf16>
    %c0_527 = arith.constant 0 : index
    %c8_528 = arith.constant 8 : index
    %c0_529 = arith.constant 0 : index
    %c0_530 = arith.constant 0 : index
    %683 = vector.load %arg5[%c0_527, %c8_528, %c0_529, %c0_530] : memref<1x9x24x128xbf16, #tpu.memory_space<vmem>>, vector<1x1x24x128xbf16>
    %684 = vector.shape_cast %683 : vector<1x1x24x128xbf16> to vector<1x24x128xbf16>
    %685 = vector.shape_cast %684 : vector<1x24x128xbf16> to vector<24x128xbf16>
    %cst_531 = arith.constant dense<0.000000e+00> : vector<48x128xf32>
    %686 = tpu.matmul %682, %685, %cst_531 {dimension_numbers = #tpu.dot_dimension_numbers<[1], [0], [0], [1], [0, 0, 1, 1], [], []>} : vector<48x24xbf16>, vector<24x128xbf16>, vector<48x128xf32> -> vector<48x128xf32>
    %687 = arith.addf %674, %686 : vector<48x128xf32>
    %688 = vector.broadcast %3 : vector<1x128xf32> to vector<48x128xf32>
    %689 = arith.addf %687, %688 : vector<48x128xf32>
    %cst_532 = arith.constant 0.000000e+00 : f32
    %690 = vector.shape_cast %27 : vector<48x1xi1> to vector<48x1xi1>
    %691 = vector.broadcast %690 : vector<48x1xi1> to vector<48x128xi1>
    %692 = vector.broadcast %cst_532 : f32 to vector<48x128xf32>
    %693 = arith.select %691, %689, %692 : vector<48x128xi1>, vector<48x128xf32>
    %cst_533 = arith.constant dense<0.000000e+00> : vector<128xf32>
    %694 = vector.multi_reduction <add>, %693, %cst_533 [0] : vector<48x128xf32> to vector<128xf32>
    %695 = vector.shape_cast %694 : vector<128xf32> to vector<1x128xf32>
    %696 = arith.addf %561, %695 : vector<1x128xf32>
    %697 = arith.mulf %693, %693 : vector<48x128xf32>
    %cst_534 = arith.constant dense<0.000000e+00> : vector<128xf32>
    %698 = vector.multi_reduction <add>, %697, %cst_534 [0] : vector<48x128xf32> to vector<128xf32>
    %699 = vector.shape_cast %698 : vector<128xf32> to vector<1x128xf32>
    %700 = arith.addf %565, %699 : vector<1x128xf32>
    %701 = vector.shape_cast %689 : vector<48x128xf32> to vector<6x8x128xf32>
    %c0_535 = arith.constant 0 : index
    %c4_536 = arith.constant 4 : index
    %c0_537 = arith.constant 0 : index
    %c0_538 = arith.constant 0 : index
    %c0_539 = arith.constant 0 : index
    %702 = vector.load %arg7[%c0_535, %c4_536, %c0_537, %c0_538, %c0_539] : memref<1x6x6x8x128xf32, #tpu.memory_space<vmem>>, vector<1x1x6x8x128xf32>
    %703 = vector.shape_cast %702 : vector<1x1x6x8x128xf32> to vector<6x8x128xf32>
    %704 = vector.shape_cast %701 : vector<6x8x128xf32> to vector<1x1x6x8x128xf32>
    tpu.vector_store %arg7[%c0_535, %c4_536, %c0_537, %c0_538, %c0_539], %704 {strides = array<i32>} : memref<1x6x6x8x128xf32, #tpu.memory_space<vmem>>, vector<1x1x6x8x128xf32>,
    %cst_540 = arith.constant 0.000000e+00 : f32
    %705 = vector.broadcast %cst_540 : f32 to vector<48x128xf32>
    %c5_i32 = arith.constant 5 : i32
    %706 = arith.addi %0, %c5_i32 : i32
    %c0_i32_541 = arith.constant 0 : i32
    %707 = arith.addi %706, %c0_i32_541 : i32
    %c0_i32_542 = arith.constant 0 : i32
    %708 = arith.addi %1, %c0_i32_542 : i32
    %c0_543 = arith.constant 0 : index
    %709 = arith.index_cast %707 : i32 to index
    %710 = arith.index_cast %708 : i32 to index
    %c0_544 = arith.constant 0 : index
    %c0_545 = arith.constant 0 : index
    %711 = vector.load %arg4[%c0_543, %709, %710, %c0_544, %c0_545] : memref<1x8x8x8x24xbf16, #tpu.memory_space<vmem>>, vector<1x1x6x8x24xbf16>
    %712 = vector.shape_cast %711 : vector<1x1x6x8x24xbf16> to vector<1x6x8x24xbf16>
    %713 = vector.shape_cast %712 : vector<1x6x8x24xbf16> to vector<48x24xbf16>
    %c0_546 = arith.constant 0 : index
    %c0_547 = arith.constant 0 : index
    %c0_548 = arith.constant 0 : index
    %c0_549 = arith.constant 0 : index
    %714 = vector.load %arg5[%c0_546, %c0_547, %c0_548, %c0_549] : memref<1x9x24x128xbf16, #tpu.memory_space<vmem>>, vector<1x1x24x128xbf16>
    %715 = vector.shape_cast %714 : vector<1x1x24x128xbf16> to vector<1x24x128xbf16>
    %716 = vector.shape_cast %715 : vector<1x24x128xbf16> to vector<24x128xbf16>
    %cst_550 = arith.constant dense<0.000000e+00> : vector<48x128xf32>
    %717 = tpu.matmul %713, %716, %cst_550 {dimension_numbers = #tpu.dot_dimension_numbers<[1], [0], [0], [1], [0, 0, 1, 1], [], []>} : vector<48x24xbf16>, vector<24x128xbf16>, vector<48x128xf32> -> vector<48x128xf32>
    %718 = arith.addf %705, %717 : vector<48x128xf32>
    %c5_i32_551 = arith.constant 5 : i32
    %719 = arith.addi %0, %c5_i32_551 : i32
    %c0_i32_552 = arith.constant 0 : i32
    %720 = arith.addi %719, %c0_i32_552 : i32
    %c1_i32_553 = arith.constant 1 : i32
    %721 = arith.addi %1, %c1_i32_553 : i32
    %c0_554 = arith.constant 0 : index
    %722 = arith.index_cast %720 : i32 to index
    %723 = arith.index_cast %721 : i32 to index
    %c0_555 = arith.constant 0 : index
    %c0_556 = arith.constant 0 : index
    %724 = vector.load %arg4[%c0_554, %722, %723, %c0_555, %c0_556] : memref<1x8x8x8x24xbf16, #tpu.memory_space<vmem>>, vector<1x1x6x8x24xbf16>
    %725 = vector.shape_cast %724 : vector<1x1x6x8x24xbf16> to vector<1x6x8x24xbf16>
    %726 = vector.shape_cast %725 : vector<1x6x8x24xbf16> to vector<48x24xbf16>
    %c0_557 = arith.constant 0 : index
    %c1_558 = arith.constant 1 : index
    %c0_559 = arith.constant 0 : index
    %c0_560 = arith.constant 0 : index
    %727 = vector.load %arg5[%c0_557, %c1_558, %c0_559, %c0_560] : memref<1x9x24x128xbf16, #tpu.memory_space<vmem>>, vector<1x1x24x128xbf16>
    %728 = vector.shape_cast %727 : vector<1x1x24x128xbf16> to vector<1x24x128xbf16>
    %729 = vector.shape_cast %728 : vector<1x24x128xbf16> to vector<24x128xbf16>
    %cst_561 = arith.constant dense<0.000000e+00> : vector<48x128xf32>
    %730 = tpu.matmul %726, %729, %cst_561 {dimension_numbers = #tpu.dot_dimension_numbers<[1], [0], [0], [1], [0, 0, 1, 1], [], []>} : vector<48x24xbf16>, vector<24x128xbf16>, vector<48x128xf32> -> vector<48x128xf32>
    %731 = arith.addf %718, %730 : vector<48x128xf32>
    %c5_i32_562 = arith.constant 5 : i32
    %732 = arith.addi %0, %c5_i32_562 : i32
    %c0_i32_563 = arith.constant 0 : i32
    %733 = arith.addi %732, %c0_i32_563 : i32
    %c2_i32_564 = arith.constant 2 : i32
    %734 = arith.addi %1, %c2_i32_564 : i32
    %c0_565 = arith.constant 0 : index
    %735 = arith.index_cast %733 : i32 to index
    %736 = arith.index_cast %734 : i32 to index
    %c0_566 = arith.constant 0 : index
    %c0_567 = arith.constant 0 : index
    %737 = vector.load %arg4[%c0_565, %735, %736, %c0_566, %c0_567] : memref<1x8x8x8x24xbf16, #tpu.memory_space<vmem>>, vector<1x1x6x8x24xbf16>
    %738 = vector.shape_cast %737 : vector<1x1x6x8x24xbf16> to vector<1x6x8x24xbf16>
    %739 = vector.shape_cast %738 : vector<1x6x8x24xbf16> to vector<48x24xbf16>
    %c0_568 = arith.constant 0 : index
    %c2_569 = arith.constant 2 : index
    %c0_570 = arith.constant 0 : index
    %c0_571 = arith.constant 0 : index
    %740 = vector.load %arg5[%c0_568, %c2_569, %c0_570, %c0_571] : memref<1x9x24x128xbf16, #tpu.memory_space<vmem>>, vector<1x1x24x128xbf16>
    %741 = vector.shape_cast %740 : vector<1x1x24x128xbf16> to vector<1x24x128xbf16>
    %742 = vector.shape_cast %741 : vector<1x24x128xbf16> to vector<24x128xbf16>
    %cst_572 = arith.constant dense<0.000000e+00> : vector<48x128xf32>
    %743 = tpu.matmul %739, %742, %cst_572 {dimension_numbers = #tpu.dot_dimension_numbers<[1], [0], [0], [1], [0, 0, 1, 1], [], []>} : vector<48x24xbf16>, vector<24x128xbf16>, vector<48x128xf32> -> vector<48x128xf32>
    %744 = arith.addf %731, %743 : vector<48x128xf32>
    %c5_i32_573 = arith.constant 5 : i32
    %745 = arith.addi %0, %c5_i32_573 : i32
    %c1_i32_574 = arith.constant 1 : i32
    %746 = arith.addi %745, %c1_i32_574 : i32
    %c0_i32_575 = arith.constant 0 : i32
    %747 = arith.addi %1, %c0_i32_575 : i32
    %c0_576 = arith.constant 0 : index
    %748 = arith.index_cast %746 : i32 to index
    %749 = arith.index_cast %747 : i32 to index
    %c0_577 = arith.constant 0 : index
    %c0_578 = arith.constant 0 : index
    %750 = vector.load %arg4[%c0_576, %748, %749, %c0_577, %c0_578] : memref<1x8x8x8x24xbf16, #tpu.memory_space<vmem>>, vector<1x1x6x8x24xbf16>
    %751 = vector.shape_cast %750 : vector<1x1x6x8x24xbf16> to vector<1x6x8x24xbf16>
    %752 = vector.shape_cast %751 : vector<1x6x8x24xbf16> to vector<48x24xbf16>
    %c0_579 = arith.constant 0 : index
    %c3_580 = arith.constant 3 : index
    %c0_581 = arith.constant 0 : index
    %c0_582 = arith.constant 0 : index
    %753 = vector.load %arg5[%c0_579, %c3_580, %c0_581, %c0_582] : memref<1x9x24x128xbf16, #tpu.memory_space<vmem>>, vector<1x1x24x128xbf16>
    %754 = vector.shape_cast %753 : vector<1x1x24x128xbf16> to vector<1x24x128xbf16>
    %755 = vector.shape_cast %754 : vector<1x24x128xbf16> to vector<24x128xbf16>
    %cst_583 = arith.constant dense<0.000000e+00> : vector<48x128xf32>
    %756 = tpu.matmul %752, %755, %cst_583 {dimension_numbers = #tpu.dot_dimension_numbers<[1], [0], [0], [1], [0, 0, 1, 1], [], []>} : vector<48x24xbf16>, vector<24x128xbf16>, vector<48x128xf32> -> vector<48x128xf32>
    %757 = arith.addf %744, %756 : vector<48x128xf32>
    %c5_i32_584 = arith.constant 5 : i32
    %758 = arith.addi %0, %c5_i32_584 : i32
    %c1_i32_585 = arith.constant 1 : i32
    %759 = arith.addi %758, %c1_i32_585 : i32
    %c1_i32_586 = arith.constant 1 : i32
    %760 = arith.addi %1, %c1_i32_586 : i32
    %c0_587 = arith.constant 0 : index
    %761 = arith.index_cast %759 : i32 to index
    %762 = arith.index_cast %760 : i32 to index
    %c0_588 = arith.constant 0 : index
    %c0_589 = arith.constant 0 : index
    %763 = vector.load %arg4[%c0_587, %761, %762, %c0_588, %c0_589] : memref<1x8x8x8x24xbf16, #tpu.memory_space<vmem>>, vector<1x1x6x8x24xbf16>
    %764 = vector.shape_cast %763 : vector<1x1x6x8x24xbf16> to vector<1x6x8x24xbf16>
    %765 = vector.shape_cast %764 : vector<1x6x8x24xbf16> to vector<48x24xbf16>
    %c0_590 = arith.constant 0 : index
    %c4_591 = arith.constant 4 : index
    %c0_592 = arith.constant 0 : index
    %c0_593 = arith.constant 0 : index
    %766 = vector.load %arg5[%c0_590, %c4_591, %c0_592, %c0_593] : memref<1x9x24x128xbf16, #tpu.memory_space<vmem>>, vector<1x1x24x128xbf16>
    %767 = vector.shape_cast %766 : vector<1x1x24x128xbf16> to vector<1x24x128xbf16>
    %768 = vector.shape_cast %767 : vector<1x24x128xbf16> to vector<24x128xbf16>
    %cst_594 = arith.constant dense<0.000000e+00> : vector<48x128xf32>
    %769 = tpu.matmul %765, %768, %cst_594 {dimension_numbers = #tpu.dot_dimension_numbers<[1], [0], [0], [1], [0, 0, 1, 1], [], []>} : vector<48x24xbf16>, vector<24x128xbf16>, vector<48x128xf32> -> vector<48x128xf32>
    %770 = arith.addf %757, %769 : vector<48x128xf32>
    %c5_i32_595 = arith.constant 5 : i32
    %771 = arith.addi %0, %c5_i32_595 : i32
    %c1_i32_596 = arith.constant 1 : i32
    %772 = arith.addi %771, %c1_i32_596 : i32
    %c2_i32_597 = arith.constant 2 : i32
    %773 = arith.addi %1, %c2_i32_597 : i32
    %c0_598 = arith.constant 0 : index
    %774 = arith.index_cast %772 : i32 to index
    %775 = arith.index_cast %773 : i32 to index
    %c0_599 = arith.constant 0 : index
    %c0_600 = arith.constant 0 : index
    %776 = vector.load %arg4[%c0_598, %774, %775, %c0_599, %c0_600] : memref<1x8x8x8x24xbf16, #tpu.memory_space<vmem>>, vector<1x1x6x8x24xbf16>
    %777 = vector.shape_cast %776 : vector<1x1x6x8x24xbf16> to vector<1x6x8x24xbf16>
    %778 = vector.shape_cast %777 : vector<1x6x8x24xbf16> to vector<48x24xbf16>
    %c0_601 = arith.constant 0 : index
    %c5_602 = arith.constant 5 : index
    %c0_603 = arith.constant 0 : index
    %c0_604 = arith.constant 0 : index
    %779 = vector.load %arg5[%c0_601, %c5_602, %c0_603, %c0_604] : memref<1x9x24x128xbf16, #tpu.memory_space<vmem>>, vector<1x1x24x128xbf16>
    %780 = vector.shape_cast %779 : vector<1x1x24x128xbf16> to vector<1x24x128xbf16>
    %781 = vector.shape_cast %780 : vector<1x24x128xbf16> to vector<24x128xbf16>
    %cst_605 = arith.constant dense<0.000000e+00> : vector<48x128xf32>
    %782 = tpu.matmul %778, %781, %cst_605 {dimension_numbers = #tpu.dot_dimension_numbers<[1], [0], [0], [1], [0, 0, 1, 1], [], []>} : vector<48x24xbf16>, vector<24x128xbf16>, vector<48x128xf32> -> vector<48x128xf32>
    %783 = arith.addf %770, %782 : vector<48x128xf32>
    %c5_i32_606 = arith.constant 5 : i32
    %784 = arith.addi %0, %c5_i32_606 : i32
    %c2_i32_607 = arith.constant 2 : i32
    %785 = arith.addi %784, %c2_i32_607 : i32
    %c0_i32_608 = arith.constant 0 : i32
    %786 = arith.addi %1, %c0_i32_608 : i32
    %c0_609 = arith.constant 0 : index
    %787 = arith.index_cast %785 : i32 to index
    %788 = arith.index_cast %786 : i32 to index
    %c0_610 = arith.constant 0 : index
    %c0_611 = arith.constant 0 : index
    %789 = vector.load %arg4[%c0_609, %787, %788, %c0_610, %c0_611] : memref<1x8x8x8x24xbf16, #tpu.memory_space<vmem>>, vector<1x1x6x8x24xbf16>
    %790 = vector.shape_cast %789 : vector<1x1x6x8x24xbf16> to vector<1x6x8x24xbf16>
    %791 = vector.shape_cast %790 : vector<1x6x8x24xbf16> to vector<48x24xbf16>
    %c0_612 = arith.constant 0 : index
    %c6_613 = arith.constant 6 : index
    %c0_614 = arith.constant 0 : index
    %c0_615 = arith.constant 0 : index
    %792 = vector.load %arg5[%c0_612, %c6_613, %c0_614, %c0_615] : memref<1x9x24x128xbf16, #tpu.memory_space<vmem>>, vector<1x1x24x128xbf16>
    %793 = vector.shape_cast %792 : vector<1x1x24x128xbf16> to vector<1x24x128xbf16>
    %794 = vector.shape_cast %793 : vector<1x24x128xbf16> to vector<24x128xbf16>
    %cst_616 = arith.constant dense<0.000000e+00> : vector<48x128xf32>
    %795 = tpu.matmul %791, %794, %cst_616 {dimension_numbers = #tpu.dot_dimension_numbers<[1], [0], [0], [1], [0, 0, 1, 1], [], []>} : vector<48x24xbf16>, vector<24x128xbf16>, vector<48x128xf32> -> vector<48x128xf32>
    %796 = arith.addf %783, %795 : vector<48x128xf32>
    %c5_i32_617 = arith.constant 5 : i32
    %797 = arith.addi %0, %c5_i32_617 : i32
    %c2_i32_618 = arith.constant 2 : i32
    %798 = arith.addi %797, %c2_i32_618 : i32
    %c1_i32_619 = arith.constant 1 : i32
    %799 = arith.addi %1, %c1_i32_619 : i32
    %c0_620 = arith.constant 0 : index
    %800 = arith.index_cast %798 : i32 to index
    %801 = arith.index_cast %799 : i32 to index
    %c0_621 = arith.constant 0 : index
    %c0_622 = arith.constant 0 : index
    %802 = vector.load %arg4[%c0_620, %800, %801, %c0_621, %c0_622] : memref<1x8x8x8x24xbf16, #tpu.memory_space<vmem>>, vector<1x1x6x8x24xbf16>
    %803 = vector.shape_cast %802 : vector<1x1x6x8x24xbf16> to vector<1x6x8x24xbf16>
    %804 = vector.shape_cast %803 : vector<1x6x8x24xbf16> to vector<48x24xbf16>
    %c0_623 = arith.constant 0 : index
    %c7_624 = arith.constant 7 : index
    %c0_625 = arith.constant 0 : index
    %c0_626 = arith.constant 0 : index
    %805 = vector.load %arg5[%c0_623, %c7_624, %c0_625, %c0_626] : memref<1x9x24x128xbf16, #tpu.memory_space<vmem>>, vector<1x1x24x128xbf16>
    %806 = vector.shape_cast %805 : vector<1x1x24x128xbf16> to vector<1x24x128xbf16>
    %807 = vector.shape_cast %806 : vector<1x24x128xbf16> to vector<24x128xbf16>
    %cst_627 = arith.constant dense<0.000000e+00> : vector<48x128xf32>
    %808 = tpu.matmul %804, %807, %cst_627 {dimension_numbers = #tpu.dot_dimension_numbers<[1], [0], [0], [1], [0, 0, 1, 1], [], []>} : vector<48x24xbf16>, vector<24x128xbf16>, vector<48x128xf32> -> vector<48x128xf32>
    %809 = arith.addf %796, %808 : vector<48x128xf32>
    %c5_i32_628 = arith.constant 5 : i32
    %810 = arith.addi %0, %c5_i32_628 : i32
    %c2_i32_629 = arith.constant 2 : i32
    %811 = arith.addi %810, %c2_i32_629 : i32
    %c2_i32_630 = arith.constant 2 : i32
    %812 = arith.addi %1, %c2_i32_630 : i32
    %c0_631 = arith.constant 0 : index
    %813 = arith.index_cast %811 : i32 to index
    %814 = arith.index_cast %812 : i32 to index
    %c0_632 = arith.constant 0 : index
    %c0_633 = arith.constant 0 : index
    %815 = vector.load %arg4[%c0_631, %813, %814, %c0_632, %c0_633] : memref<1x8x8x8x24xbf16, #tpu.memory_space<vmem>>, vector<1x1x6x8x24xbf16>
    %816 = vector.shape_cast %815 : vector<1x1x6x8x24xbf16> to vector<1x6x8x24xbf16>
    %817 = vector.shape_cast %816 : vector<1x6x8x24xbf16> to vector<48x24xbf16>
    %c0_634 = arith.constant 0 : index
    %c8_635 = arith.constant 8 : index
    %c0_636 = arith.constant 0 : index
    %c0_637 = arith.constant 0 : index
    %818 = vector.load %arg5[%c0_634, %c8_635, %c0_636, %c0_637] : memref<1x9x24x128xbf16, #tpu.memory_space<vmem>>, vector<1x1x24x128xbf16>
    %819 = vector.shape_cast %818 : vector<1x1x24x128xbf16> to vector<1x24x128xbf16>
    %820 = vector.shape_cast %819 : vector<1x24x128xbf16> to vector<24x128xbf16>
    %cst_638 = arith.constant dense<0.000000e+00> : vector<48x128xf32>
    %821 = tpu.matmul %817, %820, %cst_638 {dimension_numbers = #tpu.dot_dimension_numbers<[1], [0], [0], [1], [0, 0, 1, 1], [], []>} : vector<48x24xbf16>, vector<24x128xbf16>, vector<48x128xf32> -> vector<48x128xf32>
    %822 = arith.addf %809, %821 : vector<48x128xf32>
    %823 = vector.broadcast %3 : vector<1x128xf32> to vector<48x128xf32>
    %824 = arith.addf %822, %823 : vector<48x128xf32>
    %cst_639 = arith.constant 0.000000e+00 : f32
    %825 = vector.shape_cast %27 : vector<48x1xi1> to vector<48x1xi1>
    %826 = vector.broadcast %825 : vector<48x1xi1> to vector<48x128xi1>
    %827 = vector.broadcast %cst_639 : f32 to vector<48x128xf32>
    %828 = arith.select %826, %824, %827 : vector<48x128xi1>, vector<48x128xf32>
    %cst_640 = arith.constant dense<0.000000e+00> : vector<128xf32>
    %829 = vector.multi_reduction <add>, %828, %cst_640 [0] : vector<48x128xf32> to vector<128xf32>
    %830 = vector.shape_cast %829 : vector<128xf32> to vector<1x128xf32>
    %831 = arith.addf %696, %830 : vector<1x128xf32>
    %832 = arith.mulf %828, %828 : vector<48x128xf32>
    %cst_641 = arith.constant dense<0.000000e+00> : vector<128xf32>
    %833 = vector.multi_reduction <add>, %832, %cst_641 [0] : vector<48x128xf32> to vector<128xf32>
    %834 = vector.shape_cast %833 : vector<128xf32> to vector<1x128xf32>
    %835 = arith.addf %700, %834 : vector<1x128xf32>
    %836 = vector.shape_cast %824 : vector<48x128xf32> to vector<6x8x128xf32>
    %c0_642 = arith.constant 0 : index
    %c5_643 = arith.constant 5 : index
    %c0_644 = arith.constant 0 : index
    %c0_645 = arith.constant 0 : index
    %c0_646 = arith.constant 0 : index
    %837 = vector.load %arg7[%c0_642, %c5_643, %c0_644, %c0_645, %c0_646] : memref<1x6x6x8x128xf32, #tpu.memory_space<vmem>>, vector<1x1x6x8x128xf32>
    %838 = vector.shape_cast %837 : vector<1x1x6x8x128xf32> to vector<6x8x128xf32>
    %839 = vector.shape_cast %836 : vector<6x8x128xf32> to vector<1x1x6x8x128xf32>
    tpu.vector_store %arg7[%c0_642, %c5_643, %c0_644, %c0_645, %c0_646], %839 {strides = array<i32>} : memref<1x6x6x8x128xf32, #tpu.memory_space<vmem>>, vector<1x1x6x8x128xf32>,
    %c0_647 = arith.constant 0 : index
    %c0_648 = arith.constant 0 : index
    %c0_649 = arith.constant 0 : index
    %c0_650 = arith.constant 0 : index
    %840 = vector.load %arg8[%c0_647, %c0_648, %c0_649, %c0_650] : memref<1x1x2x128xf32, #tpu.memory_space<vmem>>, vector<1x1x2x128xf32>
    %841 = tpu.concatenate %831, %835 in 0 : vector<1x128xf32>, vector<1x128xf32> -> vector<2x128xf32>
    %842 = vector.shape_cast %841 : vector<2x128xf32> to vector<1x1x2x128xf32>
    %843 = arith.addf %840, %842 : vector<1x1x2x128xf32>
    %c0_651 = arith.constant 0 : index
    %c0_652 = arith.constant 0 : index
    %c0_653 = arith.constant 0 : index
    %c0_654 = arith.constant 0 : index
    %844 = vector.load %arg8[%c0_651, %c0_652, %c0_653, %c0_654] : memref<1x1x2x128xf32, #tpu.memory_space<vmem>>, vector<1x1x2x128xf32>
    tpu.vector_store %arg8[%c0_651, %c0_652, %c0_653, %c0_654], %843 {strides = array<i32>} : memref<1x1x2x128xf32, #tpu.memory_space<vmem>>, vector<1x1x2x128xf32>,
    return
  }
  func.func @transform_0(%arg0: i32, %arg1: i32, %arg2: i32, %arg3: i32) -> (i32, i32, i32, i32, i32) {
    %c0_i32 = arith.constant 0 : i32
    %c0_i32_0 = arith.constant 0 : i32
    %c0_i32_1 = arith.constant 0 : i32
    %c0_i32_2 = arith.constant 0 : i32
    %c0_i32_3 = arith.constant 0 : i32
    return %arg0, %c0_i32, %c0_i32_0, %c0_i32_1, %c0_i32_2 : i32, i32, i32, i32, i32
  }
  func.func @transform_1(%arg0: i32, %arg1: i32, %arg2: i32, %arg3: i32) -> (i32, i32, i32, i32) {
    %c0_i32 = arith.constant 0 : i32
    %c0_i32_0 = arith.constant 0 : i32
    %c0_i32_1 = arith.constant 0 : i32
    %c0_i32_2 = arith.constant 0 : i32
    return %arg1, %c0_i32, %c0_i32_0, %c0_i32_1 : i32, i32, i32, i32
  }
  func.func @transform_2(%arg0: i32, %arg1: i32, %arg2: i32, %arg3: i32) -> (i32, i32, i32) {
    %c0_i32 = arith.constant 0 : i32
    %c0_i32_0 = arith.constant 0 : i32
    %c0_i32_1 = arith.constant 0 : i32
    return %arg1, %c0_i32, %c0_i32_0 : i32, i32, i32
  }
  func.func @transform_3(%arg0: i32, %arg1: i32, %arg2: i32, %arg3: i32) -> (i32, i32, i32, i32, i32) {
    %c0_i32 = arith.constant 0 : i32
    %c0_i32_0 = arith.constant 0 : i32
    return %arg0, %arg2, %arg3, %c0_i32, %arg1 : i32, i32, i32, i32, i32
  }
  func.func @transform_4(%arg0: i32, %arg1: i32, %arg2: i32, %arg3: i32) -> (i32, i32, i32, i32) {
    %c0_i32 = arith.constant 0 : i32
    %c0_i32_0 = arith.constant 0 : i32
    %c0_i32_1 = arith.constant 0 : i32
    return %arg0, %arg1, %c0_i32, %c0_i32_0 : i32, i32, i32, i32
  }
}

</mosaic_0001>

<llo_original>
// kernel: tpu_custom_call.1
$region0: #{tpu_custom_call.1}
  #allocation0 [shape = 'u32[]', space=smem, size = 0x4, offset = 0x4, fixed_abs, tag = 'smem constant byte address 0x4 - core index']
  #allocation1 [shape = 'u32[72,128]{1,0:T(1,128)}', space=vmem, size = 0x9000, scoped, tag = 'internal scratch']
  %s0 = inlined_call_operand.hbm [shape: bf16[1,8,8,8,24], index: 0, kind: input, shape index: {}]
  %s1 = inlined_call_operand.hbm [shape: bf16[1,9,24,128], index: 1, kind: input, shape index: {}]
  %s2 = inlined_call_operand.vmem [shape: f32[1,1,128], index: 2, kind: input, shape index: {}]
  %s3 = inlined_call_operand.hbm [shape: f32[1,6,6,8,128], index: 3, kind: output, shape index: {0}]
  %s4 = inlined_call_operand.hbm [shape: f32[1,1,2,128], index: 4, kind: output, shape index: {1}]
  %5 = xla_tuple %s3, %s4
  %s6 = sld [smem:[#allocation0]]
  $region42: #{tpu_custom_call.1} parent=0
    _
  %s8 = ssub.s32 1, %s6
  %s9 = scalar_select 0, %s8, %s6
  $region1: #{tpu_custom_call.1} parent=0
    #allocation2 [shape = 'u8[131072]{0}', space=vmem, size = 0x20000, scoped, tag = 'input window, operand 0, single buffered']
    #allocation3 [shape = 's32[1]{0}', space=sflag, size = 0x4, scoped, tag = 'scoped memory for tpu_custom_call.1']
    #allocation4 [shape = 's32[1]{0}', space=sflag, size = 0x4, scoped, tag = 'scoped memory for tpu_custom_call.1']
    #allocation5 [shape = 'u8[55296]{0}', space=vmem, size = 0xd800, scoped, tag = 'input window, operand 1, single buffered']
    #allocation6 [shape = 's32[1]{0}', space=sflag, size = 0x4, scoped, tag = 'scoped memory for tpu_custom_call.1']
    #allocation7 [shape = 'u8[147456]{0}', space=vmem, size = 0x24000, scoped, tag = 'output window, operand 0, single buffered']
    #allocation8 [shape = 'u8[1024]{0}', space=vmem, size = 0x400, scoped, tag = 'output window, operand 1, single buffered']
    #allocation9 [shape = 's32[1]{0}', space=sflag, size = 0x4, scoped, tag = 'scoped memory for tpu_custom_call.1']
    %10 = vsyncpa [#allocation3], 0
    %11 = vsyncpa [#allocation6], 0
    %12 = vsyncpa [#allocation4], 0
    %13 = vsyncpa [#allocation9], 0
    // Predicated region
    $region2: #{tpu_custom_call.1} parent=1 // pred_check
      _
    $region3: #{tpu_custom_call.1} parent=1 // pred_check_branch
      %15 = sbr.rel (0) target = $region5
    $region4: #{tpu_custom_call.1} parent=1 // pred_region
      %17 = vsyncadd [#allocation3], 0
      %s18 = sshll.u32 %s0, 4
      %s19 = int_to_ptr.hbm [resolvable:$true] %s18
      %s20 = sshll.u32 [#allocation2], 4
      %s21 = int_to_ptr.vmem [resolvable:$true] %s20
      %26 = dma.hbm_to_vmem [thread:$0]  %s19, 4096, %s21, [#allocation3], 64, 64, 4
    $region5: #{tpu_custom_call.1} parent=1 // pred_fallthru
      _
    // Predicated region
    $region6: #{tpu_custom_call.1} parent=1 // pred_check
      _
    $region7: #{tpu_custom_call.1} parent=1 // pred_check_branch
      %28 = sbr.rel (0) target = $region9
    $region8: #{tpu_custom_call.1} parent=1 // pred_region
      %30 = vsyncadd [#allocation6], 0
      %s31 = sshll.u32 %s1, 4
      %s32 = int_to_ptr.hbm [resolvable:$true] %s31
      %s33 = sshll.u32 [#allocation5], 4
      %s34 = int_to_ptr.vmem [resolvable:$true] %s33
      %39 = dma.hbm_to_vmem [thread:$0]  %s32, 1728, %s34, [#allocation6], 64, 64, 4
    $region9: #{tpu_custom_call.1} parent=1 // pred_fallthru
      _
    // Predicated region
    $region10: #{tpu_custom_call.1} parent=1 // pred_check
      _
    $region11: #{tpu_custom_call.1} parent=1 // pred_check_branch
      %41 = sbr.rel (0) target = $region13
    $region12: #{tpu_custom_call.1} parent=1 // pred_region
      _
    $region13: #{tpu_custom_call.1} parent=1 // pred_fallthru
      _
    // Predicated region
    $region14: #{tpu_custom_call.1} parent=1 // pred_check
      _
    $region15: #{tpu_custom_call.1} parent=1 // pred_check_branch
      %43 = sbr.rel (0) target = $region17
    $region16: #{tpu_custom_call.1} parent=1 // pred_region
      %45 = dma.done [#allocation3], 4096
    $region17: #{tpu_custom_call.1} parent=1 // pred_fallthru
      _
    // Predicated region
    $region18: #{tpu_custom_call.1} parent=1 // pred_check
      _
    $region19: #{tpu_custom_call.1} parent=1 // pred_check_branch
      %47 = sbr.rel (0) target = $region21
    $region20: #{tpu_custom_call.1} parent=1 // pred_region
      %49 = dma.done [#allocation6], 1728
    $region21: #{tpu_custom_call.1} parent=1 // pred_fallthru
      _
    %s51 = smul.u32 0, 6
    %s52 = smul.u32 0, 6
    %v53 = vld [vmem:[%s2] sm:$0x1]
    %p54 = scmp.eq.s32.totalorder 0, 0
    %p55 = scmp.eq.s32.totalorder 0, 0
    %p56 = pnand %p54, %p55
    %p57 = pneg %p56
    // Predicated region
    $region22: #{tpu_custom_call.1} parent=1 // pred_check
      _
    $region23: #{tpu_custom_call.1} parent=1 // pred_check_branch
      %59 = sbr.rel (%p56) target = $region25
    $region24: #{tpu_custom_call.1} parent=1 // pred_region
      %60 = vst [vmem:[#allocation8] sm:$0x3] 0.0
    $region25: #{tpu_custom_call.1} parent=1 // pred_fallthru
      _
    %v61 = vlaneseq
    %v62 = vshrl.u32 %v61, 7
    %v63 = vadd.s32 %v62, 8
    %v64 = vadd.s32 %v62, 16
    %v65 = vadd.s32 %v62, 24
    %v66 = vadd.s32 %v62, 32
    %v67 = vadd.s32 %v62, 40
    %vm68 = vcmp.lt.s32.totalorder %v62, 0
    %v69 = vsub.s32 0, %v62
    %v70 = vsel %vm68, %v69, %v62
    %v71 = vshrl.u32 %v70, 3
    %v72 = vand.u32 %v70, 7
    %v73 = vsub.s32 0, %v72
    %v74 = vsel %vm68, %v73, %v72
    %vm75 = vcmp.lt.s32.totalorder %v63, 0
    %v76 = vsub.s32 0, %v63
    %v77 = vsel %vm75, %v76, %v63
    %v78 = vshrl.u32 %v77, 3
    %v79 = vand.u32 %v77, 7
    %v80 = vsub.s32 0, %v79
    %v81 = vsel %vm75, %v80, %v79
    %vm82 = vcmp.lt.s32.totalorder %v64, 0
    %v83 = vsub.s32 0, %v64
    %v84 = vsel %vm82, %v83, %v64
    %v85 = vshrl.u32 %v84, 3
    %v86 = vand.u32 %v84, 7
    %v87 = vsub.s32 0, %v86
    %v88 = vsel %vm82, %v87, %v86
    %vm89 = vcmp.lt.s32.totalorder %v65, 0
    %v90 = vsub.s32 0, %v65
    %v91 = vsel %vm89, %v90, %v65
    %v92 = vshrl.u32 %v91, 3
    %v93 = vand.u32 %v91, 7
    %v94 = vsub.s32 0, %v93
    %v95 = vsel %vm89, %v94, %v93
    %vm96 = vcmp.lt.s32.totalorder %v66, 0
    %v97 = vsub.s32 0, %v66
    %v98 = vsel %vm96, %v97, %v66
    %v99 = vshrl.u32 %v98, 3
    %v100 = vand.u32 %v98, 7
    %v101 = vsub.s32 0, %v100
    %v102 = vsel %vm96, %v101, %v100
    %vm103 = vcmp.lt.s32.totalorder %v67, 0
    %v104 = vsub.s32 0, %v67
    %v105 = vsel %vm103, %v104, %v67
    %v106 = vshrl.u32 %v105, 3
    %v107 = vand.u32 %v105, 7
    %v108 = vsub.s32 0, %v107
    %v109 = vsel %vm103, %v108, %v107
    %vm110 = vcmp.ne.s32.totalorder %v74, 0
    %vm111 = vcmp.ne.s32.totalorder %v81, 0
    %vm112 = vcmp.ne.s32.totalorder %v88, 0
    %vm113 = vcmp.ne.s32.totalorder %v95, 0
    %vm114 = vcmp.ne.s32.totalorder %v102, 0
    %vm115 = vcmp.ne.s32.totalorder %v109, 0
    %vm116 = vcmp.lt.s32.totalorder %v74, 0
    %vm117 = vcmp.lt.s32.totalorder %v81, 0
    %vm118 = vcmp.lt.s32.totalorder %v88, 0
    %vm119 = vcmp.lt.s32.totalorder %v95, 0
    %vm120 = vcmp.lt.s32.totalorder %v102, 0
    %vm121 = vcmp.lt.s32.totalorder %v109, 0
    %vm122 = vmand %vm116, %vm110
    %vm123 = vmand %vm117, %vm111
    %vm124 = vmand %vm118, %vm112
    %vm125 = vmand %vm119, %vm113
    %vm126 = vmand %vm120, %vm114
    %vm127 = vmand %vm121, %vm115
    %v128 = vadd.s32 %v74, 8
    %v129 = vadd.s32 %v81, 8
    %v130 = vadd.s32 %v88, 8
    %v131 = vadd.s32 %v95, 8
    %v132 = vadd.s32 %v102, 8
    %v133 = vadd.s32 %v109, 8
    %v134 = vsel %vm122, %v128, %v74
    %v135 = vsel %vm123, %v129, %v81
    %v136 = vsel %vm124, %v130, %v88
    %v137 = vsel %vm125, %v131, %v95
    %v138 = vsel %vm126, %v132, %v102
    %v139 = vsel %vm127, %v133, %v109
    %vm140 = vcmp.lt.s32.totalorder %v134, 6
    %vm141 = vcmp.lt.s32.totalorder %v135, 6
    %vm142 = vcmp.lt.s32.totalorder %v136, 6
    %vm143 = vcmp.lt.s32.totalorder %v137, 6
    %vm144 = vcmp.lt.s32.totalorder %v138, 6
    %vm145 = vcmp.lt.s32.totalorder %v139, 6
    %s146 = smul.u32 %s51, 8
    %s147 = sadd.s32 %s52, %s146
    %s148 = smul.addr %s147, 4
    %s149 = scalar_lea.vmem [#allocation2], %s148
    %v150 = vld [vmem:[%s149] sm:$0xf]
    %v151 = vld [vmem:[%s149 + $0x4] sm:$0xf]
    %v152 = vld [vmem:[%s149 + $0x8] sm:$0xf]
    %v153 = vld [vmem:[%s149 + $0xc] sm:$0xf]
    %v154 = vld [vmem:[%s149 + $0x10] sm:$0xf]
    %v155 = vld [vmem:[%s149 + $0x14] sm:$0xf]
    %v156 = vld [vmem:[#allocation5] sm:$0xf]
    %v157 = vld [vmem:[#allocation5 + $0x4] sm:$0xf]
    %v158 = vld [vmem:[#allocation5 + $0x8] sm:$0xf]
    %s159 = sadd.s32 %s52, 1
    %s160 = sadd.s32 %s159, %s146
    %s161 = smul.addr %s160, 4
    %s162 = scalar_lea.vmem [#allocation2], %s161
    %v163 = vld [vmem:[%s162] sm:$0xf]
    %v164 = vld [vmem:[%s162 + $0x4] sm:$0xf]
    %v165 = vld [vmem:[%s162 + $0x8] sm:$0xf]
    %v166 = vld [vmem:[%s162 + $0xc] sm:$0xf]
    %v167 = vld [vmem:[%s162 + $0x10] sm:$0xf]
    %v168 = vld [vmem:[%s162 + $0x14] sm:$0xf]
    %s169 = scalar_lea.vmem [#allocation5], 12
    %v170 = vld [vmem:[%s169] sm:$0xf]
    %v171 = vld [vmem:[%s169 + $0x4] sm:$0xf]
    %v172 = vld [vmem:[%s169 + $0x8] sm:$0xf]
    %v179 = vunpack.c.l.b16 %v163
    %v180 = vunpack.c.l.b16 %v164
    %v181 = vunpack.c.l.b16 %v165
    %v182 = vunpack.c.l.b16 %v166
    %v183 = vunpack.c.l.b16 %v167
    %v184 = vunpack.c.l.b16 %v168
    %v185 = vpack.c.b16 %v180, %v179
    %v186 = vpack.c.b16 %v182, %v181
    %v187 = vpack.c.b16 %v184, %v183
    %v191 = vunpack.c.l.b16 %v170
    %v192 = vunpack.c.l.b16 %v171
    %v193 = vunpack.c.l.b16 %v172
    %v194 = vpack.c.b16 %v192, %v191
    %v195 = vpack.c.b16 %v193, %v193
    %vm197 = vcmask 195584
    %v199 = vsel %vm197, %v185, 0
    %v202 = vsel %vm197, %v186, 0
    %v205 = vsel %vm197, %v187, 0
    %vm207 = vcmask 1043456
    %v209 = vsel %vm207, %v195, 0
    %211 = vmatpush.bf16.msra.mxu0 0
    %212 = vmatpush.bf16.msra.mxu0 0
    %213 = vmatpush.bf16.msra.mxu0 0
    %214 = vmatpush.bf16.msra.mxu0 0
    %215 = vmatpush.bf16.msra.mxu0 0
    %216 = vmatpush.bf16.msra.mxu0 0
    %217 = vmatpush.bf16.msra.mxu0 %v209
    %218 = vmatpush.bf16.msra.mxu0 %v194
    %219 = vmatmul.bf16.gmra.mxu0 %v199
    %v220 = vpop.f32.mrf.mxu0
    %v221 = vadd.f32 0.0, %v220
    %v222 = vpop.f32.mrf.mxu0
    %v223 = vadd.f32 0.0, %v222
    %224 = vmatmul.bf16.gmra.mxu0 %v202
    %v225 = vpop.f32.mrf.mxu0
    %v226 = vadd.f32 0.0, %v225
    %v227 = vpop.f32.mrf.mxu0
    %v228 = vadd.f32 0.0, %v227
    %229 = vmatmul.bf16.gmra.mxu0 %v205
    %v230 = vpop.f32.mrf.mxu0
    %v231 = vadd.f32 0.0, %v230
    %v232 = vpop.f32.mrf.mxu0
    %v233 = vadd.f32 0.0, %v232
    %234 = vdwg.mxu0
    %v241 = vunpack.c.l.b16 %v150
    %v242 = vunpack.c.l.b16 %v151
    %v243 = vunpack.c.l.b16 %v152
    %v244 = vunpack.c.l.b16 %v153
    %v245 = vunpack.c.l.b16 %v154
    %v246 = vunpack.c.l.b16 %v155
    %v247 = vpack.c.b16 %v242, %v241
    %v248 = vpack.c.b16 %v244, %v243
    %v249 = vpack.c.b16 %v246, %v245
    %v253 = vunpack.c.l.b16 %v156
    %v254 = vunpack.c.l.b16 %v157
    %v255 = vunpack.c.l.b16 %v158
    %v256 = vpack.c.b16 %v254, %v253
    %v257 = vpack.c.b16 %v255, %v255
    %v260 = vsel %vm197, %v247, 0
    %v263 = vsel %vm197, %v248, 0
    %v266 = vsel %vm197, %v249, 0
    %v269 = vsel %vm207, %v257, 0
    %271 = vmatpush.bf16.msra.mxu0 0
    %272 = vmatpush.bf16.msra.mxu0 0
    %273 = vmatpush.bf16.msra.mxu0 0
    %274 = vmatpush.bf16.msra.mxu0 0
    %275 = vmatpush.bf16.msra.mxu0 0
    %276 = vmatpush.bf16.msra.mxu0 0
    %277 = vmatpush.bf16.msra.mxu0 %v269
    %278 = vmatpush.bf16.msra.mxu0 %v256
    %279 = vmatmul.bf16.gmra.mxu0 %v260
    %v280 = vpop.f32.mrf.mxu0
    %v281 = vadd.f32 %v221, %v280
    %v282 = vpop.f32.mrf.mxu0
    %v283 = vadd.f32 %v223, %v282
    %284 = vmatmul.bf16.gmra.mxu0 %v263
    %v285 = vpop.f32.mrf.mxu0
    %v286 = vadd.f32 %v226, %v285
    %v287 = vpop.f32.mrf.mxu0
    %v288 = vadd.f32 %v228, %v287
    %289 = vmatmul.bf16.gmra.mxu0 %v266
    %v290 = vpop.f32.mrf.mxu0
    %v291 = vadd.f32 %v231, %v290
    %v292 = vpop.f32.mrf.mxu0
    %v293 = vadd.f32 %v233, %v292
    %294 = vdwg.mxu0
    %s295 = sadd.s32 %s52, 2
    %s296 = sadd.s32 %s295, %s146
    %s297 = smul.addr %s296, 4
    %s298 = scalar_lea.vmem [#allocation2], %s297
    %v299 = vld [vmem:[%s298] sm:$0xf]
    %v300 = vld [vmem:[%s298 + $0x4] sm:$0xf]
    %v301 = vld [vmem:[%s298 + $0x8] sm:$0xf]
    %v302 = vld [vmem:[%s298 + $0xc] sm:$0xf]
    %v303 = vld [vmem:[%s298 + $0x10] sm:$0xf]
    %v304 = vld [vmem:[%s298 + $0x14] sm:$0xf]
    %s305 = scalar_lea.vmem [#allocation5], 24
    %v306 = vld [vmem:[%s305] sm:$0xf]
    %v307 = vld [vmem:[%s305 + $0x4] sm:$0xf]
    %v308 = vld [vmem:[%s305 + $0x8] sm:$0xf]
    %v315 = vunpack.c.l.b16 %v299
    %v316 = vunpack.c.l.b16 %v300
    %v317 = vunpack.c.l.b16 %v301
    %v318 = vunpack.c.l.b16 %v302
    %v319 = vunpack.c.l.b16 %v303
    %v320 = vunpack.c.l.b16 %v304
    %v321 = vpack.c.b16 %v316, %v315
    %v322 = vpack.c.b16 %v318, %v317
    %v323 = vpack.c.b16 %v320, %v319
    %v327 = vunpack.c.l.b16 %v306
    %v328 = vunpack.c.l.b16 %v307
    %v329 = vunpack.c.l.b16 %v308
    %v330 = vpack.c.b16 %v328, %v327
    %v331 = vpack.c.b16 %v329, %v329
    %v334 = vsel %vm197, %v321, 0
    %v337 = vsel %vm197, %v322, 0
    %v340 = vsel %vm197, %v323, 0
    %v343 = vsel %vm207, %v331, 0
    %345 = vmatpush.bf16.msra.mxu0 0
    %346 = vmatpush.bf16.msra.mxu0 0
    %347 = vmatpush.bf16.msra.mxu0 0
    %348 = vmatpush.bf16.msra.mxu0 0
    %349 = vmatpush.bf16.msra.mxu0 0
    %350 = vmatpush.bf16.msra.mxu0 0
    %351 = vmatpush.bf16.msra.mxu0 %v343
    %352 = vmatpush.bf16.msra.mxu0 %v330
    %353 = vmatmul.bf16.gmra.mxu0 %v334
    %v354 = vpop.f32.mrf.mxu0
    %v355 = vadd.f32 0.0, %v354
    %v356 = vpop.f32.mrf.mxu0
    %v357 = vadd.f32 0.0, %v356
    %358 = vmatmul.bf16.gmra.mxu0 %v337
    %v359 = vpop.f32.mrf.mxu0
    %v360 = vadd.f32 0.0, %v359
    %v361 = vpop.f32.mrf.mxu0
    %v362 = vadd.f32 0.0, %v361
    %363 = vmatmul.bf16.gmra.mxu0 %v340
    %v364 = vpop.f32.mrf.mxu0
    %v365 = vadd.f32 0.0, %v364
    %v366 = vpop.f32.mrf.mxu0
    %v367 = vadd.f32 0.0, %v366
    %368 = vdwg.mxu0
    %v369 = vadd.f32 %v281, %v355
    %v370 = vadd.f32 %v283, %v357
    %v371 = vadd.f32 %v286, %v360
    %v372 = vadd.f32 %v288, %v362
    %v373 = vadd.f32 %v291, %v365
    %v374 = vadd.f32 %v293, %v367
    %s375 = sadd.s32 %s51, 1
    %s376 = smul.u32 %s375, 8
    %s377 = sadd.s32 %s52, %s376
    %s378 = smul.addr %s377, 4
    %s379 = scalar_lea.vmem [#allocation2], %s378
    %v380 = vld [vmem:[%s379] sm:$0xf]
    %v381 = vld [vmem:[%s379 + $0x4] sm:$0xf]
    %v382 = vld [vmem:[%s379 + $0x8] sm:$0xf]
    %v383 = vld [vmem:[%s379 + $0xc] sm:$0xf]
    %v384 = vld [vmem:[%s379 + $0x10] sm:$0xf]
    %v385 = vld [vmem:[%s379 + $0x14] sm:$0xf]
    %s386 = scalar_lea.vmem [#allocation5], 36
    %v387 = vld [vmem:[%s386] sm:$0xf]
    %v388 = vld [vmem:[%s386 + $0x4] sm:$0xf]
    %v389 = vld [vmem:[%s386 + $0x8] sm:$0xf]
    %v396 = vunpack.c.l.b16 %v380
    %v397 = vunpack.c.l.b16 %v381
    %v398 = vunpack.c.l.b16 %v382
    %v399 = vunpack.c.l.b16 %v383
    %v400 = vunpack.c.l.b16 %v384
    %v401 = vunpack.c.l.b16 %v385
    %v402 = vpack.c.b16 %v397, %v396
    %v403 = vpack.c.b16 %v399, %v398
    %v404 = vpack.c.b16 %v401, %v400
    %v408 = vunpack.c.l.b16 %v387
    %v409 = vunpack.c.l.b16 %v388
    %v410 = vunpack.c.l.b16 %v389
    %v411 = vpack.c.b16 %v409, %v408
    %v412 = vpack.c.b16 %v410, %v410
    %v415 = vsel %vm197, %v402, 0
    %v418 = vsel %vm197, %v403, 0
    %v421 = vsel %vm197, %v404, 0
    %v424 = vsel %vm207, %v412, 0
    %426 = vmatpush.bf16.msra.mxu0 0
    %427 = vmatpush.bf16.msra.mxu0 0
    %428 = vmatpush.bf16.msra.mxu0 0
    %429 = vmatpush.bf16.msra.mxu0 0
    %430 = vmatpush.bf16.msra.mxu0 0
    %431 = vmatpush.bf16.msra.mxu0 0
    %432 = vmatpush.bf16.msra.mxu0 %v424
    %433 = vmatpush.bf16.msra.mxu0 %v411
    %434 = vmatmul.bf16.gmra.mxu0 %v415
    %v435 = vpop.f32.mrf.mxu0
    %v436 = vadd.f32 0.0, %v435
    %v437 = vpop.f32.mrf.mxu0
    %v438 = vadd.f32 0.0, %v437
    %439 = vmatmul.bf16.gmra.mxu0 %v418
    %v440 = vpop.f32.mrf.mxu0
    %v441 = vadd.f32 0.0, %v440
    %v442 = vpop.f32.mrf.mxu0
    %v443 = vadd.f32 0.0, %v442
    %444 = vmatmul.bf16.gmra.mxu0 %v421
    %v445 = vpop.f32.mrf.mxu0
    %v446 = vadd.f32 0.0, %v445
    %v447 = vpop.f32.mrf.mxu0
    %v448 = vadd.f32 0.0, %v447
    %449 = vdwg.mxu0
    %v450 = vadd.f32 %v369, %v436
    %v451 = vadd.f32 %v370, %v438
    %v452 = vadd.f32 %v371, %v441
    %v453 = vadd.f32 %v372, %v443
    %v454 = vadd.f32 %v373, %v446
    %v455 = vadd.f32 %v374, %v448
    %s456 = sadd.s32 %s159, %s376
    %s457 = smul.addr %s456, 4
    %s458 = scalar_lea.vmem [#allocation2], %s457
    %v459 = vld [vmem:[%s458] sm:$0xf]
    %v460 = vld [vmem:[%s458 + $0x4] sm:$0xf]
    %v461 = vld [vmem:[%s458 + $0x8] sm:$0xf]
    %v462 = vld [vmem:[%s458 + $0xc] sm:$0xf]
    %v463 = vld [vmem:[%s458 + $0x10] sm:$0xf]
    %v464 = vld [vmem:[%s458 + $0x14] sm:$0xf]
    %s465 = scalar_lea.vmem [#allocation5], 48
    %v466 = vld [vmem:[%s465] sm:$0xf]
    %v467 = vld [vmem:[%s465 + $0x4] sm:$0xf]
    %v468 = vld [vmem:[%s465 + $0x8] sm:$0xf]
    %v475 = vunpack.c.l.b16 %v459
    %v476 = vunpack.c.l.b16 %v460
    %v477 = vunpack.c.l.b16 %v461
    %v478 = vunpack.c.l.b16 %v462
    %v479 = vunpack.c.l.b16 %v463
    %v480 = vunpack.c.l.b16 %v464
    %v481 = vpack.c.b16 %v476, %v475
    %v482 = vpack.c.b16 %v478, %v477
    %v483 = vpack.c.b16 %v480, %v479
    %v487 = vunpack.c.l.b16 %v466
    %v488 = vunpack.c.l.b16 %v467
    %v489 = vunpack.c.l.b16 %v468
    %v490 = vpack.c.b16 %v488, %v487
    %v491 = vpack.c.b16 %v489, %v489
    %v494 = vsel %vm197, %v481, 0
    %v497 = vsel %vm197, %v482, 0
    %v500 = vsel %vm197, %v483, 0
    %v503 = vsel %vm207, %v491, 0
    %505 = vmatpush.bf16.msra.mxu0 0
    %506 = vmatpush.bf16.msra.mxu0 0
    %507 = vmatpush.bf16.msra.mxu0 0
    %508 = vmatpush.bf16.msra.mxu0 0
    %509 = vmatpush.bf16.msra.mxu0 0
    %510 = vmatpush.bf16.msra.mxu0 0
    %511 = vmatpush.bf16.msra.mxu0 %v503
    %512 = vmatpush.bf16.msra.mxu0 %v490
    %513 = vmatmul.bf16.gmra.mxu0 %v494
    %v514 = vpop.f32.mrf.mxu0
    %v515 = vadd.f32 0.0, %v514
    %v516 = vpop.f32.mrf.mxu0
    %v517 = vadd.f32 0.0, %v516
    %518 = vmatmul.bf16.gmra.mxu0 %v497
    %v519 = vpop.f32.mrf.mxu0
    %v520 = vadd.f32 0.0, %v519
    %v521 = vpop.f32.mrf.mxu0
    %v522 = vadd.f32 0.0, %v521
    %523 = vmatmul.bf16.gmra.mxu0 %v500
    %v524 = vpop.f32.mrf.mxu0
    %v525 = vadd.f32 0.0, %v524
    %v526 = vpop.f32.mrf.mxu0
    %v527 = vadd.f32 0.0, %v526
    %528 = vdwg.mxu0
    %v529 = vadd.f32 %v450, %v515
    %v530 = vadd.f32 %v451, %v517
    %v531 = vadd.f32 %v452, %v520
    %v532 = vadd.f32 %v453, %v522
    %v533 = vadd.f32 %v454, %v525
    %v534 = vadd.f32 %v455, %v527
    %s535 = sadd.s32 %s295, %s376
    %s536 = smul.addr %s535, 4
    %s537 = scalar_lea.vmem [#allocation2], %s536
    %v538 = vld [vmem:[%s537] sm:$0xf]
    %v539 = vld [vmem:[%s537 + $0x4] sm:$0xf]
    %v540 = vld [vmem:[%s537 + $0x8] sm:$0xf]
    %v541 = vld [vmem:[%s537 + $0xc] sm:$0xf]
    %v542 = vld [vmem:[%s537 + $0x10] sm:$0xf]
    %v543 = vld [vmem:[%s537 + $0x14] sm:$0xf]
    %s544 = scalar_lea.vmem [#allocation5], 60
    %v545 = vld [vmem:[%s544] sm:$0xf]
    %v546 = vld [vmem:[%s544 + $0x4] sm:$0xf]
    %v547 = vld [vmem:[%s544 + $0x8] sm:$0xf]
    %v554 = vunpack.c.l.b16 %v538
    %v555 = vunpack.c.l.b16 %v539
    %v556 = vunpack.c.l.b16 %v540
    %v557 = vunpack.c.l.b16 %v541
    %v558 = vunpack.c.l.b16 %v542
    %v559 = vunpack.c.l.b16 %v543
    %v560 = vpack.c.b16 %v555, %v554
    %v561 = vpack.c.b16 %v557, %v556
    %v562 = vpack.c.b16 %v559, %v558
    %v566 = vunpack.c.l.b16 %v545
    %v567 = vunpack.c.l.b16 %v546
    %v568 = vunpack.c.l.b16 %v547
    %v569 = vpack.c.b16 %v567, %v566
    %v570 = vpack.c.b16 %v568, %v568
    %v573 = vsel %vm197, %v560, 0
    %v576 = vsel %vm197, %v561, 0
    %v579 = vsel %vm197, %v562, 0
    %v582 = vsel %vm207, %v570, 0
    %584 = vmatpush.bf16.msra.mxu0 0
    %585 = vmatpush.bf16.msra.mxu0 0
    %586 = vmatpush.bf16.msra.mxu0 0
    %587 = vmatpush.bf16.msra.mxu0 0
    %588 = vmatpush.bf16.msra.mxu0 0
    %589 = vmatpush.bf16.msra.mxu0 0
    %590 = vmatpush.bf16.msra.mxu0 %v582
    %591 = vmatpush.bf16.msra.mxu0 %v569
    %592 = vmatmul.bf16.gmra.mxu0 %v573
    %v593 = vpop.f32.mrf.mxu0
    %v594 = vadd.f32 0.0, %v593
    %v595 = vpop.f32.mrf.mxu0
    %v596 = vadd.f32 0.0, %v595
    %597 = vmatmul.bf16.gmra.mxu0 %v576
    %v598 = vpop.f32.mrf.mxu0
    %v599 = vadd.f32 0.0, %v598
    %v600 = vpop.f32.mrf.mxu0
    %v601 = vadd.f32 0.0, %v600
    %602 = vmatmul.bf16.gmra.mxu0 %v579
    %v603 = vpop.f32.mrf.mxu0
    %v604 = vadd.f32 0.0, %v603
    %v605 = vpop.f32.mrf.mxu0
    %v606 = vadd.f32 0.0, %v605
    %607 = vdwg.mxu0
    %v608 = vadd.f32 %v529, %v594
    %v609 = vadd.f32 %v530, %v596
    %v610 = vadd.f32 %v531, %v599
    %v611 = vadd.f32 %v532, %v601
    %v612 = vadd.f32 %v533, %v604
    %v613 = vadd.f32 %v534, %v606
    %s614 = sadd.s32 %s51, 2
    %s615 = smul.u32 %s614, 8
    %s616 = sadd.s32 %s52, %s615
    %s617 = smul.addr %s616, 4
    %s618 = scalar_lea.vmem [#allocation2], %s617
    %v619 = vld [vmem:[%s618] sm:$0xf]
    %v620 = vld [vmem:[%s618 + $0x4] sm:$0xf]
    %v621 = vld [vmem:[%s618 + $0x8] sm:$0xf]
    %v622 = vld [vmem:[%s618 + $0xc] sm:$0xf]
    %v623 = vld [vmem:[%s618 + $0x10] sm:$0xf]
    %v624 = vld [vmem:[%s618 + $0x14] sm:$0xf]
    %s625 = scalar_lea.vmem [#allocation5], 72
    %v626 = vld [vmem:[%s625] sm:$0xf]
    %v627 = vld [vmem:[%s625 + $0x4] sm:$0xf]
    %v628 = vld [vmem:[%s625 + $0x8] sm:$0xf]
    %v635 = vunpack.c.l.b16 %v619
    %v636 = vunpack.c.l.b16 %v620
    %v637 = vunpack.c.l.b16 %v621
    %v638 = vunpack.c.l.b16 %v622
    %v639 = vunpack.c.l.b16 %v623
    %v640 = vunpack.c.l.b16 %v624
    %v641 = vpack.c.b16 %v636, %v635
    %v642 = vpack.c.b16 %v638, %v637
    %v643 = vpack.c.b16 %v640, %v639
    %v647 = vunpack.c.l.b16 %v626
    %v648 = vunpack.c.l.b16 %v627
    %v649 = vunpack.c.l.b16 %v628
    %v650 = vpack.c.b16 %v648, %v647
    %v651 = vpack.c.b16 %v649, %v649
    %v654 = vsel %vm197, %v641, 0
    %v657 = vsel %vm197, %v642, 0
    %v660 = vsel %vm197, %v643, 0
    %v663 = vsel %vm207, %v651, 0
    %665 = vmatpush.bf16.msra.mxu0 0
    %666 = vmatpush.bf16.msra.mxu0 0
    %667 = vmatpush.bf16.msra.mxu0 0
    %668 = vmatpush.bf16.msra.mxu0 0
    %669 = vmatpush.bf16.msra.mxu0 0
    %670 = vmatpush.bf16.msra.mxu0 0
    %671 = vmatpush.bf16.msra.mxu0 %v663
    %672 = vmatpush.bf16.msra.mxu0 %v650
    %673 = vmatmul.bf16.gmra.mxu0 %v654
    %v674 = vpop.f32.mrf.mxu0
    %v675 = vadd.f32 0.0, %v674
    %v676 = vpop.f32.mrf.mxu0
    %v677 = vadd.f32 0.0, %v676
    %678 = vmatmul.bf16.gmra.mxu0 %v657
    %v679 = vpop.f32.mrf.mxu0
    %v680 = vadd.f32 0.0, %v679
    %v681 = vpop.f32.mrf.mxu0
    %v682 = vadd.f32 0.0, %v681
    %683 = vmatmul.bf16.gmra.mxu0 %v660
    %v684 = vpop.f32.mrf.mxu0
    %v685 = vadd.f32 0.0, %v684
    %v686 = vpop.f32.mrf.mxu0
    %v687 = vadd.f32 0.0, %v686
    %688 = vdwg.mxu0
    %v689 = vadd.f32 %v608, %v675
    %v690 = vadd.f32 %v609, %v677
    %v691 = vadd.f32 %v610, %v680
    %v692 = vadd.f32 %v611, %v682
    %v693 = vadd.f32 %v612, %v685
    %v694 = vadd.f32 %v613, %v687
    %s695 = sadd.s32 %s159, %s615
    %s696 = smul.addr %s695, 4
    %s697 = scalar_lea.vmem [#allocation2], %s696
    %v698 = vld [vmem:[%s697] sm:$0xf]
    %v699 = vld [vmem:[%s697 + $0x4] sm:$0xf]
    %v700 = vld [vmem:[%s697 + $0x8] sm:$0xf]
    %v701 = vld [vmem:[%s697 + $0xc] sm:$0xf]
    %v702 = vld [vmem:[%s697 + $0x10] sm:$0xf]
    %v703 = vld [vmem:[%s697 + $0x14] sm:$0xf]
    %s704 = scalar_lea.vmem [#allocation5], 84
    %v705 = vld [vmem:[%s704] sm:$0xf]
    %v706 = vld [vmem:[%s704 + $0x4] sm:$0xf]
    %v707 = vld [vmem:[%s704 + $0x8] sm:$0xf]
    %v714 = vunpack.c.l.b16 %v698
    %v715 = vunpack.c.l.b16 %v699
    %v716 = vunpack.c.l.b16 %v700
    %v717 = vunpack.c.l.b16 %v701
    %v718 = vunpack.c.l.b16 %v702
    %v719 = vunpack.c.l.b16 %v703
    %v720 = vpack.c.b16 %v715, %v714
    %v721 = vpack.c.b16 %v717, %v716
    %v722 = vpack.c.b16 %v719, %v718
    %v726 = vunpack.c.l.b16 %v705
    %v727 = vunpack.c.l.b16 %v706
    %v728 = vunpack.c.l.b16 %v707
    %v729 = vpack.c.b16 %v727, %v726
    %v730 = vpack.c.b16 %v728, %v728
    %v733 = vsel %vm197, %v720, 0
    %v736 = vsel %vm197, %v721, 0
    %v739 = vsel %vm197, %v722, 0
    %v742 = vsel %vm207, %v730, 0
    %744 = vmatpush.bf16.msra.mxu0 0
    %745 = vmatpush.bf16.msra.mxu0 0
    %746 = vmatpush.bf16.msra.mxu0 0
    %747 = vmatpush.bf16.msra.mxu0 0
    %748 = vmatpush.bf16.msra.mxu0 0
    %749 = vmatpush.bf16.msra.mxu0 0
    %750 = vmatpush.bf16.msra.mxu0 %v742
    %751 = vmatpush.bf16.msra.mxu0 %v729
    %752 = vmatmul.bf16.gmra.mxu0 %v733
    %v753 = vpop.f32.mrf.mxu0
    %v754 = vadd.f32 0.0, %v753
    %v755 = vpop.f32.mrf.mxu0
    %v756 = vadd.f32 0.0, %v755
    %757 = vmatmul.bf16.gmra.mxu0 %v736
    %v758 = vpop.f32.mrf.mxu0
    %v759 = vadd.f32 0.0, %v758
    %v760 = vpop.f32.mrf.mxu0
    %v761 = vadd.f32 0.0, %v760
    %762 = vmatmul.bf16.gmra.mxu0 %v739
    %v763 = vpop.f32.mrf.mxu0
    %v764 = vadd.f32 0.0, %v763
    %v765 = vpop.f32.mrf.mxu0
    %v766 = vadd.f32 0.0, %v765
    %767 = vdwg.mxu0
    %v768 = vadd.f32 %v689, %v754
    %v769 = vadd.f32 %v690, %v756
    %v770 = vadd.f32 %v691, %v759
    %v771 = vadd.f32 %v692, %v761
    %v772 = vadd.f32 %v693, %v764
    %v773 = vadd.f32 %v694, %v766
    %s774 = sadd.s32 %s295, %s615
    %s775 = smul.addr %s774, 4
    %s776 = scalar_lea.vmem [#allocation2], %s775
    %v777 = vld [vmem:[%s776] sm:$0xf]
    %v778 = vld [vmem:[%s776 + $0x4] sm:$0xf]
    %v779 = vld [vmem:[%s776 + $0x8] sm:$0xf]
    %v780 = vld [vmem:[%s776 + $0xc] sm:$0xf]
    %v781 = vld [vmem:[%s776 + $0x10] sm:$0xf]
    %v782 = vld [vmem:[%s776 + $0x14] sm:$0xf]
    %s783 = scalar_lea.vmem [#allocation5], 96
    %v784 = vld [vmem:[%s783] sm:$0xf]
    %v785 = vld [vmem:[%s783 + $0x4] sm:$0xf]
    %v786 = vld [vmem:[%s783 + $0x8] sm:$0xf]
    %v793 = vunpack.c.l.b16 %v777
    %v794 = vunpack.c.l.b16 %v778
    %v795 = vunpack.c.l.b16 %v779
    %v796 = vunpack.c.l.b16 %v780
    %v797 = vunpack.c.l.b16 %v781
    %v798 = vunpack.c.l.b16 %v782
    %v799 = vpack.c.b16 %v794, %v793
    %v800 = vpack.c.b16 %v796, %v795
    %v801 = vpack.c.b16 %v798, %v797
    %v805 = vunpack.c.l.b16 %v784
    %v806 = vunpack.c.l.b16 %v785
    %v807 = vunpack.c.l.b16 %v786
    %v808 = vpack.c.b16 %v806, %v805
    %v809 = vpack.c.b16 %v807, %v807
    %v812 = vsel %vm197, %v799, 0
    %v815 = vsel %vm197, %v800, 0
    %v818 = vsel %vm197, %v801, 0
    %v821 = vsel %vm207, %v809, 0
    %823 = vmatpush.bf16.msra.mxu0 0
    %824 = vmatpush.bf16.msra.mxu0 0
    %825 = vmatpush.bf16.msra.mxu0 0
    %826 = vmatpush.bf16.msra.mxu0 0
    %827 = vmatpush.bf16.msra.mxu0 0
    %828 = vmatpush.bf16.msra.mxu0 0
    %829 = vmatpush.bf16.msra.mxu0 %v821
    %830 = vmatpush.bf16.msra.mxu0 %v808
    %831 = vmatmul.bf16.gmra.mxu0 %v812
    %v832 = vpop.f32.mrf.mxu0
    %v833 = vadd.f32 0.0, %v832
    %v834 = vpop.f32.mrf.mxu0
    %v835 = vadd.f32 0.0, %v834
    %836 = vmatmul.bf16.gmra.mxu0 %v815
    %v837 = vpop.f32.mrf.mxu0
    %v838 = vadd.f32 0.0, %v837
    %v839 = vpop.f32.mrf.mxu0
    %v840 = vadd.f32 0.0, %v839
    %841 = vmatmul.bf16.gmra.mxu0 %v818
    %v842 = vpop.f32.mrf.mxu0
    %v843 = vadd.f32 0.0, %v842
    %v844 = vpop.f32.mrf.mxu0
    %v845 = vadd.f32 0.0, %v844
    %846 = vdwg.mxu0
    %v847 = vadd.f32 %v768, %v833
    %v848 = vadd.f32 %v769, %v835
    %v849 = vadd.f32 %v770, %v838
    %v850 = vadd.f32 %v771, %v840
    %v851 = vadd.f32 %v772, %v843
    %v852 = vadd.f32 %v773, %v845
    %v854 = vperm.slane %v53, 0
    %v856 = vadd.f32 %v847, %v854
    %v857 = vadd.f32 %v848, %v854
    %v858 = vadd.f32 %v849, %v854
    %v859 = vadd.f32 %v850, %v854
    %v860 = vadd.f32 %v851, %v854
    %v861 = vadd.f32 %v852, %v854
    %v862 = vsel %vm140, 1, 0
    %v863 = vsel %vm141, 1, 0
    %v864 = vsel %vm142, 1, 0
    %v865 = vsel %vm143, 1, 0
    %v866 = vsel %vm144, 1, 0
    %v867 = vsel %vm145, 1, 0
    %vm868 = vcmp.eq.s32.totalorder %v862, 1
    %vm869 = vcmp.eq.s32.totalorder %v863, 1
    %vm870 = vcmp.eq.s32.totalorder %v864, 1
    %vm871 = vcmp.eq.s32.totalorder %v865, 1
    %vm872 = vcmp.eq.s32.totalorder %v866, 1
    %vm873 = vcmp.eq.s32.totalorder %v867, 1
    %v874 = vsel %vm868, %v856, 0.0
    %v875 = vsel %vm869, %v857, 0.0
    %v876 = vsel %vm870, %v858, 0.0
    %v877 = vsel %vm871, %v859, 0.0
    %v878 = vsel %vm872, %v860, 0.0
    %v879 = vsel %vm873, %v861, 0.0
    %v880 = vadd.f32 %v874, %v875
    %v881 = vadd.f32 %v880, %v876
    %v882 = vadd.f32 %v881, %v877
    %v883 = vadd.f32 %v882, %v878
    %v884 = vadd.f32 %v883, %v879
    %v885 = vrot.slane %v884, 4
    %v886 = vadd.f32 %v884, %v885
    %v887 = vrot.slane %v886, 2
    %v888 = vadd.f32 %v886, %v887
    %v889 = vrot.slane %v888, 1
    %v890 = vadd.f32 %v888, %v889
    %v891 = vadd.f32 %v890, 0.0
    %v892 = vmul.f32 %v874, %v874
    %v893 = vmul.f32 %v875, %v875
    %v894 = vmul.f32 %v876, %v876
    %v895 = vmul.f32 %v877, %v877
    %v896 = vmul.f32 %v878, %v878
    %v897 = vmul.f32 %v879, %v879
    %v898 = vadd.f32 %v892, %v893
    %v899 = vadd.f32 %v898, %v894
    %v900 = vadd.f32 %v899, %v895
    %v901 = vadd.f32 %v900, %v896
    %v902 = vadd.f32 %v901, %v897
    %v903 = vrot.slane %v902, 4
    %v904 = vadd.f32 %v902, %v903
    %v905 = vrot.slane %v904, 2
    %v906 = vadd.f32 %v904, %v905
    %v907 = vrot.slane %v906, 1
    %v908 = vadd.f32 %v906, %v907
    %v909 = vadd.f32 %v908, 0.0
    %910 = vst [vmem:[#allocation7] sm:$0xff] %v856
    %911 = vst [vmem:[#allocation7 + $0x8] sm:$0xff] %v857
    %912 = vst [vmem:[#allocation7 + $0x10] sm:$0xff] %v858
    %913 = vst [vmem:[#allocation7 + $0x18] sm:$0xff] %v859
    %914 = vst [vmem:[#allocation7 + $0x20] sm:$0xff] %v860
    %915 = vst [vmem:[#allocation7 + $0x28] sm:$0xff] %v861
    %v916 = vld [vmem:[%s379] sm:$0xf]
    %v917 = vld [vmem:[%s379 + $0x4] sm:$0xf]
    %v918 = vld [vmem:[%s379 + $0x8] sm:$0xf]
    %v919 = vld [vmem:[%s379 + $0xc] sm:$0xf]
    %v920 = vld [vmem:[%s379 + $0x10] sm:$0xf]
    %v921 = vld [vmem:[%s379 + $0x14] sm:$0xf]
    %v922 = vld [vmem:[#allocation5] sm:$0xf]
    %v923 = vld [vmem:[#allocation5 + $0x4] sm:$0xf]
    %v924 = vld [vmem:[#allocation5 + $0x8] sm:$0xf]
    %v925 = vld [vmem:[%s458] sm:$0xf]
    %v926 = vld [vmem:[%s458 + $0x4] sm:$0xf]
    %v927 = vld [vmem:[%s458 + $0x8] sm:$0xf]
    %v928 = vld [vmem:[%s458 + $0xc] sm:$0xf]
    %v929 = vld [vmem:[%s458 + $0x10] sm:$0xf]
    %v930 = vld [vmem:[%s458 + $0x14] sm:$0xf]
    %v931 = vld [vmem:[%s169] sm:$0xf]
    %v932 = vld [vmem:[%s169 + $0x4] sm:$0xf]
    %v933 = vld [vmem:[%s169 + $0x8] sm:$0xf]
    %v940 = vunpack.c.l.b16 %v925
    %v941 = vunpack.c.l.b16 %v926
    %v942 = vunpack.c.l.b16 %v927
    %v943 = vunpack.c.l.b16 %v928
    %v944 = vunpack.c.l.b16 %v929
    %v945 = vunpack.c.l.b16 %v930
    %v946 = vpack.c.b16 %v941, %v940
    %v947 = vpack.c.b16 %v943, %v942
    %v948 = vpack.c.b16 %v945, %v944
    %v952 = vunpack.c.l.b16 %v931
    %v953 = vunpack.c.l.b16 %v932
    %v954 = vunpack.c.l.b16 %v933
    %v955 = vpack.c.b16 %v953, %v952
    %v956 = vpack.c.b16 %v954, %v954
    %v959 = vsel %vm197, %v946, 0
    %v962 = vsel %vm197, %v947, 0
    %v965 = vsel %vm197, %v948, 0
    %v968 = vsel %vm207, %v956, 0
    %970 = vmatpush.bf16.msra.mxu0 0
    %971 = vmatpush.bf16.msra.mxu0 0
    %972 = vmatpush.bf16.msra.mxu0 0
    %973 = vmatpush.bf16.msra.mxu0 0
    %974 = vmatpush.bf16.msra.mxu0 0
    %975 = vmatpush.bf16.msra.mxu0 0
    %976 = vmatpush.bf16.msra.mxu0 %v968
    %977 = vmatpush.bf16.msra.mxu0 %v955
    %978 = vmatmul.bf16.gmra.mxu0 %v959
    %v979 = vpop.f32.mrf.mxu0
    %v980 = vadd.f32 0.0, %v979
    %v981 = vpop.f32.mrf.mxu0
    %v982 = vadd.f32 0.0, %v981
    %983 = vmatmul.bf16.gmra.mxu0 %v962
    %v984 = vpop.f32.mrf.mxu0
    %v985 = vadd.f32 0.0, %v984
    %v986 = vpop.f32.mrf.mxu0
    %v987 = vadd.f32 0.0, %v986
    %988 = vmatmul.bf16.gmra.mxu0 %v965
    %v989 = vpop.f32.mrf.mxu0
    %v990 = vadd.f32 0.0, %v989
    %v991 = vpop.f32.mrf.mxu0
    %v992 = vadd.f32 0.0, %v991
    %993 = vdwg.mxu0
    %v1000 = vunpack.c.l.b16 %v916
    %v1001 = vunpack.c.l.b16 %v917
    %v1002 = vunpack.c.l.b16 %v918
    %v1003 = vunpack.c.l.b16 %v919
    %v1004 = vunpack.c.l.b16 %v920
    %v1005 = vunpack.c.l.b16 %v921
    %v1006 = vpack.c.b16 %v1001, %v1000
    %v1007 = vpack.c.b16 %v1003, %v1002
    %v1008 = vpack.c.b16 %v1005, %v1004
    %v1012 = vunpack.c.l.b16 %v922
    %v1013 = vunpack.c.l.b16 %v923
    %v1014 = vunpack.c.l.b16 %v924
    %v1015 = vpack.c.b16 %v1013, %v1012
    %v1016 = vpack.c.b16 %v1014, %v1014
    %v1019 = vsel %vm197, %v1006, 0
    %v1022 = vsel %vm197, %v1007, 0
    %v1025 = vsel %vm197, %v1008, 0
    %v1028 = vsel %vm207, %v1016, 0
    %1030 = vmatpush.bf16.msra.mxu0 0
    %1031 = vmatpush.bf16.msra.mxu0 0
    %1032 = vmatpush.bf16.msra.mxu0 0
    %1033 = vmatpush.bf16.msra.mxu0 0
    %1034 = vmatpush.bf16.msra.mxu0 0
    %1035 = vmatpush.bf16.msra.mxu0 0
    %1036 = vmatpush.bf16.msra.mxu0 %v1028
    %1037 = vmatpush.bf16.msra.mxu0 %v1015
    %1038 = vmatmul.bf16.gmra.mxu0 %v1019
    %v1039 = vpop.f32.mrf.mxu0
    %v1040 = vadd.f32 %v980, %v1039
    %v1041 = vpop.f32.mrf.mxu0
    %v1042 = vadd.f32 %v982, %v1041
    %1043 = vmatmul.bf16.gmra.mxu0 %v1022
    %v1044 = vpop.f32.mrf.mxu0
    %v1045 = vadd.f32 %v985, %v1044
    %v1046 = vpop.f32.mrf.mxu0
    %v1047 = vadd.f32 %v987, %v1046
    %1048 = vmatmul.bf16.gmra.mxu0 %v1025
    %v1049 = vpop.f32.mrf.mxu0
    %v1050 = vadd.f32 %v990, %v1049
    %v1051 = vpop.f32.mrf.mxu0
    %v1052 = vadd.f32 %v992, %v1051
    %1053 = vdwg.mxu0
    %v1054 = vld [vmem:[%s537] sm:$0xf]
    %v1055 = vld [vmem:[%s537 + $0x4] sm:$0xf]
    %v1056 = vld [vmem:[%s537 + $0x8] sm:$0xf]
    %v1057 = vld [vmem:[%s537 + $0xc] sm:$0xf]
    %v1058 = vld [vmem:[%s537 + $0x10] sm:$0xf]
    %v1059 = vld [vmem:[%s537 + $0x14] sm:$0xf]
    %v1060 = vld [vmem:[%s305] sm:$0xf]
    %v1061 = vld [vmem:[%s305 + $0x4] sm:$0xf]
    %v1062 = vld [vmem:[%s305 + $0x8] sm:$0xf]
    %v1069 = vunpack.c.l.b16 %v1054
    %v1070 = vunpack.c.l.b16 %v1055
    %v1071 = vunpack.c.l.b16 %v1056
    %v1072 = vunpack.c.l.b16 %v1057
    %v1073 = vunpack.c.l.b16 %v1058
    %v1074 = vunpack.c.l.b16 %v1059
    %v1075 = vpack.c.b16 %v1070, %v1069
    %v1076 = vpack.c.b16 %v1072, %v1071
    %v1077 = vpack.c.b16 %v1074, %v1073
    %v1081 = vunpack.c.l.b16 %v1060
    %v1082 = vunpack.c.l.b16 %v1061
    %v1083 = vunpack.c.l.b16 %v1062
    %v1084 = vpack.c.b16 %v1082, %v1081
    %v1085 = vpack.c.b16 %v1083, %v1083
    %v1088 = vsel %vm197, %v1075, 0
    %v1091 = vsel %vm197, %v1076, 0
    %v1094 = vsel %vm197, %v1077, 0
    %v1097 = vsel %vm207, %v1085, 0
    %1099 = vmatpush.bf16.msra.mxu0 0
    %1100 = vmatpush.bf16.msra.mxu0 0
    %1101 = vmatpush.bf16.msra.mxu0 0
    %1102 = vmatpush.bf16.msra.mxu0 0
    %1103 = vmatpush.bf16.msra.mxu0 0
    %1104 = vmatpush.bf16.msra.mxu0 0
    %1105 = vmatpush.bf16.msra.mxu0 %v1097
    %1106 = vmatpush.bf16.msra.mxu0 %v1084
    %1107 = vmatmul.bf16.gmra.mxu0 %v1088
    %v1108 = vpop.f32.mrf.mxu0
    %v1109 = vadd.f32 0.0, %v1108
    %v1110 = vpop.f32.mrf.mxu0
    %v1111 = vadd.f32 0.0, %v1110
    %1112 = vmatmul.bf16.gmra.mxu0 %v1091
    %v1113 = vpop.f32.mrf.mxu0
    %v1114 = vadd.f32 0.0, %v1113
    %v1115 = vpop.f32.mrf.mxu0
    %v1116 = vadd.f32 0.0, %v1115
    %1117 = vmatmul.bf16.gmra.mxu0 %v1094
    %v1118 = vpop.f32.mrf.mxu0
    %v1119 = vadd.f32 0.0, %v1118
    %v1120 = vpop.f32.mrf.mxu0
    %v1121 = vadd.f32 0.0, %v1120
    %1122 = vdwg.mxu0
    %v1123 = vadd.f32 %v1040, %v1109
    %v1124 = vadd.f32 %v1042, %v1111
    %v1125 = vadd.f32 %v1045, %v1114
    %v1126 = vadd.f32 %v1047, %v1116
    %v1127 = vadd.f32 %v1050, %v1119
    %v1128 = vadd.f32 %v1052, %v1121
    %v1129 = vld [vmem:[%s618] sm:$0xf]
    %v1130 = vld [vmem:[%s618 + $0x4] sm:$0xf]
    %v1131 = vld [vmem:[%s618 + $0x8] sm:$0xf]
    %v1132 = vld [vmem:[%s618 + $0xc] sm:$0xf]
    %v1133 = vld [vmem:[%s618 + $0x10] sm:$0xf]
    %v1134 = vld [vmem:[%s618 + $0x14] sm:$0xf]
    %v1135 = vld [vmem:[%s386] sm:$0xf]
    %v1136 = vld [vmem:[%s386 + $0x4] sm:$0xf]
    %v1137 = vld [vmem:[%s386 + $0x8] sm:$0xf]
    %v1144 = vunpack.c.l.b16 %v1129
    %v1145 = vunpack.c.l.b16 %v1130
    %v1146 = vunpack.c.l.b16 %v1131
    %v1147 = vunpack.c.l.b16 %v1132
    %v1148 = vunpack.c.l.b16 %v1133
    %v1149 = vunpack.c.l.b16 %v1134
    %v1150 = vpack.c.b16 %v1145, %v1144
    %v1151 = vpack.c.b16 %v1147, %v1146
    %v1152 = vpack.c.b16 %v1149, %v1148
    %v1156 = vunpack.c.l.b16 %v1135
    %v1157 = vunpack.c.l.b16 %v1136
    %v1158 = vunpack.c.l.b16 %v1137
    %v1159 = vpack.c.b16 %v1157, %v1156
    %v1160 = vpack.c.b16 %v1158, %v1158
    %v1163 = vsel %vm197, %v1150, 0
    %v1166 = vsel %vm197, %v1151, 0
    %v1169 = vsel %vm197, %v1152, 0
    %v1172 = vsel %vm207, %v1160, 0
    %1174 = vmatpush.bf16.msra.mxu0 0
    %1175 = vmatpush.bf16.msra.mxu0 0
    %1176 = vmatpush.bf16.msra.mxu0 0
    %1177 = vmatpush.bf16.msra.mxu0 0
    %1178 = vmatpush.bf16.msra.mxu0 0
    %1179 = vmatpush.bf16.msra.mxu0 0
    %1180 = vmatpush.bf16.msra.mxu0 %v1172
    %1181 = vmatpush.bf16.msra.mxu0 %v1159
    %1182 = vmatmul.bf16.gmra.mxu0 %v1163
    %v1183 = vpop.f32.mrf.mxu0
    %v1184 = vadd.f32 0.0, %v1183
    %v1185 = vpop.f32.mrf.mxu0
    %v1186 = vadd.f32 0.0, %v1185
    %1187 = vmatmul.bf16.gmra.mxu0 %v1166
    %v1188 = vpop.f32.mrf.mxu0
    %v1189 = vadd.f32 0.0, %v1188
    %v1190 = vpop.f32.mrf.mxu0
    %v1191 = vadd.f32 0.0, %v1190
    %1192 = vmatmul.bf16.gmra.mxu0 %v1169
    %v1193 = vpop.f32.mrf.mxu0
    %v1194 = vadd.f32 0.0, %v1193
    %v1195 = vpop.f32.mrf.mxu0
    %v1196 = vadd.f32 0.0, %v1195
    %1197 = vdwg.mxu0
    %v1198 = vadd.f32 %v1123, %v1184
    %v1199 = vadd.f32 %v1124, %v1186
    %v1200 = vadd.f32 %v1125, %v1189
    %v1201 = vadd.f32 %v1126, %v1191
    %v1202 = vadd.f32 %v1127, %v1194
    %v1203 = vadd.f32 %v1128, %v1196
    %v1204 = vld [vmem:[%s697] sm:$0xf]
    %v1205 = vld [vmem:[%s697 + $0x4] sm:$0xf]
    %v1206 = vld [vmem:[%s697 + $0x8] sm:$0xf]
    %v1207 = vld [vmem:[%s697 + $0xc] sm:$0xf]
    %v1208 = vld [vmem:[%s697 + $0x10] sm:$0xf]
    %v1209 = vld [vmem:[%s697 + $0x14] sm:$0xf]
    %v1210 = vld [vmem:[%s465] sm:$0xf]
    %v1211 = vld [vmem:[%s465 + $0x4] sm:$0xf]
    %v1212 = vld [vmem:[%s465 + $0x8] sm:$0xf]
    %v1219 = vunpack.c.l.b16 %v1204
    %v1220 = vunpack.c.l.b16 %v1205
    %v1221 = vunpack.c.l.b16 %v1206
    %v1222 = vunpack.c.l.b16 %v1207
    %v1223 = vunpack.c.l.b16 %v1208
    %v1224 = vunpack.c.l.b16 %v1209
    %v1225 = vpack.c.b16 %v1220, %v1219
    %v1226 = vpack.c.b16 %v1222, %v1221
    %v1227 = vpack.c.b16 %v1224, %v1223
    %v1231 = vunpack.c.l.b16 %v1210
    %v1232 = vunpack.c.l.b16 %v1211
    %v1233 = vunpack.c.l.b16 %v1212
    %v1234 = vpack.c.b16 %v1232, %v1231
    %v1235 = vpack.c.b16 %v1233, %v1233
    %v1238 = vsel %vm197, %v1225, 0
    %v1241 = vsel %vm197, %v1226, 0
    %v1244 = vsel %vm197, %v1227, 0
    %v1247 = vsel %vm207, %v1235, 0
    %1249 = vmatpush.bf16.msra.mxu0 0
    %1250 = vmatpush.bf16.msra.mxu0 0
    %1251 = vmatpush.bf16.msra.mxu0 0
    %1252 = vmatpush.bf16.msra.mxu0 0
    %1253 = vmatpush.bf16.msra.mxu0 0
    %1254 = vmatpush.bf16.msra.mxu0 0
    %1255 = vmatpush.bf16.msra.mxu0 %v1247
    %1256 = vmatpush.bf16.msra.mxu0 %v1234
    %1257 = vmatmul.bf16.gmra.mxu0 %v1238
    %v1258 = vpop.f32.mrf.mxu0
    %v1259 = vadd.f32 0.0, %v1258
    %v1260 = vpop.f32.mrf.mxu0
    %v1261 = vadd.f32 0.0, %v1260
    %1262 = vmatmul.bf16.gmra.mxu0 %v1241
    %v1263 = vpop.f32.mrf.mxu0
    %v1264 = vadd.f32 0.0, %v1263
    %v1265 = vpop.f32.mrf.mxu0
    %v1266 = vadd.f32 0.0, %v1265
    %1267 = vmatmul.bf16.gmra.mxu0 %v1244
    %v1268 = vpop.f32.mrf.mxu0
    %v1269 = vadd.f32 0.0, %v1268
    %v1270 = vpop.f32.mrf.mxu0
    %v1271 = vadd.f32 0.0, %v1270
    %1272 = vdwg.mxu0
    %v1273 = vadd.f32 %v1198, %v1259
    %v1274 = vadd.f32 %v1199, %v1261
    %v1275 = vadd.f32 %v1200, %v1264
    %v1276 = vadd.f32 %v1201, %v1266
    %v1277 = vadd.f32 %v1202, %v1269
    %v1278 = vadd.f32 %v1203, %v1271
    %v1279 = vld [vmem:[%s776] sm:$0xf]
    %v1280 = vld [vmem:[%s776 + $0x4] sm:$0xf]
    %v1281 = vld [vmem:[%s776 + $0x8] sm:$0xf]
    %v1282 = vld [vmem:[%s776 + $0xc] sm:$0xf]
    %v1283 = vld [vmem:[%s776 + $0x10] sm:$0xf]
    %v1284 = vld [vmem:[%s776 + $0x14] sm:$0xf]
    %v1285 = vld [vmem:[%s544] sm:$0xf]
    %v1286 = vld [vmem:[%s544 + $0x4] sm:$0xf]
    %v1287 = vld [vmem:[%s544 + $0x8] sm:$0xf]
    %v1294 = vunpack.c.l.b16 %v1279
    %v1295 = vunpack.c.l.b16 %v1280
    %v1296 = vunpack.c.l.b16 %v1281
    %v1297 = vunpack.c.l.b16 %v1282
    %v1298 = vunpack.c.l.b16 %v1283
    %v1299 = vunpack.c.l.b16 %v1284
    %v1300 = vpack.c.b16 %v1295, %v1294
    %v1301 = vpack.c.b16 %v1297, %v1296
    %v1302 = vpack.c.b16 %v1299, %v1298
    %v1306 = vunpack.c.l.b16 %v1285
    %v1307 = vunpack.c.l.b16 %v1286
    %v1308 = vunpack.c.l.b16 %v1287
    %v1309 = vpack.c.b16 %v1307, %v1306
    %v1310 = vpack.c.b16 %v1308, %v1308
    %v1313 = vsel %vm197, %v1300, 0
    %v1316 = vsel %vm197, %v1301, 0
    %v1319 = vsel %vm197, %v1302, 0
    %v1322 = vsel %vm207, %v1310, 0
    %1324 = vmatpush.bf16.msra.mxu0 0
    %1325 = vmatpush.bf16.msra.mxu0 0
    %1326 = vmatpush.bf16.msra.mxu0 0
    %1327 = vmatpush.bf16.msra.mxu0 0
    %1328 = vmatpush.bf16.msra.mxu0 0
    %1329 = vmatpush.bf16.msra.mxu0 0
    %1330 = vmatpush.bf16.msra.mxu0 %v1322
    %1331 = vmatpush.bf16.msra.mxu0 %v1309
    %1332 = vmatmul.bf16.gmra.mxu0 %v1313
    %v1333 = vpop.f32.mrf.mxu0
    %v1334 = vadd.f32 0.0, %v1333
    %v1335 = vpop.f32.mrf.mxu0
    %v1336 = vadd.f32 0.0, %v1335
    %1337 = vmatmul.bf16.gmra.mxu0 %v1316
    %v1338 = vpop.f32.mrf.mxu0
    %v1339 = vadd.f32 0.0, %v1338
    %v1340 = vpop.f32.mrf.mxu0
    %v1341 = vadd.f32 0.0, %v1340
    %1342 = vmatmul.bf16.gmra.mxu0 %v1319
    %v1343 = vpop.f32.mrf.mxu0
    %v1344 = vadd.f32 0.0, %v1343
    %v1345 = vpop.f32.mrf.mxu0
    %v1346 = vadd.f32 0.0, %v1345
    %1347 = vdwg.mxu0
    %v1348 = vadd.f32 %v1273, %v1334
    %v1349 = vadd.f32 %v1274, %v1336
    %v1350 = vadd.f32 %v1275, %v1339
    %v1351 = vadd.f32 %v1276, %v1341
    %v1352 = vadd.f32 %v1277, %v1344
    %v1353 = vadd.f32 %v1278, %v1346
    %s1354 = sadd.s32 %s51, 3
    %s1355 = smul.u32 %s1354, 8
    %s1356 = sadd.s32 %s52, %s1355
    %s1357 = smul.addr %s1356, 4
    %s1358 = scalar_lea.vmem [#allocation2], %s1357
    %v1359 = vld [vmem:[%s1358] sm:$0xf]
    %v1360 = vld [vmem:[%s1358 + $0x4] sm:$0xf]
    %v1361 = vld [vmem:[%s1358 + $0x8] sm:$0xf]
    %v1362 = vld [vmem:[%s1358 + $0xc] sm:$0xf]
    %v1363 = vld [vmem:[%s1358 + $0x10] sm:$0xf]
    %v1364 = vld [vmem:[%s1358 + $0x14] sm:$0xf]
    %v1365 = vld [vmem:[%s625] sm:$0xf]
    %v1366 = vld [vmem:[%s625 + $0x4] sm:$0xf]
    %v1367 = vld [vmem:[%s625 + $0x8] sm:$0xf]
    %v1374 = vunpack.c.l.b16 %v1359
    %v1375 = vunpack.c.l.b16 %v1360
    %v1376 = vunpack.c.l.b16 %v1361
    %v1377 = vunpack.c.l.b16 %v1362
    %v1378 = vunpack.c.l.b16 %v1363
    %v1379 = vunpack.c.l.b16 %v1364
    %v1380 = vpack.c.b16 %v1375, %v1374
    %v1381 = vpack.c.b16 %v1377, %v1376
    %v1382 = vpack.c.b16 %v1379, %v1378
    %v1386 = vunpack.c.l.b16 %v1365
    %v1387 = vunpack.c.l.b16 %v1366
    %v1388 = vunpack.c.l.b16 %v1367
    %v1389 = vpack.c.b16 %v1387, %v1386
    %v1390 = vpack.c.b16 %v1388, %v1388
    %v1393 = vsel %vm197, %v1380, 0
    %v1396 = vsel %vm197, %v1381, 0
    %v1399 = vsel %vm197, %v1382, 0
    %v1402 = vsel %vm207, %v1390, 0
    %1404 = vmatpush.bf16.msra.mxu0 0
    %1405 = vmatpush.bf16.msra.mxu0 0
    %1406 = vmatpush.bf16.msra.mxu0 0
    %1407 = vmatpush.bf16.msra.mxu0 0
    %1408 = vmatpush.bf16.msra.mxu0 0
    %1409 = vmatpush.bf16.msra.mxu0 0
    %1410 = vmatpush.bf16.msra.mxu0 %v1402
    %1411 = vmatpush.bf16.msra.mxu0 %v1389
    %1412 = vmatmul.bf16.gmra.mxu0 %v1393
    %v1413 = vpop.f32.mrf.mxu0
    %v1414 = vadd.f32 0.0, %v1413
    %v1415 = vpop.f32.mrf.mxu0
    %v1416 = vadd.f32 0.0, %v1415
    %1417 = vmatmul.bf16.gmra.mxu0 %v1396
    %v1418 = vpop.f32.mrf.mxu0
    %v1419 = vadd.f32 0.0, %v1418
    %v1420 = vpop.f32.mrf.mxu0
    %v1421 = vadd.f32 0.0, %v1420
    %1422 = vmatmul.bf16.gmra.mxu0 %v1399
    %v1423 = vpop.f32.mrf.mxu0
    %v1424 = vadd.f32 0.0, %v1423
    %v1425 = vpop.f32.mrf.mxu0
    %v1426 = vadd.f32 0.0, %v1425
    %1427 = vdwg.mxu0
    %v1428 = vadd.f32 %v1348, %v1414
    %v1429 = vadd.f32 %v1349, %v1416
    %v1430 = vadd.f32 %v1350, %v1419
    %v1431 = vadd.f32 %v1351, %v1421
    %v1432 = vadd.f32 %v1352, %v1424
    %v1433 = vadd.f32 %v1353, %v1426
    %s1434 = sadd.s32 %s159, %s1355
    %s1435 = smul.addr %s1434, 4
    %s1436 = scalar_lea.vmem [#allocation2], %s1435
    %v1437 = vld [vmem:[%s1436] sm:$0xf]
    %v1438 = vld [vmem:[%s1436 + $0x4] sm:$0xf]
    %v1439 = vld [vmem:[%s1436 + $0x8] sm:$0xf]
    %v1440 = vld [vmem:[%s1436 + $0xc] sm:$0xf]
    %v1441 = vld [vmem:[%s1436 + $0x10] sm:$0xf]
    %v1442 = vld [vmem:[%s1436 + $0x14] sm:$0xf]
    %v1443 = vld [vmem:[%s704] sm:$0xf]
    %v1444 = vld [vmem:[%s704 + $0x4] sm:$0xf]
    %v1445 = vld [vmem:[%s704 + $0x8] sm:$0xf]
    %v1452 = vunpack.c.l.b16 %v1437
    %v1453 = vunpack.c.l.b16 %v1438
    %v1454 = vunpack.c.l.b16 %v1439
    %v1455 = vunpack.c.l.b16 %v1440
    %v1456 = vunpack.c.l.b16 %v1441
    %v1457 = vunpack.c.l.b16 %v1442
    %v1458 = vpack.c.b16 %v1453, %v1452
    %v1459 = vpack.c.b16 %v1455, %v1454
    %v1460 = vpack.c.b16 %v1457, %v1456
    %v1464 = vunpack.c.l.b16 %v1443
    %v1465 = vunpack.c.l.b16 %v1444
    %v1466 = vunpack.c.l.b16 %v1445
    %v1467 = vpack.c.b16 %v1465, %v1464
    %v1468 = vpack.c.b16 %v1466, %v1466
    %v1471 = vsel %vm197, %v1458, 0
    %v1474 = vsel %vm197, %v1459, 0
    %v1477 = vsel %vm197, %v1460, 0
    %v1480 = vsel %vm207, %v1468, 0
    %1482 = vmatpush.bf16.msra.mxu0 0
    %1483 = vmatpush.bf16.msra.mxu0 0
    %1484 = vmatpush.bf16.msra.mxu0 0
    %1485 = vmatpush.bf16.msra.mxu0 0
    %1486 = vmatpush.bf16.msra.mxu0 0
    %1487 = vmatpush.bf16.msra.mxu0 0
    %1488 = vmatpush.bf16.msra.mxu0 %v1480
    %1489 = vmatpush.bf16.msra.mxu0 %v1467
    %1490 = vmatmul.bf16.gmra.mxu0 %v1471
    %v1491 = vpop.f32.mrf.mxu0
    %v1492 = vadd.f32 0.0, %v1491
    %v1493 = vpop.f32.mrf.mxu0
    %v1494 = vadd.f32 0.0, %v1493
    %1495 = vmatmul.bf16.gmra.mxu0 %v1474
    %v1496 = vpop.f32.mrf.mxu0
    %v1497 = vadd.f32 0.0, %v1496
    %v1498 = vpop.f32.mrf.mxu0
    %v1499 = vadd.f32 0.0, %v1498
    %1500 = vmatmul.bf16.gmra.mxu0 %v1477
    %v1501 = vpop.f32.mrf.mxu0
    %v1502 = vadd.f32 0.0, %v1501
    %v1503 = vpop.f32.mrf.mxu0
    %v1504 = vadd.f32 0.0, %v1503
    %1505 = vdwg.mxu0
    %v1506 = vadd.f32 %v1428, %v1492
    %v1507 = vadd.f32 %v1429, %v1494
    %v1508 = vadd.f32 %v1430, %v1497
    %v1509 = vadd.f32 %v1431, %v1499
    %v1510 = vadd.f32 %v1432, %v1502
    %v1511 = vadd.f32 %v1433, %v1504
    %s1512 = sadd.s32 %s295, %s1355
    %s1513 = smul.addr %s1512, 4
    %s1514 = scalar_lea.vmem [#allocation2], %s1513
    %v1515 = vld [vmem:[%s1514] sm:$0xf]
    %v1516 = vld [vmem:[%s1514 + $0x4] sm:$0xf]
    %v1517 = vld [vmem:[%s1514 + $0x8] sm:$0xf]
    %v1518 = vld [vmem:[%s1514 + $0xc] sm:$0xf]
    %v1519 = vld [vmem:[%s1514 + $0x10] sm:$0xf]
    %v1520 = vld [vmem:[%s1514 + $0x14] sm:$0xf]
    %v1521 = vld [vmem:[%s783] sm:$0xf]
    %v1522 = vld [vmem:[%s783 + $0x4] sm:$0xf]
    %v1523 = vld [vmem:[%s783 + $0x8] sm:$0xf]
    %v1530 = vunpack.c.l.b16 %v1515
    %v1531 = vunpack.c.l.b16 %v1516
    %v1532 = vunpack.c.l.b16 %v1517
    %v1533 = vunpack.c.l.b16 %v1518
    %v1534 = vunpack.c.l.b16 %v1519
    %v1535 = vunpack.c.l.b16 %v1520
    %v1536 = vpack.c.b16 %v1531, %v1530
    %v1537 = vpack.c.b16 %v1533, %v1532
    %v1538 = vpack.c.b16 %v1535, %v1534
    %v1542 = vunpack.c.l.b16 %v1521
    %v1543 = vunpack.c.l.b16 %v1522
    %v1544 = vunpack.c.l.b16 %v1523
    %v1545 = vpack.c.b16 %v1543, %v1542
    %v1546 = vpack.c.b16 %v1544, %v1544
    %v1549 = vsel %vm197, %v1536, 0
    %v1552 = vsel %vm197, %v1537, 0
    %v1555 = vsel %vm197, %v1538, 0
    %v1558 = vsel %vm207, %v1546, 0
    %1560 = vmatpush.bf16.msra.mxu0 0
    %1561 = vmatpush.bf16.msra.mxu0 0
    %1562 = vmatpush.bf16.msra.mxu0 0
    %1563 = vmatpush.bf16.msra.mxu0 0
    %1564 = vmatpush.bf16.msra.mxu0 0
    %1565 = vmatpush.bf16.msra.mxu0 0
    %1566 = vmatpush.bf16.msra.mxu0 %v1558
    %1567 = vmatpush.bf16.msra.mxu0 %v1545
    %1568 = vmatmul.bf16.gmra.mxu0 %v1549
    %v1569 = vpop.f32.mrf.mxu0
    %v1570 = vadd.f32 0.0, %v1569
    %v1571 = vpop.f32.mrf.mxu0
    %v1572 = vadd.f32 0.0, %v1571
    %1573 = vmatmul.bf16.gmra.mxu0 %v1552
    %v1574 = vpop.f32.mrf.mxu0
    %v1575 = vadd.f32 0.0, %v1574
    %v1576 = vpop.f32.mrf.mxu0
    %v1577 = vadd.f32 0.0, %v1576
    %1578 = vmatmul.bf16.gmra.mxu0 %v1555
    %v1579 = vpop.f32.mrf.mxu0
    %v1580 = vadd.f32 0.0, %v1579
    %v1581 = vpop.f32.mrf.mxu0
    %v1582 = vadd.f32 0.0, %v1581
    %1583 = vdwg.mxu0
    %v1584 = vadd.f32 %v1506, %v1570
    %v1585 = vadd.f32 %v1507, %v1572
    %v1586 = vadd.f32 %v1508, %v1575
    %v1587 = vadd.f32 %v1509, %v1577
    %v1588 = vadd.f32 %v1510, %v1580
    %v1589 = vadd.f32 %v1511, %v1582
    %v1590 = vadd.f32 %v1584, %v854
    %v1591 = vadd.f32 %v1585, %v854
    %v1592 = vadd.f32 %v1586, %v854
    %v1593 = vadd.f32 %v1587, %v854
    %v1594 = vadd.f32 %v1588, %v854
    %v1595 = vadd.f32 %v1589, %v854
    %v1596 = vsel %vm868, %v1590, 0.0
    %v1597 = vsel %vm869, %v1591, 0.0
    %v1598 = vsel %vm870, %v1592, 0.0
    %v1599 = vsel %vm871, %v1593, 0.0
    %v1600 = vsel %vm872, %v1594, 0.0
    %v1601 = vsel %vm873, %v1595, 0.0
    %v1602 = vadd.f32 %v1596, %v1597
    %v1603 = vadd.f32 %v1602, %v1598
    %v1604 = vadd.f32 %v1603, %v1599
    %v1605 = vadd.f32 %v1604, %v1600
    %v1606 = vadd.f32 %v1605, %v1601
    %v1607 = vrot.slane %v1606, 4
    %v1608 = vadd.f32 %v1606, %v1607
    %v1609 = vrot.slane %v1608, 2
    %v1610 = vadd.f32 %v1608, %v1609
    %v1611 = vrot.slane %v1610, 1
    %v1612 = vadd.f32 %v1610, %v1611
    %v1613 = vadd.f32 %v891, %v1612
    %v1614 = vmul.f32 %v1596, %v1596
    %v1615 = vmul.f32 %v1597, %v1597
    %v1616 = vmul.f32 %v1598, %v1598
    %v1617 = vmul.f32 %v1599, %v1599
    %v1618 = vmul.f32 %v1600, %v1600
    %v1619 = vmul.f32 %v1601, %v1601
    %v1620 = vadd.f32 %v1614, %v1615
    %v1621 = vadd.f32 %v1620, %v1616
    %v1622 = vadd.f32 %v1621, %v1617
    %v1623 = vadd.f32 %v1622, %v1618
    %v1624 = vadd.f32 %v1623, %v1619
    %v1625 = vrot.slane %v1624, 4
    %v1626 = vadd.f32 %v1624, %v1625
    %v1627 = vrot.slane %v1626, 2
    %v1628 = vadd.f32 %v1626, %v1627
    %v1629 = vrot.slane %v1628, 1
    %v1630 = vadd.f32 %v1628, %v1629
    %v1631 = vadd.f32 %v909, %v1630
    %s1632 = scalar_lea.vmem [#allocation7], 48
    %1633 = vst [vmem:[%s1632] sm:$0xff] %v1590
    %1634 = vst [vmem:[%s1632 + $0x8] sm:$0xff] %v1591
    %1635 = vst [vmem:[%s1632 + $0x10] sm:$0xff] %v1592
    %1636 = vst [vmem:[%s1632 + $0x18] sm:$0xff] %v1593
    %1637 = vst [vmem:[%s1632 + $0x20] sm:$0xff] %v1594
    %1638 = vst [vmem:[%s1632 + $0x28] sm:$0xff] %v1595
    %v1639 = vld [vmem:[%s618] sm:$0xf]
    %v1640 = vld [vmem:[%s618 + $0x4] sm:$0xf]
    %v1641 = vld [vmem:[%s618 + $0x8] sm:$0xf]
    %v1642 = vld [vmem:[%s618 + $0xc] sm:$0xf]
    %v1643 = vld [vmem:[%s618 + $0x10] sm:$0xf]
    %v1644 = vld [vmem:[%s618 + $0x14] sm:$0xf]
    %v1645 = vld [vmem:[#allocation5] sm:$0xf]
    %v1646 = vld [vmem:[#allocation5 + $0x4] sm:$0xf]
    %v1647 = vld [vmem:[#allocation5 + $0x8] sm:$0xf]
    %v1648 = vld [vmem:[%s697] sm:$0xf]
    %v1649 = vld [vmem:[%s697 + $0x4] sm:$0xf]
    %v1650 = vld [vmem:[%s697 + $0x8] sm:$0xf]
    %v1651 = vld [vmem:[%s697 + $0xc] sm:$0xf]
    %v1652 = vld [vmem:[%s697 + $0x10] sm:$0xf]
    %v1653 = vld [vmem:[%s697 + $0x14] sm:$0xf]
    %v1654 = vld [vmem:[%s169] sm:$0xf]
    %v1655 = vld [vmem:[%s169 + $0x4] sm:$0xf]
    %v1656 = vld [vmem:[%s169 + $0x8] sm:$0xf]
    %v1663 = vunpack.c.l.b16 %v1648
    %v1664 = vunpack.c.l.b16 %v1649
    %v1665 = vunpack.c.l.b16 %v1650
    %v1666 = vunpack.c.l.b16 %v1651
    %v1667 = vunpack.c.l.b16 %v1652
    %v1668 = vunpack.c.l.b16 %v1653
    %v1669 = vpack.c.b16 %v1664, %v1663
    %v1670 = vpack.c.b16 %v1666, %v1665
    %v1671 = vpack.c.b16 %v1668, %v1667
    %v1675 = vunpack.c.l.b16 %v1654
    %v1676 = vunpack.c.l.b16 %v1655
    %v1677 = vunpack.c.l.b16 %v1656
    %v1678 = vpack.c.b16 %v1676, %v1675
    %v1679 = vpack.c.b16 %v1677, %v1677
    %v1682 = vsel %vm197, %v1669, 0
    %v1685 = vsel %vm197, %v1670, 0
    %v1688 = vsel %vm197, %v1671, 0
    %v1691 = vsel %vm207, %v1679, 0
    %1693 = vmatpush.bf16.msra.mxu0 0
    %1694 = vmatpush.bf16.msra.mxu0 0
    %1695 = vmatpush.bf16.msra.mxu0 0
    %1696 = vmatpush.bf16.msra.mxu0 0
    %1697 = vmatpush.bf16.msra.mxu0 0
    %1698 = vmatpush.bf16.msra.mxu0 0
    %1699 = vmatpush.bf16.msra.mxu0 %v1691
    %1700 = vmatpush.bf16.msra.mxu0 %v1678
    %1701 = vmatmul.bf16.gmra.mxu0 %v1682
    %v1702 = vpop.f32.mrf.mxu0
    %v1703 = vadd.f32 0.0, %v1702
    %v1704 = vpop.f32.mrf.mxu0
    %v1705 = vadd.f32 0.0, %v1704
    %1706 = vmatmul.bf16.gmra.mxu0 %v1685
    %v1707 = vpop.f32.mrf.mxu0
    %v1708 = vadd.f32 0.0, %v1707
    %v1709 = vpop.f32.mrf.mxu0
    %v1710 = vadd.f32 0.0, %v1709
    %1711 = vmatmul.bf16.gmra.mxu0 %v1688
    %v1712 = vpop.f32.mrf.mxu0
    %v1713 = vadd.f32 0.0, %v1712
    %v1714 = vpop.f32.mrf.mxu0
    %v1715 = vadd.f32 0.0, %v1714
    %1716 = vdwg.mxu0
    %v1723 = vunpack.c.l.b16 %v1639
    %v1724 = vunpack.c.l.b16 %v1640
    %v1725 = vunpack.c.l.b16 %v1641
    %v1726 = vunpack.c.l.b16 %v1642
    %v1727 = vunpack.c.l.b16 %v1643
    %v1728 = vunpack.c.l.b16 %v1644
    %v1729 = vpack.c.b16 %v1724, %v1723
    %v1730 = vpack.c.b16 %v1726, %v1725
    %v1731 = vpack.c.b16 %v1728, %v1727
    %v1735 = vunpack.c.l.b16 %v1645
    %v1736 = vunpack.c.l.b16 %v1646
    %v1737 = vunpack.c.l.b16 %v1647
    %v1738 = vpack.c.b16 %v1736, %v1735
    %v1739 = vpack.c.b16 %v1737, %v1737
    %v1742 = vsel %vm197, %v1729, 0
    %v1745 = vsel %vm197, %v1730, 0
    %v1748 = vsel %vm197, %v1731, 0
    %v1751 = vsel %vm207, %v1739, 0
    %1753 = vmatpush.bf16.msra.mxu0 0
    %1754 = vmatpush.bf16.msra.mxu0 0
    %1755 = vmatpush.bf16.msra.mxu0 0
    %1756 = vmatpush.bf16.msra.mxu0 0
    %1757 = vmatpush.bf16.msra.mxu0 0
    %1758 = vmatpush.bf16.msra.mxu0 0
    %1759 = vmatpush.bf16.msra.mxu0 %v1751
    %1760 = vmatpush.bf16.msra.mxu0 %v1738
    %1761 = vmatmul.bf16.gmra.mxu0 %v1742
    %v1762 = vpop.f32.mrf.mxu0
    %v1763 = vadd.f32 %v1703, %v1762
    %v1764 = vpop.f32.mrf.mxu0
    %v1765 = vadd.f32 %v1705, %v1764
    %1766 = vmatmul.bf16.gmra.mxu0 %v1745
    %v1767 = vpop.f32.mrf.mxu0
    %v1768 = vadd.f32 %v1708, %v1767
    %v1769 = vpop.f32.mrf.mxu0
    %v1770 = vadd.f32 %v1710, %v1769
    %1771 = vmatmul.bf16.gmra.mxu0 %v1748
    %v1772 = vpop.f32.mrf.mxu0
    %v1773 = vadd.f32 %v1713, %v1772
    %v1774 = vpop.f32.mrf.mxu0
    %v1775 = vadd.f32 %v1715, %v1774
    %1776 = vdwg.mxu0
    %v1777 = vld [vmem:[%s776] sm:$0xf]
    %v1778 = vld [vmem:[%s776 + $0x4] sm:$0xf]
    %v1779 = vld [vmem:[%s776 + $0x8] sm:$0xf]
    %v1780 = vld [vmem:[%s776 + $0xc] sm:$0xf]
    %v1781 = vld [vmem:[%s776 + $0x10] sm:$0xf]
    %v1782 = vld [vmem:[%s776 + $0x14] sm:$0xf]
    %v1783 = vld [vmem:[%s305] sm:$0xf]
    %v1784 = vld [vmem:[%s305 + $0x4] sm:$0xf]
    %v1785 = vld [vmem:[%s305 + $0x8] sm:$0xf]
    %v1792 = vunpack.c.l.b16 %v1777
    %v1793 = vunpack.c.l.b16 %v1778
    %v1794 = vunpack.c.l.b16 %v1779
    %v1795 = vunpack.c.l.b16 %v1780
    %v1796 = vunpack.c.l.b16 %v1781
    %v1797 = vunpack.c.l.b16 %v1782
    %v1798 = vpack.c.b16 %v1793, %v1792
    %v1799 = vpack.c.b16 %v1795, %v1794
    %v1800 = vpack.c.b16 %v1797, %v1796
    %v1804 = vunpack.c.l.b16 %v1783
    %v1805 = vunpack.c.l.b16 %v1784
    %v1806 = vunpack.c.l.b16 %v1785
    %v1807 = vpack.c.b16 %v1805, %v1804
    %v1808 = vpack.c.b16 %v1806, %v1806
    %v1811 = vsel %vm197, %v1798, 0
    %v1814 = vsel %vm197, %v1799, 0
    %v1817 = vsel %vm197, %v1800, 0
    %v1820 = vsel %vm207, %v1808, 0
    %1822 = vmatpush.bf16.msra.mxu0 0
    %1823 = vmatpush.bf16.msra.mxu0 0
    %1824 = vmatpush.bf16.msra.mxu0 0
    %1825 = vmatpush.bf16.msra.mxu0 0
    %1826 = vmatpush.bf16.msra.mxu0 0
    %1827 = vmatpush.bf16.msra.mxu0 0
    %1828 = vmatpush.bf16.msra.mxu0 %v1820
    %1829 = vmatpush.bf16.msra.mxu0 %v1807
    %1830 = vmatmul.bf16.gmra.mxu0 %v1811
    %v1831 = vpop.f32.mrf.mxu0
    %v1832 = vadd.f32 0.0, %v1831
    %v1833 = vpop.f32.mrf.mxu0
    %v1834 = vadd.f32 0.0, %v1833
    %1835 = vmatmul.bf16.gmra.mxu0 %v1814
    %v1836 = vpop.f32.mrf.mxu0
    %v1837 = vadd.f32 0.0, %v1836
    %v1838 = vpop.f32.mrf.mxu0
    %v1839 = vadd.f32 0.0, %v1838
    %1840 = vmatmul.bf16.gmra.mxu0 %v1817
    %v1841 = vpop.f32.mrf.mxu0
    %v1842 = vadd.f32 0.0, %v1841
    %v1843 = vpop.f32.mrf.mxu0
    %v1844 = vadd.f32 0.0, %v1843
    %1845 = vdwg.mxu0
    %v1846 = vadd.f32 %v1763, %v1832
    %v1847 = vadd.f32 %v1765, %v1834
    %v1848 = vadd.f32 %v1768, %v1837
    %v1849 = vadd.f32 %v1770, %v1839
    %v1850 = vadd.f32 %v1773, %v1842
    %v1851 = vadd.f32 %v1775, %v1844
    %v1852 = vld [vmem:[%s1358] sm:$0xf]
    %v1853 = vld [vmem:[%s1358 + $0x4] sm:$0xf]
    %v1854 = vld [vmem:[%s1358 + $0x8] sm:$0xf]
    %v1855 = vld [vmem:[%s1358 + $0xc] sm:$0xf]
    %v1856 = vld [vmem:[%s1358 + $0x10] sm:$0xf]
    %v1857 = vld [vmem:[%s1358 + $0x14] sm:$0xf]
    %v1858 = vld [vmem:[%s386] sm:$0xf]
    %v1859 = vld [vmem:[%s386 + $0x4] sm:$0xf]
    %v1860 = vld [vmem:[%s386 + $0x8] sm:$0xf]
    %v1867 = vunpack.c.l.b16 %v1852
    %v1868 = vunpack.c.l.b16 %v1853
    %v1869 = vunpack.c.l.b16 %v1854
    %v1870 = vunpack.c.l.b16 %v1855
    %v1871 = vunpack.c.l.b16 %v1856
    %v1872 = vunpack.c.l.b16 %v1857
    %v1873 = vpack.c.b16 %v1868, %v1867
    %v1874 = vpack.c.b16 %v1870, %v1869
    %v1875 = vpack.c.b16 %v1872, %v1871
    %v1879 = vunpack.c.l.b16 %v1858
    %v1880 = vunpack.c.l.b16 %v1859
    %v1881 = vunpack.c.l.b16 %v1860
    %v1882 = vpack.c.b16 %v1880, %v1879
    %v1883 = vpack.c.b16 %v1881, %v1881
    %v1886 = vsel %vm197, %v1873, 0
    %v1889 = vsel %vm197, %v1874, 0
    %v1892 = vsel %vm197, %v1875, 0
    %v1895 = vsel %vm207, %v1883, 0
    %1897 = vmatpush.bf16.msra.mxu0 0
    %1898 = vmatpush.bf16.msra.mxu0 0
    %1899 = vmatpush.bf16.msra.mxu0 0
    %1900 = vmatpush.bf16.msra.mxu0 0
    %1901 = vmatpush.bf16.msra.mxu0 0
    %1902 = vmatpush.bf16.msra.mxu0 0
    %1903 = vmatpush.bf16.msra.mxu0 %v1895
    %1904 = vmatpush.bf16.msra.mxu0 %v1882
    %1905 = vmatmul.bf16.gmra.mxu0 %v1886
    %v1906 = vpop.f32.mrf.mxu0
    %v1907 = vadd.f32 0.0, %v1906
    %v1908 = vpop.f32.mrf.mxu0
    %v1909 = vadd.f32 0.0, %v1908
    %1910 = vmatmul.bf16.gmra.mxu0 %v1889
    %v1911 = vpop.f32.mrf.mxu0
    %v1912 = vadd.f32 0.0, %v1911
    %v1913 = vpop.f32.mrf.mxu0
    %v1914 = vadd.f32 0.0, %v1913
    %1915 = vmatmul.bf16.gmra.mxu0 %v1892
    %v1916 = vpop.f32.mrf.mxu0
    %v1917 = vadd.f32 0.0, %v1916
    %v1918 = vpop.f32.mrf.mxu0
    %v1919 = vadd.f32 0.0, %v1918
    %1920 = vdwg.mxu0
    %v1921 = vadd.f32 %v1846, %v1907
    %v1922 = vadd.f32 %v1847, %v1909
    %v1923 = vadd.f32 %v1848, %v1912
    %v1924 = vadd.f32 %v1849, %v1914
    %v1925 = vadd.f32 %v1850, %v1917
    %v1926 = vadd.f32 %v1851, %v1919
    %v1927 = vld [vmem:[%s1436] sm:$0xf]
    %v1928 = vld [vmem:[%s1436 + $0x4] sm:$0xf]
    %v1929 = vld [vmem:[%s1436 + $0x8] sm:$0xf]
    %v1930 = vld [vmem:[%s1436 + $0xc] sm:$0xf]
    %v1931 = vld [vmem:[%s1436 + $0x10] sm:$0xf]
    %v1932 = vld [vmem:[%s1436 + $0x14] sm:$0xf]
    %v1933 = vld [vmem:[%s465] sm:$0xf]
    %v1934 = vld [vmem:[%s465 + $0x4] sm:$0xf]
    %v1935 = vld [vmem:[%s465 + $0x8] sm:$0xf]
    %v1942 = vunpack.c.l.b16 %v1927
    %v1943 = vunpack.c.l.b16 %v1928
    %v1944 = vunpack.c.l.b16 %v1929
    %v1945 = vunpack.c.l.b16 %v1930
    %v1946 = vunpack.c.l.b16 %v1931
    %v1947 = vunpack.c.l.b16 %v1932
    %v1948 = vpack.c.b16 %v1943, %v1942
    %v1949 = vpack.c.b16 %v1945, %v1944
    %v1950 = vpack.c.b16 %v1947, %v1946
    %v1954 = vunpack.c.l.b16 %v1933
    %v1955 = vunpack.c.l.b16 %v1934
    %v1956 = vunpack.c.l.b16 %v1935
    %v1957 = vpack.c.b16 %v1955, %v1954
    %v1958 = vpack.c.b16 %v1956, %v1956
    %v1961 = vsel %vm197, %v1948, 0
    %v1964 = vsel %vm197, %v1949, 0
    %v1967 = vsel %vm197, %v1950, 0
    %v1970 = vsel %vm207, %v1958, 0
    %1972 = vmatpush.bf16.msra.mxu0 0
    %1973 = vmatpush.bf16.msra.mxu0 0
    %1974 = vmatpush.bf16.msra.mxu0 0
    %1975 = vmatpush.bf16.msra.mxu0 0
    %1976 = vmatpush.bf16.msra.mxu0 0
    %1977 = vmatpush.bf16.msra.mxu0 0
    %1978 = vmatpush.bf16.msra.mxu0 %v1970
    %1979 = vmatpush.bf16.msra.mxu0 %v1957
    %1980 = vmatmul.bf16.gmra.mxu0 %v1961
    %v1981 = vpop.f32.mrf.mxu0
    %v1982 = vadd.f32 0.0, %v1981
    %v1983 = vpop.f32.mrf.mxu0
    %v1984 = vadd.f32 0.0, %v1983
    %1985 = vmatmul.bf16.gmra.mxu0 %v1964
    %v1986 = vpop.f32.mrf.mxu0
    %v1987 = vadd.f32 0.0, %v1986
    %v1988 = vpop.f32.mrf.mxu0
    %v1989 = vadd.f32 0.0, %v1988
    %1990 = vmatmul.bf16.gmra.mxu0 %v1967
    %v1991 = vpop.f32.mrf.mxu0
    %v1992 = vadd.f32 0.0, %v1991
    %v1993 = vpop.f32.mrf.mxu0
    %v1994 = vadd.f32 0.0, %v1993
    %1995 = vdwg.mxu0
    %v1996 = vadd.f32 %v1921, %v1982
    %v1997 = vadd.f32 %v1922, %v1984
    %v1998 = vadd.f32 %v1923, %v1987
    %v1999 = vadd.f32 %v1924, %v1989
    %v2000 = vadd.f32 %v1925, %v1992
    %v2001 = vadd.f32 %v1926, %v1994
    %v2002 = vld [vmem:[%s1514] sm:$0xf]
    %v2003 = vld [vmem:[%s1514 + $0x4] sm:$0xf]
    %v2004 = vld [vmem:[%s1514 + $0x8] sm:$0xf]
    %v2005 = vld [vmem:[%s1514 + $0xc] sm:$0xf]
    %v2006 = vld [vmem:[%s1514 + $0x10] sm:$0xf]
    %v2007 = vld [vmem:[%s1514 + $0x14] sm:$0xf]
    %v2008 = vld [vmem:[%s544] sm:$0xf]
    %v2009 = vld [vmem:[%s544 + $0x4] sm:$0xf]
    %v2010 = vld [vmem:[%s544 + $0x8] sm:$0xf]
    %v2017 = vunpack.c.l.b16 %v2002
    %v2018 = vunpack.c.l.b16 %v2003
    %v2019 = vunpack.c.l.b16 %v2004
    %v2020 = vunpack.c.l.b16 %v2005
    %v2021 = vunpack.c.l.b16 %v2006
    %v2022 = vunpack.c.l.b16 %v2007
    %v2023 = vpack.c.b16 %v2018, %v2017
    %v2024 = vpack.c.b16 %v2020, %v2019
    %v2025 = vpack.c.b16 %v2022, %v2021
    %v2029 = vunpack.c.l.b16 %v2008
    %v2030 = vunpack.c.l.b16 %v2009
    %v2031 = vunpack.c.l.b16 %v2010
    %v2032 = vpack.c.b16 %v2030, %v2029
    %v2033 = vpack.c.b16 %v2031, %v2031
    %v2036 = vsel %vm197, %v2023, 0
    %v2039 = vsel %vm197, %v2024, 0
    %v2042 = vsel %vm197, %v2025, 0
    %v2045 = vsel %vm207, %v2033, 0
    %2047 = vmatpush.bf16.msra.mxu0 0
    %2048 = vmatpush.bf16.msra.mxu0 0
    %2049 = vmatpush.bf16.msra.mxu0 0
    %2050 = vmatpush.bf16.msra.mxu0 0
    %2051 = vmatpush.bf16.msra.mxu0 0
    %2052 = vmatpush.bf16.msra.mxu0 0
    %2053 = vmatpush.bf16.msra.mxu0 %v2045
    %2054 = vmatpush.bf16.msra.mxu0 %v2032
    %2055 = vmatmul.bf16.gmra.mxu0 %v2036
    %v2056 = vpop.f32.mrf.mxu0
    %v2057 = vadd.f32 0.0, %v2056
    %v2058 = vpop.f32.mrf.mxu0
    %v2059 = vadd.f32 0.0, %v2058
    %2060 = vmatmul.bf16.gmra.mxu0 %v2039
    %v2061 = vpop.f32.mrf.mxu0
    %v2062 = vadd.f32 0.0, %v2061
    %v2063 = vpop.f32.mrf.mxu0
    %v2064 = vadd.f32 0.0, %v2063
    %2065 = vmatmul.bf16.gmra.mxu0 %v2042
    %v2066 = vpop.f32.mrf.mxu0
    %v2067 = vadd.f32 0.0, %v2066
    %v2068 = vpop.f32.mrf.mxu0
    %v2069 = vadd.f32 0.0, %v2068
    %2070 = vdwg.mxu0
    %v2071 = vadd.f32 %v1996, %v2057
    %v2072 = vadd.f32 %v1997, %v2059
    %v2073 = vadd.f32 %v1998, %v2062
    %v2074 = vadd.f32 %v1999, %v2064
    %v2075 = vadd.f32 %v2000, %v2067
    %v2076 = vadd.f32 %v2001, %v2069
    %s2077 = sadd.s32 %s51, 4
    %s2078 = smul.u32 %s2077, 8
    %s2079 = sadd.s32 %s52, %s2078
    %s2080 = smul.addr %s2079, 4
    %s2081 = scalar_lea.vmem [#allocation2], %s2080
    %v2082 = vld [vmem:[%s2081] sm:$0xf]
    %v2083 = vld [vmem:[%s2081 + $0x4] sm:$0xf]
    %v2084 = vld [vmem:[%s2081 + $0x8] sm:$0xf]
    %v2085 = vld [vmem:[%s2081 + $0xc] sm:$0xf]
    %v2086 = vld [vmem:[%s2081 + $0x10] sm:$0xf]
    %v2087 = vld [vmem:[%s2081 + $0x14] sm:$0xf]
    %v2088 = vld [vmem:[%s625] sm:$0xf]
    %v2089 = vld [vmem:[%s625 + $0x4] sm:$0xf]
    %v2090 = vld [vmem:[%s625 + $0x8] sm:$0xf]
    %v2097 = vunpack.c.l.b16 %v2082
    %v2098 = vunpack.c.l.b16 %v2083
    %v2099 = vunpack.c.l.b16 %v2084
    %v2100 = vunpack.c.l.b16 %v2085
    %v2101 = vunpack.c.l.b16 %v2086
    %v2102 = vunpack.c.l.b16 %v2087
    %v2103 = vpack.c.b16 %v2098, %v2097
    %v2104 = vpack.c.b16 %v2100, %v2099
    %v2105 = vpack.c.b16 %v2102, %v2101
    %v2109 = vunpack.c.l.b16 %v2088
    %v2110 = vunpack.c.l.b16 %v2089
    %v2111 = vunpack.c.l.b16 %v2090
    %v2112 = vpack.c.b16 %v2110, %v2109
    %v2113 = vpack.c.b16 %v2111, %v2111
    %v2116 = vsel %vm197, %v2103, 0
    %v2119 = vsel %vm197, %v2104, 0
    %v2122 = vsel %vm197, %v2105, 0
    %v2125 = vsel %vm207, %v2113, 0
    %2127 = vmatpush.bf16.msra.mxu0 0
    %2128 = vmatpush.bf16.msra.mxu0 0
    %2129 = vmatpush.bf16.msra.mxu0 0
    %2130 = vmatpush.bf16.msra.mxu0 0
    %2131 = vmatpush.bf16.msra.mxu0 0
    %2132 = vmatpush.bf16.msra.mxu0 0
    %2133 = vmatpush.bf16.msra.mxu0 %v2125
    %2134 = vmatpush.bf16.msra.mxu0 %v2112
    %2135 = vmatmul.bf16.gmra.mxu0 %v2116
    %v2136 = vpop.f32.mrf.mxu0
    %v2137 = vadd.f32 0.0, %v2136
    %v2138 = vpop.f32.mrf.mxu0
    %v2139 = vadd.f32 0.0, %v2138
    %2140 = vmatmul.bf16.gmra.mxu0 %v2119
    %v2141 = vpop.f32.mrf.mxu0
    %v2142 = vadd.f32 0.0, %v2141
    %v2143 = vpop.f32.mrf.mxu0
    %v2144 = vadd.f32 0.0, %v2143
    %2145 = vmatmul.bf16.gmra.mxu0 %v2122
    %v2146 = vpop.f32.mrf.mxu0
    %v2147 = vadd.f32 0.0, %v2146
    %v2148 = vpop.f32.mrf.mxu0
    %v2149 = vadd.f32 0.0, %v2148
    %2150 = vdwg.mxu0
    %v2151 = vadd.f32 %v2071, %v2137
    %v2152 = vadd.f32 %v2072, %v2139
    %v2153 = vadd.f32 %v2073, %v2142
    %v2154 = vadd.f32 %v2074, %v2144
    %v2155 = vadd.f32 %v2075, %v2147
    %v2156 = vadd.f32 %v2076, %v2149
    %s2157 = sadd.s32 %s159, %s2078
    %s2158 = smul.addr %s2157, 4
    %s2159 = scalar_lea.vmem [#allocation2], %s2158
    %v2160 = vld [vmem:[%s2159] sm:$0xf]
    %v2161 = vld [vmem:[%s2159 + $0x4] sm:$0xf]
    %v2162 = vld [vmem:[%s2159 + $0x8] sm:$0xf]
    %v2163 = vld [vmem:[%s2159 + $0xc] sm:$0xf]
    %v2164 = vld [vmem:[%s2159 + $0x10] sm:$0xf]
    %v2165 = vld [vmem:[%s2159 + $0x14] sm:$0xf]
    %v2166 = vld [vmem:[%s704] sm:$0xf]
    %v2167 = vld [vmem:[%s704 + $0x4] sm:$0xf]
    %v2168 = vld [vmem:[%s704 + $0x8] sm:$0xf]
    %v2175 = vunpack.c.l.b16 %v2160
    %v2176 = vunpack.c.l.b16 %v2161
    %v2177 = vunpack.c.l.b16 %v2162
    %v2178 = vunpack.c.l.b16 %v2163
    %v2179 = vunpack.c.l.b16 %v2164
    %v2180 = vunpack.c.l.b16 %v2165
    %v2181 = vpack.c.b16 %v2176, %v2175
    %v2182 = vpack.c.b16 %v2178, %v2177
    %v2183 = vpack.c.b16 %v2180, %v2179
    %v2187 = vunpack.c.l.b16 %v2166
    %v2188 = vunpack.c.l.b16 %v2167
    %v2189 = vunpack.c.l.b16 %v2168
    %v2190 = vpack.c.b16 %v2188, %v2187
    %v2191 = vpack.c.b16 %v2189, %v2189
    %v2194 = vsel %vm197, %v2181, 0
    %v2197 = vsel %vm197, %v2182, 0
    %v2200 = vsel %vm197, %v2183, 0
    %v2203 = vsel %vm207, %v2191, 0
    %2205 = vmatpush.bf16.msra.mxu0 0
    %2206 = vmatpush.bf16.msra.mxu0 0
    %2207 = vmatpush.bf16.msra.mxu0 0
    %2208 = vmatpush.bf16.msra.mxu0 0
    %2209 = vmatpush.bf16.msra.mxu0 0
    %2210 = vmatpush.bf16.msra.mxu0 0
    %2211 = vmatpush.bf16.msra.mxu0 %v2203
    %2212 = vmatpush.bf16.msra.mxu0 %v2190
    %2213 = vmatmul.bf16.gmra.mxu0 %v2194
    %v2214 = vpop.f32.mrf.mxu0
    %v2215 = vadd.f32 0.0, %v2214
    %v2216 = vpop.f32.mrf.mxu0
    %v2217 = vadd.f32 0.0, %v2216
    %2218 = vmatmul.bf16.gmra.mxu0 %v2197
    %v2219 = vpop.f32.mrf.mxu0
    %v2220 = vadd.f32 0.0, %v2219
    %v2221 = vpop.f32.mrf.mxu0
    %v2222 = vadd.f32 0.0, %v2221
    %2223 = vmatmul.bf16.gmra.mxu0 %v2200
    %v2224 = vpop.f32.mrf.mxu0
    %v2225 = vadd.f32 0.0, %v2224
    %v2226 = vpop.f32.mrf.mxu0
    %v2227 = vadd.f32 0.0, %v2226
    %2228 = vdwg.mxu0
    %v2229 = vadd.f32 %v2151, %v2215
    %v2230 = vadd.f32 %v2152, %v2217
    %v2231 = vadd.f32 %v2153, %v2220
    %v2232 = vadd.f32 %v2154, %v2222
    %v2233 = vadd.f32 %v2155, %v2225
    %v2234 = vadd.f32 %v2156, %v2227
    %s2235 = sadd.s32 %s295, %s2078
    %s2236 = smul.addr %s2235, 4
    %s2237 = scalar_lea.vmem [#allocation2], %s2236
    %v2238 = vld [vmem:[%s2237] sm:$0xf]
    %v2239 = vld [vmem:[%s2237 + $0x4] sm:$0xf]
    %v2240 = vld [vmem:[%s2237 + $0x8] sm:$0xf]
    %v2241 = vld [vmem:[%s2237 + $0xc] sm:$0xf]
    %v2242 = vld [vmem:[%s2237 + $0x10] sm:$0xf]
    %v2243 = vld [vmem:[%s2237 + $0x14] sm:$0xf]
    %v2244 = vld [vmem:[%s783] sm:$0xf]
    %v2245 = vld [vmem:[%s783 + $0x4] sm:$0xf]
    %v2246 = vld [vmem:[%s783 + $0x8] sm:$0xf]
    %v2253 = vunpack.c.l.b16 %v2238
    %v2254 = vunpack.c.l.b16 %v2239
    %v2255 = vunpack.c.l.b16 %v2240
    %v2256 = vunpack.c.l.b16 %v2241
    %v2257 = vunpack.c.l.b16 %v2242
    %v2258 = vunpack.c.l.b16 %v2243
    %v2259 = vpack.c.b16 %v2254, %v2253
    %v2260 = vpack.c.b16 %v2256, %v2255
    %v2261 = vpack.c.b16 %v2258, %v2257
    %v2265 = vunpack.c.l.b16 %v2244
    %v2266 = vunpack.c.l.b16 %v2245
    %v2267 = vunpack.c.l.b16 %v2246
    %v2268 = vpack.c.b16 %v2266, %v2265
    %v2269 = vpack.c.b16 %v2267, %v2267
    %v2272 = vsel %vm197, %v2259, 0
    %v2275 = vsel %vm197, %v2260, 0
    %v2278 = vsel %vm197, %v2261, 0
    %v2281 = vsel %vm207, %v2269, 0
    %2283 = vmatpush.bf16.msra.mxu0 0
    %2284 = vmatpush.bf16.msra.mxu0 0
    %2285 = vmatpush.bf16.msra.mxu0 0
    %2286 = vmatpush.bf16.msra.mxu0 0
    %2287 = vmatpush.bf16.msra.mxu0 0
    %2288 = vmatpush.bf16.msra.mxu0 0
    %2289 = vmatpush.bf16.msra.mxu0 %v2281
    %2290 = vmatpush.bf16.msra.mxu0 %v2268
    %2291 = vmatmul.bf16.gmra.mxu0 %v2272
    %v2292 = vpop.f32.mrf.mxu0
    %v2293 = vadd.f32 0.0, %v2292
    %v2294 = vpop.f32.mrf.mxu0
    %v2295 = vadd.f32 0.0, %v2294
    %2296 = vmatmul.bf16.gmra.mxu0 %v2275
    %v2297 = vpop.f32.mrf.mxu0
    %v2298 = vadd.f32 0.0, %v2297
    %v2299 = vpop.f32.mrf.mxu0
    %v2300 = vadd.f32 0.0, %v2299
    %2301 = vmatmul.bf16.gmra.mxu0 %v2278
    %v2302 = vpop.f32.mrf.mxu0
    %v2303 = vadd.f32 0.0, %v2302
    %v2304 = vpop.f32.mrf.mxu0
    %v2305 = vadd.f32 0.0, %v2304
    %2306 = vdwg.mxu0
    %v2307 = vadd.f32 %v2229, %v2293
    %v2308 = vadd.f32 %v2230, %v2295
    %v2309 = vadd.f32 %v2231, %v2298
    %v2310 = vadd.f32 %v2232, %v2300
    %v2311 = vadd.f32 %v2233, %v2303
    %v2312 = vadd.f32 %v2234, %v2305
    %v2313 = vadd.f32 %v2307, %v854
    %v2314 = vadd.f32 %v2308, %v854
    %v2315 = vadd.f32 %v2309, %v854
    %v2316 = vadd.f32 %v2310, %v854
    %v2317 = vadd.f32 %v2311, %v854
    %v2318 = vadd.f32 %v2312, %v854
    %v2319 = vsel %vm868, %v2313, 0.0
    %v2320 = vsel %vm869, %v2314, 0.0
    %v2321 = vsel %vm870, %v2315, 0.0
    %v2322 = vsel %vm871, %v2316, 0.0
    %v2323 = vsel %vm872, %v2317, 0.0
    %v2324 = vsel %vm873, %v2318, 0.0
    %v2325 = vadd.f32 %v2319, %v2320
    %v2326 = vadd.f32 %v2325, %v2321
    %v2327 = vadd.f32 %v2326, %v2322
    %v2328 = vadd.f32 %v2327, %v2323
    %v2329 = vadd.f32 %v2328, %v2324
    %v2330 = vrot.slane %v2329, 4
    %v2331 = vadd.f32 %v2329, %v2330
    %v2332 = vrot.slane %v2331, 2
    %v2333 = vadd.f32 %v2331, %v2332
    %v2334 = vrot.slane %v2333, 1
    %v2335 = vadd.f32 %v2333, %v2334
    %v2336 = vadd.f32 %v1613, %v2335
    %v2337 = vmul.f32 %v2319, %v2319
    %v2338 = vmul.f32 %v2320, %v2320
    %v2339 = vmul.f32 %v2321, %v2321
    %v2340 = vmul.f32 %v2322, %v2322
    %v2341 = vmul.f32 %v2323, %v2323
    %v2342 = vmul.f32 %v2324, %v2324
    %v2343 = vadd.f32 %v2337, %v2338
    %v2344 = vadd.f32 %v2343, %v2339
    %v2345 = vadd.f32 %v2344, %v2340
    %v2346 = vadd.f32 %v2345, %v2341
    %v2347 = vadd.f32 %v2346, %v2342
    %v2348 = vrot.slane %v2347, 4
    %v2349 = vadd.f32 %v2347, %v2348
    %v2350 = vrot.slane %v2349, 2
    %v2351 = vadd.f32 %v2349, %v2350
    %v2352 = vrot.slane %v2351, 1
    %v2353 = vadd.f32 %v2351, %v2352
    %v2354 = vadd.f32 %v1631, %v2353
    %s2355 = scalar_lea.vmem [#allocation7], 96
    %2356 = vst [vmem:[%s2355] sm:$0xff] %v2313
    %2357 = vst [vmem:[%s2355 + $0x8] sm:$0xff] %v2314
    %2358 = vst [vmem:[%s2355 + $0x10] sm:$0xff] %v2315
    %2359 = vst [vmem:[%s2355 + $0x18] sm:$0xff] %v2316
    %2360 = vst [vmem:[%s2355 + $0x20] sm:$0xff] %v2317
    %2361 = vst [vmem:[%s2355 + $0x28] sm:$0xff] %v2318
    %v2362 = vld [vmem:[%s1358] sm:$0xf]
    %v2363 = vld [vmem:[%s1358 + $0x4] sm:$0xf]
    %v2364 = vld [vmem:[%s1358 + $0x8] sm:$0xf]
    %v2365 = vld [vmem:[%s1358 + $0xc] sm:$0xf]
    %v2366 = vld [vmem:[%s1358 + $0x10] sm:$0xf]
    %v2367 = vld [vmem:[%s1358 + $0x14] sm:$0xf]
    %v2368 = vld [vmem:[#allocation5] sm:$0xf]
    %v2369 = vld [vmem:[#allocation5 + $0x4] sm:$0xf]
    %v2370 = vld [vmem:[#allocation5 + $0x8] sm:$0xf]
    %v2371 = vld [vmem:[%s1436] sm:$0xf]
    %v2372 = vld [vmem:[%s1436 + $0x4] sm:$0xf]
    %v2373 = vld [vmem:[%s1436 + $0x8] sm:$0xf]
    %v2374 = vld [vmem:[%s1436 + $0xc] sm:$0xf]
    %v2375 = vld [vmem:[%s1436 + $0x10] sm:$0xf]
    %v2376 = vld [vmem:[%s1436 + $0x14] sm:$0xf]
    %v2377 = vld [vmem:[%s169] sm:$0xf]
    %v2378 = vld [vmem:[%s169 + $0x4] sm:$0xf]
    %v2379 = vld [vmem:[%s169 + $0x8] sm:$0xf]
    %v2386 = vunpack.c.l.b16 %v2371
    %v2387 = vunpack.c.l.b16 %v2372
    %v2388 = vunpack.c.l.b16 %v2373
    %v2389 = vunpack.c.l.b16 %v2374
    %v2390 = vunpack.c.l.b16 %v2375
    %v2391 = vunpack.c.l.b16 %v2376
    %v2392 = vpack.c.b16 %v2387, %v2386
    %v2393 = vpack.c.b16 %v2389, %v2388
    %v2394 = vpack.c.b16 %v2391, %v2390
    %v2398 = vunpack.c.l.b16 %v2377
    %v2399 = vunpack.c.l.b16 %v2378
    %v2400 = vunpack.c.l.b16 %v2379
    %v2401 = vpack.c.b16 %v2399, %v2398
    %v2402 = vpack.c.b16 %v2400, %v2400
    %v2405 = vsel %vm197, %v2392, 0
    %v2408 = vsel %vm197, %v2393, 0
    %v2411 = vsel %vm197, %v2394, 0
    %v2414 = vsel %vm207, %v2402, 0
    %2416 = vmatpush.bf16.msra.mxu0 0
    %2417 = vmatpush.bf16.msra.mxu0 0
    %2418 = vmatpush.bf16.msra.mxu0 0
    %2419 = vmatpush.bf16.msra.mxu0 0
    %2420 = vmatpush.bf16.msra.mxu0 0
    %2421 = vmatpush.bf16.msra.mxu0 0
    %2422 = vmatpush.bf16.msra.mxu0 %v2414
    %2423 = vmatpush.bf16.msra.mxu0 %v2401
    %2424 = vmatmul.bf16.gmra.mxu0 %v2405
    %v2425 = vpop.f32.mrf.mxu0
    %v2426 = vadd.f32 0.0, %v2425
    %v2427 = vpop.f32.mrf.mxu0
    %v2428 = vadd.f32 0.0, %v2427
    %2429 = vmatmul.bf16.gmra.mxu0 %v2408
    %v2430 = vpop.f32.mrf.mxu0
    %v2431 = vadd.f32 0.0, %v2430
    %v2432 = vpop.f32.mrf.mxu0
    %v2433 = vadd.f32 0.0, %v2432
    %2434 = vmatmul.bf16.gmra.mxu0 %v2411
    %v2435 = vpop.f32.mrf.mxu0
    %v2436 = vadd.f32 0.0, %v2435
    %v2437 = vpop.f32.mrf.mxu0
    %v2438 = vadd.f32 0.0, %v2437
    %2439 = vdwg.mxu0
    %v2446 = vunpack.c.l.b16 %v2362
    %v2447 = vunpack.c.l.b16 %v2363
    %v2448 = vunpack.c.l.b16 %v2364
    %v2449 = vunpack.c.l.b16 %v2365
    %v2450 = vunpack.c.l.b16 %v2366
    %v2451 = vunpack.c.l.b16 %v2367
    %v2452 = vpack.c.b16 %v2447, %v2446
    %v2453 = vpack.c.b16 %v2449, %v2448
    %v2454 = vpack.c.b16 %v2451, %v2450
    %v2458 = vunpack.c.l.b16 %v2368
    %v2459 = vunpack.c.l.b16 %v2369
    %v2460 = vunpack.c.l.b16 %v2370
    %v2461 = vpack.c.b16 %v2459, %v2458
    %v2462 = vpack.c.b16 %v2460, %v2460
    %v2465 = vsel %vm197, %v2452, 0
    %v2468 = vsel %vm197, %v2453, 0
    %v2471 = vsel %vm197, %v2454, 0
    %v2474 = vsel %vm207, %v2462, 0
    %2476 = vmatpush.bf16.msra.mxu0 0
    %2477 = vmatpush.bf16.msra.mxu0 0
    %2478 = vmatpush.bf16.msra.mxu0 0
    %2479 = vmatpush.bf16.msra.mxu0 0
    %2480 = vmatpush.bf16.msra.mxu0 0
    %2481 = vmatpush.bf16.msra.mxu0 0
    %2482 = vmatpush.bf16.msra.mxu0 %v2474
    %2483 = vmatpush.bf16.msra.mxu0 %v2461
    %2484 = vmatmul.bf16.gmra.mxu0 %v2465
    %v2485 = vpop.f32.mrf.mxu0
    %v2486 = vadd.f32 %v2426, %v2485
    %v2487 = vpop.f32.mrf.mxu0
    %v2488 = vadd.f32 %v2428, %v2487
    %2489 = vmatmul.bf16.gmra.mxu0 %v2468
    %v2490 = vpop.f32.mrf.mxu0
    %v2491 = vadd.f32 %v2431, %v2490
    %v2492 = vpop.f32.mrf.mxu0
    %v2493 = vadd.f32 %v2433, %v2492
    %2494 = vmatmul.bf16.gmra.mxu0 %v2471
    %v2495 = vpop.f32.mrf.mxu0
    %v2496 = vadd.f32 %v2436, %v2495
    %v2497 = vpop.f32.mrf.mxu0
    %v2498 = vadd.f32 %v2438, %v2497
    %2499 = vdwg.mxu0
    %v2500 = vld [vmem:[%s1514] sm:$0xf]
    %v2501 = vld [vmem:[%s1514 + $0x4] sm:$0xf]
    %v2502 = vld [vmem:[%s1514 + $0x8] sm:$0xf]
    %v2503 = vld [vmem:[%s1514 + $0xc] sm:$0xf]
    %v2504 = vld [vmem:[%s1514 + $0x10] sm:$0xf]
    %v2505 = vld [vmem:[%s1514 + $0x14] sm:$0xf]
    %v2506 = vld [vmem:[%s305] sm:$0xf]
    %v2507 = vld [vmem:[%s305 + $0x4] sm:$0xf]
    %v2508 = vld [vmem:[%s305 + $0x8] sm:$0xf]
    %v2515 = vunpack.c.l.b16 %v2500
    %v2516 = vunpack.c.l.b16 %v2501
    %v2517 = vunpack.c.l.b16 %v2502
    %v2518 = vunpack.c.l.b16 %v2503
    %v2519 = vunpack.c.l.b16 %v2504
    %v2520 = vunpack.c.l.b16 %v2505
    %v2521 = vpack.c.b16 %v2516, %v2515
    %v2522 = vpack.c.b16 %v2518, %v2517
    %v2523 = vpack.c.b16 %v2520, %v2519
    %v2527 = vunpack.c.l.b16 %v2506
    %v2528 = vunpack.c.l.b16 %v2507
    %v2529 = vunpack.c.l.b16 %v2508
    %v2530 = vpack.c.b16 %v2528, %v2527
    %v2531 = vpack.c.b16 %v2529, %v2529
    %v2534 = vsel %vm197, %v2521, 0
    %v2537 = vsel %vm197, %v2522, 0
    %v2540 = vsel %vm197, %v2523, 0
    %v2543 = vsel %vm207, %v2531, 0
    %2545 = vmatpush.bf16.msra.mxu0 0
    %2546 = vmatpush.bf16.msra.mxu0 0
    %2547 = vmatpush.bf16.msra.mxu0 0
    %2548 = vmatpush.bf16.msra.mxu0 0
    %2549 = vmatpush.bf16.msra.mxu0 0
    %2550 = vmatpush.bf16.msra.mxu0 0
    %2551 = vmatpush.bf16.msra.mxu0 %v2543
    %2552 = vmatpush.bf16.msra.mxu0 %v2530
    %2553 = vmatmul.bf16.gmra.mxu0 %v2534
    %v2554 = vpop.f32.mrf.mxu0
    %v2555 = vadd.f32 0.0, %v2554
    %v2556 = vpop.f32.mrf.mxu0
    %v2557 = vadd.f32 0.0, %v2556
    %2558 = vmatmul.bf16.gmra.mxu0 %v2537
    %v2559 = vpop.f32.mrf.mxu0
    %v2560 = vadd.f32 0.0, %v2559
    %v2561 = vpop.f32.mrf.mxu0
    %v2562 = vadd.f32 0.0, %v2561
    %2563 = vmatmul.bf16.gmra.mxu0 %v2540
    %v2564 = vpop.f32.mrf.mxu0
    %v2565 = vadd.f32 0.0, %v2564
    %v2566 = vpop.f32.mrf.mxu0
    %v2567 = vadd.f32 0.0, %v2566
    %2568 = vdwg.mxu0
    %v2569 = vadd.f32 %v2486, %v2555
    %v2570 = vadd.f32 %v2488, %v2557
    %v2571 = vadd.f32 %v2491, %v2560
    %v2572 = vadd.f32 %v2493, %v2562
    %v2573 = vadd.f32 %v2496, %v2565
    %v2574 = vadd.f32 %v2498, %v2567
    %v2575 = vld [vmem:[%s2081] sm:$0xf]
    %v2576 = vld [vmem:[%s2081 + $0x4] sm:$0xf]
    %v2577 = vld [vmem:[%s2081 + $0x8] sm:$0xf]
    %v2578 = vld [vmem:[%s2081 + $0xc] sm:$0xf]
    %v2579 = vld [vmem:[%s2081 + $0x10] sm:$0xf]
    %v2580 = vld [vmem:[%s2081 + $0x14] sm:$0xf]
    %v2581 = vld [vmem:[%s386] sm:$0xf]
    %v2582 = vld [vmem:[%s386 + $0x4] sm:$0xf]
    %v2583 = vld [vmem:[%s386 + $0x8] sm:$0xf]
    %v2590 = vunpack.c.l.b16 %v2575
    %v2591 = vunpack.c.l.b16 %v2576
    %v2592 = vunpack.c.l.b16 %v2577
    %v2593 = vunpack.c.l.b16 %v2578
    %v2594 = vunpack.c.l.b16 %v2579
    %v2595 = vunpack.c.l.b16 %v2580
    %v2596 = vpack.c.b16 %v2591, %v2590
    %v2597 = vpack.c.b16 %v2593, %v2592
    %v2598 = vpack.c.b16 %v2595, %v2594
    %v2602 = vunpack.c.l.b16 %v2581
    %v2603 = vunpack.c.l.b16 %v2582
    %v2604 = vunpack.c.l.b16 %v2583
    %v2605 = vpack.c.b16 %v2603, %v2602
    %v2606 = vpack.c.b16 %v2604, %v2604
    %v2609 = vsel %vm197, %v2596, 0
    %v2612 = vsel %vm197, %v2597, 0
    %v2615 = vsel %vm197, %v2598, 0
    %v2618 = vsel %vm207, %v2606, 0
    %2620 = vmatpush.bf16.msra.mxu0 0
    %2621 = vmatpush.bf16.msra.mxu0 0
    %2622 = vmatpush.bf16.msra.mxu0 0
    %2623 = vmatpush.bf16.msra.mxu0 0
    %2624 = vmatpush.bf16.msra.mxu0 0
    %2625 = vmatpush.bf16.msra.mxu0 0
    %2626 = vmatpush.bf16.msra.mxu0 %v2618
    %2627 = vmatpush.bf16.msra.mxu0 %v2605
    %2628 = vmatmul.bf16.gmra.mxu0 %v2609
    %v2629 = vpop.f32.mrf.mxu0
    %v2630 = vadd.f32 0.0, %v2629
    %v2631 = vpop.f32.mrf.mxu0
    %v2632 = vadd.f32 0.0, %v2631
    %2633 = vmatmul.bf16.gmra.mxu0 %v2612
    %v2634 = vpop.f32.mrf.mxu0
    %v2635 = vadd.f32 0.0, %v2634
    %v2636 = vpop.f32.mrf.mxu0
    %v2637 = vadd.f32 0.0, %v2636
    %2638 = vmatmul.bf16.gmra.mxu0 %v2615
    %v2639 = vpop.f32.mrf.mxu0
    %v2640 = vadd.f32 0.0, %v2639
    %v2641 = vpop.f32.mrf.mxu0
    %v2642 = vadd.f32 0.0, %v2641
    %2643 = vdwg.mxu0
    %v2644 = vadd.f32 %v2569, %v2630
    %v2645 = vadd.f32 %v2570, %v2632
    %v2646 = vadd.f32 %v2571, %v2635
    %v2647 = vadd.f32 %v2572, %v2637
    %v2648 = vadd.f32 %v2573, %v2640
    %v2649 = vadd.f32 %v2574, %v2642
    %v2650 = vld [vmem:[%s2159] sm:$0xf]
    %v2651 = vld [vmem:[%s2159 + $0x4] sm:$0xf]
    %v2652 = vld [vmem:[%s2159 + $0x8] sm:$0xf]
    %v2653 = vld [vmem:[%s2159 + $0xc] sm:$0xf]
    %v2654 = vld [vmem:[%s2159 + $0x10] sm:$0xf]
    %v2655 = vld [vmem:[%s2159 + $0x14] sm:$0xf]
    %v2656 = vld [vmem:[%s465] sm:$0xf]
    %v2657 = vld [vmem:[%s465 + $0x4] sm:$0xf]
    %v2658 = vld [vmem:[%s465 + $0x8] sm:$0xf]
    %v2665 = vunpack.c.l.b16 %v2650
    %v2666 = vunpack.c.l.b16 %v2651
    %v2667 = vunpack.c.l.b16 %v2652
    %v2668 = vunpack.c.l.b16 %v2653
    %v2669 = vunpack.c.l.b16 %v2654
    %v2670 = vunpack.c.l.b16 %v2655
    %v2671 = vpack.c.b16 %v2666, %v2665
    %v2672 = vpack.c.b16 %v2668, %v2667
    %v2673 = vpack.c.b16 %v2670, %v2669
    %v2677 = vunpack.c.l.b16 %v2656
    %v2678 = vunpack.c.l.b16 %v2657
    %v2679 = vunpack.c.l.b16 %v2658
    %v2680 = vpack.c.b16 %v2678, %v2677
    %v2681 = vpack.c.b16 %v2679, %v2679
    %v2684 = vsel %vm197, %v2671, 0
    %v2687 = vsel %vm197, %v2672, 0
    %v2690 = vsel %vm197, %v2673, 0
    %v2693 = vsel %vm207, %v2681, 0
    %2695 = vmatpush.bf16.msra.mxu0 0
    %2696 = vmatpush.bf16.msra.mxu0 0
    %2697 = vmatpush.bf16.msra.mxu0 0
    %2698 = vmatpush.bf16.msra.mxu0 0
    %2699 = vmatpush.bf16.msra.mxu0 0
    %2700 = vmatpush.bf16.msra.mxu0 0
    %2701 = vmatpush.bf16.msra.mxu0 %v2693
    %2702 = vmatpush.bf16.msra.mxu0 %v2680
    %2703 = vmatmul.bf16.gmra.mxu0 %v2684
    %v2704 = vpop.f32.mrf.mxu0
    %v2705 = vadd.f32 0.0, %v2704
    %v2706 = vpop.f32.mrf.mxu0
    %v2707 = vadd.f32 0.0, %v2706
    %2708 = vmatmul.bf16.gmra.mxu0 %v2687
    %v2709 = vpop.f32.mrf.mxu0
    %v2710 = vadd.f32 0.0, %v2709
    %v2711 = vpop.f32.mrf.mxu0
    %v2712 = vadd.f32 0.0, %v2711
    %2713 = vmatmul.bf16.gmra.mxu0 %v2690
    %v2714 = vpop.f32.mrf.mxu0
    %v2715 = vadd.f32 0.0, %v2714
    %v2716 = vpop.f32.mrf.mxu0
    %v2717 = vadd.f32 0.0, %v2716
    %2718 = vdwg.mxu0
    %v2719 = vadd.f32 %v2644, %v2705
    %v2720 = vadd.f32 %v2645, %v2707
    %v2721 = vadd.f32 %v2646, %v2710
    %v2722 = vadd.f32 %v2647, %v2712
    %v2723 = vadd.f32 %v2648, %v2715
    %v2724 = vadd.f32 %v2649, %v2717
    %v2725 = vld [vmem:[%s2237] sm:$0xf]
    %v2726 = vld [vmem:[%s2237 + $0x4] sm:$0xf]
    %v2727 = vld [vmem:[%s2237 + $0x8] sm:$0xf]
    %v2728 = vld [vmem:[%s2237 + $0xc] sm:$0xf]
    %v2729 = vld [vmem:[%s2237 + $0x10] sm:$0xf]
    %v2730 = vld [vmem:[%s2237 + $0x14] sm:$0xf]
    %v2731 = vld [vmem:[%s544] sm:$0xf]
    %v2732 = vld [vmem:[%s544 + $0x4] sm:$0xf]
    %v2733 = vld [vmem:[%s544 + $0x8] sm:$0xf]
    %v2740 = vunpack.c.l.b16 %v2725
    %v2741 = vunpack.c.l.b16 %v2726
    %v2742 = vunpack.c.l.b16 %v2727
    %v2743 = vunpack.c.l.b16 %v2728
    %v2744 = vunpack.c.l.b16 %v2729
    %v2745 = vunpack.c.l.b16 %v2730
    %v2746 = vpack.c.b16 %v2741, %v2740
    %v2747 = vpack.c.b16 %v2743, %v2742
    %v2748 = vpack.c.b16 %v2745, %v2744
    %v2752 = vunpack.c.l.b16 %v2731
    %v2753 = vunpack.c.l.b16 %v2732
    %v2754 = vunpack.c.l.b16 %v2733
    %v2755 = vpack.c.b16 %v2753, %v2752
    %v2756 = vpack.c.b16 %v2754, %v2754
    %v2759 = vsel %vm197, %v2746, 0
    %v2762 = vsel %vm197, %v2747, 0
    %v2765 = vsel %vm197, %v2748, 0
    %v2768 = vsel %vm207, %v2756, 0
    %2770 = vmatpush.bf16.msra.mxu0 0
    %2771 = vmatpush.bf16.msra.mxu0 0
    %2772 = vmatpush.bf16.msra.mxu0 0
    %2773 = vmatpush.bf16.msra.mxu0 0
    %2774 = vmatpush.bf16.msra.mxu0 0
    %2775 = vmatpush.bf16.msra.mxu0 0
    %2776 = vmatpush.bf16.msra.mxu0 %v2768
    %2777 = vmatpush.bf16.msra.mxu0 %v2755
    %2778 = vmatmul.bf16.gmra.mxu0 %v2759
    %v2779 = vpop.f32.mrf.mxu0
    %v2780 = vadd.f32 0.0, %v2779
    %v2781 = vpop.f32.mrf.mxu0
    %v2782 = vadd.f32 0.0, %v2781
    %2783 = vmatmul.bf16.gmra.mxu0 %v2762
    %v2784 = vpop.f32.mrf.mxu0
    %v2785 = vadd.f32 0.0, %v2784
    %v2786 = vpop.f32.mrf.mxu0
    %v2787 = vadd.f32 0.0, %v2786
    %2788 = vmatmul.bf16.gmra.mxu0 %v2765
    %v2789 = vpop.f32.mrf.mxu0
    %v2790 = vadd.f32 0.0, %v2789
    %v2791 = vpop.f32.mrf.mxu0
    %v2792 = vadd.f32 0.0, %v2791
    %2793 = vdwg.mxu0
    %v2794 = vadd.f32 %v2719, %v2780
    %v2795 = vadd.f32 %v2720, %v2782
    %v2796 = vadd.f32 %v2721, %v2785
    %v2797 = vadd.f32 %v2722, %v2787
    %v2798 = vadd.f32 %v2723, %v2790
    %v2799 = vadd.f32 %v2724, %v2792
    %s2800 = sadd.s32 %s51, 5
    %s2801 = smul.u32 %s2800, 8
    %s2802 = sadd.s32 %s52, %s2801
    %s2803 = smul.addr %s2802, 4
    %s2804 = scalar_lea.vmem [#allocation2], %s2803
    %v2805 = vld [vmem:[%s2804] sm:$0xf]
    %v2806 = vld [vmem:[%s2804 + $0x4] sm:$0xf]
    %v2807 = vld [vmem:[%s2804 + $0x8] sm:$0xf]
    %v2808 = vld [vmem:[%s2804 + $0xc] sm:$0xf]
    %v2809 = vld [vmem:[%s2804 + $0x10] sm:$0xf]
    %v2810 = vld [vmem:[%s2804 + $0x14] sm:$0xf]
    %v2811 = vld [vmem:[%s625] sm:$0xf]
    %v2812 = vld [vmem:[%s625 + $0x4] sm:$0xf]
    %v2813 = vld [vmem:[%s625 + $0x8] sm:$0xf]
    %v2820 = vunpack.c.l.b16 %v2805
    %v2821 = vunpack.c.l.b16 %v2806
    %v2822 = vunpack.c.l.b16 %v2807
    %v2823 = vunpack.c.l.b16 %v2808
    %v2824 = vunpack.c.l.b16 %v2809
    %v2825 = vunpack.c.l.b16 %v2810
    %v2826 = vpack.c.b16 %v2821, %v2820
    %v2827 = vpack.c.b16 %v2823, %v2822
    %v2828 = vpack.c.b16 %v2825, %v2824
    %v2832 = vunpack.c.l.b16 %v2811
    %v2833 = vunpack.c.l.b16 %v2812
    %v2834 = vunpack.c.l.b16 %v2813
    %v2835 = vpack.c.b16 %v2833, %v2832
    %v2836 = vpack.c.b16 %v2834, %v2834
    %v2839 = vsel %vm197, %v2826, 0
    %v2842 = vsel %vm197, %v2827, 0
    %v2845 = vsel %vm197, %v2828, 0
    %v2848 = vsel %vm207, %v2836, 0
    %2850 = vmatpush.bf16.msra.mxu0 0
    %2851 = vmatpush.bf16.msra.mxu0 0
    %2852 = vmatpush.bf16.msra.mxu0 0
    %2853 = vmatpush.bf16.msra.mxu0 0
    %2854 = vmatpush.bf16.msra.mxu0 0
    %2855 = vmatpush.bf16.msra.mxu0 0
    %2856 = vmatpush.bf16.msra.mxu0 %v2848
    %2857 = vmatpush.bf16.msra.mxu0 %v2835
    %2858 = vmatmul.bf16.gmra.mxu0 %v2839
    %v2859 = vpop.f32.mrf.mxu0
    %v2860 = vadd.f32 0.0, %v2859
    %v2861 = vpop.f32.mrf.mxu0
    %v2862 = vadd.f32 0.0, %v2861
    %2863 = vmatmul.bf16.gmra.mxu0 %v2842
    %v2864 = vpop.f32.mrf.mxu0
    %v2865 = vadd.f32 0.0, %v2864
    %v2866 = vpop.f32.mrf.mxu0
    %v2867 = vadd.f32 0.0, %v2866
    %2868 = vmatmul.bf16.gmra.mxu0 %v2845
    %v2869 = vpop.f32.mrf.mxu0
    %v2870 = vadd.f32 0.0, %v2869
    %v2871 = vpop.f32.mrf.mxu0
    %v2872 = vadd.f32 0.0, %v2871
    %2873 = vdwg.mxu0
    %v2874 = vadd.f32 %v2794, %v2860
    %v2875 = vadd.f32 %v2795, %v2862
    %v2876 = vadd.f32 %v2796, %v2865
    %v2877 = vadd.f32 %v2797, %v2867
    %v2878 = vadd.f32 %v2798, %v2870
    %v2879 = vadd.f32 %v2799, %v2872
    %s2880 = sadd.s32 %s159, %s2801
    %s2881 = smul.addr %s2880, 4
    %s2882 = scalar_lea.vmem [#allocation2], %s2881
    %v2883 = vld [vmem:[%s2882] sm:$0xf]
    %v2884 = vld [vmem:[%s2882 + $0x4] sm:$0xf]
    %v2885 = vld [vmem:[%s2882 + $0x8] sm:$0xf]
    %v2886 = vld [vmem:[%s2882 + $0xc] sm:$0xf]
    %v2887 = vld [vmem:[%s2882 + $0x10] sm:$0xf]
    %v2888 = vld [vmem:[%s2882 + $0x14] sm:$0xf]
    %v2889 = vld [vmem:[%s704] sm:$0xf]
    %v2890 = vld [vmem:[%s704 + $0x4] sm:$0xf]
    %v2891 = vld [vmem:[%s704 + $0x8] sm:$0xf]
    %v2898 = vunpack.c.l.b16 %v2883
    %v2899 = vunpack.c.l.b16 %v2884
    %v2900 = vunpack.c.l.b16 %v2885
    %v2901 = vunpack.c.l.b16 %v2886
    %v2902 = vunpack.c.l.b16 %v2887
    %v2903 = vunpack.c.l.b16 %v2888
    %v2904 = vpack.c.b16 %v2899, %v2898
    %v2905 = vpack.c.b16 %v2901, %v2900
    %v2906 = vpack.c.b16 %v2903, %v2902
    %v2910 = vunpack.c.l.b16 %v2889
    %v2911 = vunpack.c.l.b16 %v2890
    %v2912 = vunpack.c.l.b16 %v2891
    %v2913 = vpack.c.b16 %v2911, %v2910
    %v2914 = vpack.c.b16 %v2912, %v2912
    %v2917 = vsel %vm197, %v2904, 0
    %v2920 = vsel %vm197, %v2905, 0
    %v2923 = vsel %vm197, %v2906, 0
    %v2926 = vsel %vm207, %v2914, 0
    %2928 = vmatpush.bf16.msra.mxu0 0
    %2929 = vmatpush.bf16.msra.mxu0 0
    %2930 = vmatpush.bf16.msra.mxu0 0
    %2931 = vmatpush.bf16.msra.mxu0 0
    %2932 = vmatpush.bf16.msra.mxu0 0
    %2933 = vmatpush.bf16.msra.mxu0 0
    %2934 = vmatpush.bf16.msra.mxu0 %v2926
    %2935 = vmatpush.bf16.msra.mxu0 %v2913
    %2936 = vmatmul.bf16.gmra.mxu0 %v2917
    %v2937 = vpop.f32.mrf.mxu0
    %v2938 = vadd.f32 0.0, %v2937
    %v2939 = vpop.f32.mrf.mxu0
    %v2940 = vadd.f32 0.0, %v2939
    %2941 = vmatmul.bf16.gmra.mxu0 %v2920
    %v2942 = vpop.f32.mrf.mxu0
    %v2943 = vadd.f32 0.0, %v2942
    %v2944 = vpop.f32.mrf.mxu0
    %v2945 = vadd.f32 0.0, %v2944
    %2946 = vmatmul.bf16.gmra.mxu0 %v2923
    %v2947 = vpop.f32.mrf.mxu0
    %v2948 = vadd.f32 0.0, %v2947
    %v2949 = vpop.f32.mrf.mxu0
    %v2950 = vadd.f32 0.0, %v2949
    %2951 = vdwg.mxu0
    %v2952 = vadd.f32 %v2874, %v2938
    %v2953 = vadd.f32 %v2875, %v2940
    %v2954 = vadd.f32 %v2876, %v2943
    %v2955 = vadd.f32 %v2877, %v2945
    %v2956 = vadd.f32 %v2878, %v2948
    %v2957 = vadd.f32 %v2879, %v2950
    %s2958 = sadd.s32 %s295, %s2801
    %s2959 = smul.addr %s2958, 4
    %s2960 = scalar_lea.vmem [#allocation2], %s2959
    %v2961 = vld [vmem:[%s2960] sm:$0xf]
    %v2962 = vld [vmem:[%s2960 + $0x4] sm:$0xf]
    %v2963 = vld [vmem:[%s2960 + $0x8] sm:$0xf]
    %v2964 = vld [vmem:[%s2960 + $0xc] sm:$0xf]
    %v2965 = vld [vmem:[%s2960 + $0x10] sm:$0xf]
    %v2966 = vld [vmem:[%s2960 + $0x14] sm:$0xf]
    %v2967 = vld [vmem:[%s783] sm:$0xf]
    %v2968 = vld [vmem:[%s783 + $0x4] sm:$0xf]
    %v2969 = vld [vmem:[%s783 + $0x8] sm:$0xf]
    %v2976 = vunpack.c.l.b16 %v2961
    %v2977 = vunpack.c.l.b16 %v2962
    %v2978 = vunpack.c.l.b16 %v2963
    %v2979 = vunpack.c.l.b16 %v2964
    %v2980 = vunpack.c.l.b16 %v2965
    %v2981 = vunpack.c.l.b16 %v2966
    %v2982 = vpack.c.b16 %v2977, %v2976
    %v2983 = vpack.c.b16 %v2979, %v2978
    %v2984 = vpack.c.b16 %v2981, %v2980
    %v2988 = vunpack.c.l.b16 %v2967
    %v2989 = vunpack.c.l.b16 %v2968
    %v2990 = vunpack.c.l.b16 %v2969
    %v2991 = vpack.c.b16 %v2989, %v2988
    %v2992 = vpack.c.b16 %v2990, %v2990
    %v2995 = vsel %vm197, %v2982, 0
    %v2998 = vsel %vm197, %v2983, 0
    %v3001 = vsel %vm197, %v2984, 0
    %v3004 = vsel %vm207, %v2992, 0
    %3006 = vmatpush.bf16.msra.mxu0 0
    %3007 = vmatpush.bf16.msra.mxu0 0
    %3008 = vmatpush.bf16.msra.mxu0 0
    %3009 = vmatpush.bf16.msra.mxu0 0
    %3010 = vmatpush.bf16.msra.mxu0 0
    %3011 = vmatpush.bf16.msra.mxu0 0
    %3012 = vmatpush.bf16.msra.mxu0 %v3004
    %3013 = vmatpush.bf16.msra.mxu0 %v2991
    %3014 = vmatmul.bf16.gmra.mxu0 %v2995
    %v3015 = vpop.f32.mrf.mxu0
    %v3016 = vadd.f32 0.0, %v3015
    %v3017 = vpop.f32.mrf.mxu0
    %v3018 = vadd.f32 0.0, %v3017
    %3019 = vmatmul.bf16.gmra.mxu0 %v2998
    %v3020 = vpop.f32.mrf.mxu0
    %v3021 = vadd.f32 0.0, %v3020
    %v3022 = vpop.f32.mrf.mxu0
    %v3023 = vadd.f32 0.0, %v3022
    %3024 = vmatmul.bf16.gmra.mxu0 %v3001
    %v3025 = vpop.f32.mrf.mxu0
    %v3026 = vadd.f32 0.0, %v3025
    %v3027 = vpop.f32.mrf.mxu0
    %v3028 = vadd.f32 0.0, %v3027
    %3029 = vdwg.mxu0
    %v3030 = vadd.f32 %v2952, %v3016
    %v3031 = vadd.f32 %v2953, %v3018
    %v3032 = vadd.f32 %v2954, %v3021
    %v3033 = vadd.f32 %v2955, %v3023
    %v3034 = vadd.f32 %v2956, %v3026
    %v3035 = vadd.f32 %v2957, %v3028
    %v3036 = vadd.f32 %v3030, %v854
    %v3037 = vadd.f32 %v3031, %v854
    %v3038 = vadd.f32 %v3032, %v854
    %v3039 = vadd.f32 %v3033, %v854
    %v3040 = vadd.f32 %v3034, %v854
    %v3041 = vadd.f32 %v3035, %v854
    %v3042 = vsel %vm868, %v3036, 0.0
    %v3043 = vsel %vm869, %v3037, 0.0
    %v3044 = vsel %vm870, %v3038, 0.0
    %v3045 = vsel %vm871, %v3039, 0.0
    %v3046 = vsel %vm872, %v3040, 0.0
    %v3047 = vsel %vm873, %v3041, 0.0
    %v3048 = vadd.f32 %v3042, %v3043
    %v3049 = vadd.f32 %v3048, %v3044
    %v3050 = vadd.f32 %v3049, %v3045
    %v3051 = vadd.f32 %v3050, %v3046
    %v3052 = vadd.f32 %v3051, %v3047
    %v3053 = vrot.slane %v3052, 4
    %v3054 = vadd.f32 %v3052, %v3053
    %v3055 = vrot.slane %v3054, 2
    %v3056 = vadd.f32 %v3054, %v3055
    %v3057 = vrot.slane %v3056, 1
    %v3058 = vadd.f32 %v3056, %v3057
    %v3059 = vadd.f32 %v2336, %v3058
    %v3060 = vmul.f32 %v3042, %v3042
    %v3061 = vmul.f32 %v3043, %v3043
    %v3062 = vmul.f32 %v3044, %v3044
    %v3063 = vmul.f32 %v3045, %v3045
    %v3064 = vmul.f32 %v3046, %v3046
    %v3065 = vmul.f32 %v3047, %v3047
    %v3066 = vadd.f32 %v3060, %v3061
    %v3067 = vadd.f32 %v3066, %v3062
    %v3068 = vadd.f32 %v3067, %v3063
    %v3069 = vadd.f32 %v3068, %v3064
    %v3070 = vadd.f32 %v3069, %v3065
    %v3071 = vrot.slane %v3070, 4
    %v3072 = vadd.f32 %v3070, %v3071
    %v3073 = vrot.slane %v3072, 2
    %v3074 = vadd.f32 %v3072, %v3073
    %v3075 = vrot.slane %v3074, 1
    %v3076 = vadd.f32 %v3074, %v3075
    %v3077 = vadd.f32 %v2354, %v3076
    %s3078 = scalar_lea.vmem [#allocation7], 144
    %3079 = vst [vmem:[%s3078] sm:$0xff] %v3036
    %3080 = vst [vmem:[%s3078 + $0x8] sm:$0xff] %v3037
    %3081 = vst [vmem:[%s3078 + $0x10] sm:$0xff] %v3038
    %3082 = vst [vmem:[%s3078 + $0x18] sm:$0xff] %v3039
    %3083 = vst [vmem:[%s3078 + $0x20] sm:$0xff] %v3040
    %3084 = vst [vmem:[%s3078 + $0x28] sm:$0xff] %v3041
    %v3085 = vld [vmem:[%s2081] sm:$0xf]
    %v3086 = vld [vmem:[%s2081 + $0x4] sm:$0xf]
    %v3087 = vld [vmem:[%s2081 + $0x8] sm:$0xf]
    %v3088 = vld [vmem:[%s2081 + $0xc] sm:$0xf]
    %v3089 = vld [vmem:[%s2081 + $0x10] sm:$0xf]
    %v3090 = vld [vmem:[%s2081 + $0x14] sm:$0xf]
    %v3091 = vld [vmem:[#allocation5] sm:$0xf]
    %v3092 = vld [vmem:[#allocation5 + $0x4] sm:$0xf]
    %v3093 = vld [vmem:[#allocation5 + $0x8] sm:$0xf]
    %v3094 = vld [vmem:[%s2159] sm:$0xf]
    %v3095 = vld [vmem:[%s2159 + $0x4] sm:$0xf]
    %v3096 = vld [vmem:[%s2159 + $0x8] sm:$0xf]
    %v3097 = vld [vmem:[%s2159 + $0xc] sm:$0xf]
    %v3098 = vld [vmem:[%s2159 + $0x10] sm:$0xf]
    %v3099 = vld [vmem:[%s2159 + $0x14] sm:$0xf]
    %v3100 = vld [vmem:[%s169] sm:$0xf]
    %v3101 = vld [vmem:[%s169 + $0x4] sm:$0xf]
    %v3102 = vld [vmem:[%s169 + $0x8] sm:$0xf]
    %v3109 = vunpack.c.l.b16 %v3094
    %v3110 = vunpack.c.l.b16 %v3095
    %v3111 = vunpack.c.l.b16 %v3096
    %v3112 = vunpack.c.l.b16 %v3097
    %v3113 = vunpack.c.l.b16 %v3098
    %v3114 = vunpack.c.l.b16 %v3099
    %v3115 = vpack.c.b16 %v3110, %v3109
    %v3116 = vpack.c.b16 %v3112, %v3111
    %v3117 = vpack.c.b16 %v3114, %v3113
    %v3121 = vunpack.c.l.b16 %v3100
    %v3122 = vunpack.c.l.b16 %v3101
    %v3123 = vunpack.c.l.b16 %v3102
    %v3124 = vpack.c.b16 %v3122, %v3121
    %v3125 = vpack.c.b16 %v3123, %v3123
    %v3128 = vsel %vm197, %v3115, 0
    %v3131 = vsel %vm197, %v3116, 0
    %v3134 = vsel %vm197, %v3117, 0
    %v3137 = vsel %vm207, %v3125, 0
    %3139 = vmatpush.bf16.msra.mxu0 0
    %3140 = vmatpush.bf16.msra.mxu0 0
    %3141 = vmatpush.bf16.msra.mxu0 0
    %3142 = vmatpush.bf16.msra.mxu0 0
    %3143 = vmatpush.bf16.msra.mxu0 0
    %3144 = vmatpush.bf16.msra.mxu0 0
    %3145 = vmatpush.bf16.msra.mxu0 %v3137
    %3146 = vmatpush.bf16.msra.mxu0 %v3124
    %3147 = vmatmul.bf16.gmra.mxu0 %v3128
    %v3148 = vpop.f32.mrf.mxu0
    %v3149 = vadd.f32 0.0, %v3148
    %v3150 = vpop.f32.mrf.mxu0
    %v3151 = vadd.f32 0.0, %v3150
    %3152 = vmatmul.bf16.gmra.mxu0 %v3131
    %v3153 = vpop.f32.mrf.mxu0
    %v3154 = vadd.f32 0.0, %v3153
    %v3155 = vpop.f32.mrf.mxu0
    %v3156 = vadd.f32 0.0, %v3155
    %3157 = vmatmul.bf16.gmra.mxu0 %v3134
    %v3158 = vpop.f32.mrf.mxu0
    %v3159 = vadd.f32 0.0, %v3158
    %v3160 = vpop.f32.mrf.mxu0
    %v3161 = vadd.f32 0.0, %v3160
    %3162 = vdwg.mxu0
    %v3169 = vunpack.c.l.b16 %v3085
    %v3170 = vunpack.c.l.b16 %v3086
    %v3171 = vunpack.c.l.b16 %v3087
    %v3172 = vunpack.c.l.b16 %v3088
    %v3173 = vunpack.c.l.b16 %v3089
    %v3174 = vunpack.c.l.b16 %v3090
    %v3175 = vpack.c.b16 %v3170, %v3169
    %v3176 = vpack.c.b16 %v3172, %v3171
    %v3177 = vpack.c.b16 %v3174, %v3173
    %v3181 = vunpack.c.l.b16 %v3091
    %v3182 = vunpack.c.l.b16 %v3092
    %v3183 = vunpack.c.l.b16 %v3093
    %v3184 = vpack.c.b16 %v3182, %v3181
    %v3185 = vpack.c.b16 %v3183, %v3183
    %v3188 = vsel %vm197, %v3175, 0
    %v3191 = vsel %vm197, %v3176, 0
    %v3194 = vsel %vm197, %v3177, 0
    %v3197 = vsel %vm207, %v3185, 0
    %3199 = vmatpush.bf16.msra.mxu0 0
    %3200 = vmatpush.bf16.msra.mxu0 0
    %3201 = vmatpush.bf16.msra.mxu0 0
    %3202 = vmatpush.bf16.msra.mxu0 0
    %3203 = vmatpush.bf16.msra.mxu0 0
    %3204 = vmatpush.bf16.msra.mxu0 0
    %3205 = vmatpush.bf16.msra.mxu0 %v3197
    %3206 = vmatpush.bf16.msra.mxu0 %v3184
    %3207 = vmatmul.bf16.gmra.mxu0 %v3188
    %v3208 = vpop.f32.mrf.mxu0
    %v3209 = vadd.f32 %v3149, %v3208
    %v3210 = vpop.f32.mrf.mxu0
    %v3211 = vadd.f32 %v3151, %v3210
    %3212 = vmatmul.bf16.gmra.mxu0 %v3191
    %v3213 = vpop.f32.mrf.mxu0
    %v3214 = vadd.f32 %v3154, %v3213
    %v3215 = vpop.f32.mrf.mxu0
    %v3216 = vadd.f32 %v3156, %v3215
    %3217 = vmatmul.bf16.gmra.mxu0 %v3194
    %v3218 = vpop.f32.mrf.mxu0
    %v3219 = vadd.f32 %v3159, %v3218
    %v3220 = vpop.f32.mrf.mxu0
    %v3221 = vadd.f32 %v3161, %v3220
    %3222 = vdwg.mxu0
    %v3223 = vld [vmem:[%s2237] sm:$0xf]
    %v3224 = vld [vmem:[%s2237 + $0x4] sm:$0xf]
    %v3225 = vld [vmem:[%s2237 + $0x8] sm:$0xf]
    %v3226 = vld [vmem:[%s2237 + $0xc] sm:$0xf]
    %v3227 = vld [vmem:[%s2237 + $0x10] sm:$0xf]
    %v3228 = vld [vmem:[%s2237 + $0x14] sm:$0xf]
    %v3229 = vld [vmem:[%s305] sm:$0xf]
    %v3230 = vld [vmem:[%s305 + $0x4] sm:$0xf]
    %v3231 = vld [vmem:[%s305 + $0x8] sm:$0xf]
    %v3238 = vunpack.c.l.b16 %v3223
    %v3239 = vunpack.c.l.b16 %v3224
    %v3240 = vunpack.c.l.b16 %v3225
    %v3241 = vunpack.c.l.b16 %v3226
    %v3242 = vunpack.c.l.b16 %v3227
    %v3243 = vunpack.c.l.b16 %v3228
    %v3244 = vpack.c.b16 %v3239, %v3238
    %v3245 = vpack.c.b16 %v3241, %v3240
    %v3246 = vpack.c.b16 %v3243, %v3242
    %v3250 = vunpack.c.l.b16 %v3229
    %v3251 = vunpack.c.l.b16 %v3230
    %v3252 = vunpack.c.l.b16 %v3231
    %v3253 = vpack.c.b16 %v3251, %v3250
    %v3254 = vpack.c.b16 %v3252, %v3252
    %v3257 = vsel %vm197, %v3244, 0
    %v3260 = vsel %vm197, %v3245, 0
    %v3263 = vsel %vm197, %v3246, 0
    %v3266 = vsel %vm207, %v3254, 0
    %3268 = vmatpush.bf16.msra.mxu0 0
    %3269 = vmatpush.bf16.msra.mxu0 0
    %3270 = vmatpush.bf16.msra.mxu0 0
    %3271 = vmatpush.bf16.msra.mxu0 0
    %3272 = vmatpush.bf16.msra.mxu0 0
    %3273 = vmatpush.bf16.msra.mxu0 0
    %3274 = vmatpush.bf16.msra.mxu0 %v3266
    %3275 = vmatpush.bf16.msra.mxu0 %v3253
    %3276 = vmatmul.bf16.gmra.mxu0 %v3257
    %v3277 = vpop.f32.mrf.mxu0
    %v3278 = vadd.f32 0.0, %v3277
    %v3279 = vpop.f32.mrf.mxu0
    %v3280 = vadd.f32 0.0, %v3279
    %3281 = vmatmul.bf16.gmra.mxu0 %v3260
    %v3282 = vpop.f32.mrf.mxu0
    %v3283 = vadd.f32 0.0, %v3282
    %v3284 = vpop.f32.mrf.mxu0
    %v3285 = vadd.f32 0.0, %v3284
    %3286 = vmatmul.bf16.gmra.mxu0 %v3263
    %v3287 = vpop.f32.mrf.mxu0
    %v3288 = vadd.f32 0.0, %v3287
    %v3289 = vpop.f32.mrf.mxu0
    %v3290 = vadd.f32 0.0, %v3289
    %3291 = vdwg.mxu0
    %v3292 = vadd.f32 %v3209, %v3278
    %v3293 = vadd.f32 %v3211, %v3280
    %v3294 = vadd.f32 %v3214, %v3283
    %v3295 = vadd.f32 %v3216, %v3285
    %v3296 = vadd.f32 %v3219, %v3288
    %v3297 = vadd.f32 %v3221, %v3290
    %v3298 = vld [vmem:[%s2804] sm:$0xf]
    %v3299 = vld [vmem:[%s2804 + $0x4] sm:$0xf]
    %v3300 = vld [vmem:[%s2804 + $0x8] sm:$0xf]
    %v3301 = vld [vmem:[%s2804 + $0xc] sm:$0xf]
    %v3302 = vld [vmem:[%s2804 + $0x10] sm:$0xf]
    %v3303 = vld [vmem:[%s2804 + $0x14] sm:$0xf]
    %v3304 = vld [vmem:[%s386] sm:$0xf]
    %v3305 = vld [vmem:[%s386 + $0x4] sm:$0xf]
    %v3306 = vld [vmem:[%s386 + $0x8] sm:$0xf]
    %v3313 = vunpack.c.l.b16 %v3298
    %v3314 = vunpack.c.l.b16 %v3299
    %v3315 = vunpack.c.l.b16 %v3300
    %v3316 = vunpack.c.l.b16 %v3301
    %v3317 = vunpack.c.l.b16 %v3302
    %v3318 = vunpack.c.l.b16 %v3303
    %v3319 = vpack.c.b16 %v3314, %v3313
    %v3320 = vpack.c.b16 %v3316, %v3315
    %v3321 = vpack.c.b16 %v3318, %v3317
    %v3325 = vunpack.c.l.b16 %v3304
    %v3326 = vunpack.c.l.b16 %v3305
    %v3327 = vunpack.c.l.b16 %v3306
    %v3328 = vpack.c.b16 %v3326, %v3325
    %v3329 = vpack.c.b16 %v3327, %v3327
    %v3332 = vsel %vm197, %v3319, 0
    %v3335 = vsel %vm197, %v3320, 0
    %v3338 = vsel %vm197, %v3321, 0
    %v3341 = vsel %vm207, %v3329, 0
    %3343 = vmatpush.bf16.msra.mxu0 0
    %3344 = vmatpush.bf16.msra.mxu0 0
    %3345 = vmatpush.bf16.msra.mxu0 0
    %3346 = vmatpush.bf16.msra.mxu0 0
    %3347 = vmatpush.bf16.msra.mxu0 0
    %3348 = vmatpush.bf16.msra.mxu0 0
    %3349 = vmatpush.bf16.msra.mxu0 %v3341
    %3350 = vmatpush.bf16.msra.mxu0 %v3328
    %3351 = vmatmul.bf16.gmra.mxu0 %v3332
    %v3352 = vpop.f32.mrf.mxu0
    %v3353 = vadd.f32 0.0, %v3352
    %v3354 = vpop.f32.mrf.mxu0
    %v3355 = vadd.f32 0.0, %v3354
    %3356 = vmatmul.bf16.gmra.mxu0 %v3335
    %v3357 = vpop.f32.mrf.mxu0
    %v3358 = vadd.f32 0.0, %v3357
    %v3359 = vpop.f32.mrf.mxu0
    %v3360 = vadd.f32 0.0, %v3359
    %3361 = vmatmul.bf16.gmra.mxu0 %v3338
    %v3362 = vpop.f32.mrf.mxu0
    %v3363 = vadd.f32 0.0, %v3362
    %v3364 = vpop.f32.mrf.mxu0
    %v3365 = vadd.f32 0.0, %v3364
    %3366 = vdwg.mxu0
    %v3367 = vadd.f32 %v3292, %v3353
    %v3368 = vadd.f32 %v3293, %v3355
    %v3369 = vadd.f32 %v3294, %v3358
    %v3370 = vadd.f32 %v3295, %v3360
    %v3371 = vadd.f32 %v3296, %v3363
    %v3372 = vadd.f32 %v3297, %v3365
    %v3373 = vld [vmem:[%s2882] sm:$0xf]
    %v3374 = vld [vmem:[%s2882 + $0x4] sm:$0xf]
    %v3375 = vld [vmem:[%s2882 + $0x8] sm:$0xf]
    %v3376 = vld [vmem:[%s2882 + $0xc] sm:$0xf]
    %v3377 = vld [vmem:[%s2882 + $0x10] sm:$0xf]
    %v3378 = vld [vmem:[%s2882 + $0x14] sm:$0xf]
    %v3379 = vld [vmem:[%s465] sm:$0xf]
    %v3380 = vld [vmem:[%s465 + $0x4] sm:$0xf]
    %v3381 = vld [vmem:[%s465 + $0x8] sm:$0xf]
    %v3388 = vunpack.c.l.b16 %v3373
    %v3389 = vunpack.c.l.b16 %v3374
    %v3390 = vunpack.c.l.b16 %v3375
    %v3391 = vunpack.c.l.b16 %v3376
    %v3392 = vunpack.c.l.b16 %v3377
    %v3393 = vunpack.c.l.b16 %v3378
    %v3394 = vpack.c.b16 %v3389, %v3388
    %v3395 = vpack.c.b16 %v3391, %v3390
    %v3396 = vpack.c.b16 %v3393, %v3392
    %v3400 = vunpack.c.l.b16 %v3379
    %v3401 = vunpack.c.l.b16 %v3380
    %v3402 = vunpack.c.l.b16 %v3381
    %v3403 = vpack.c.b16 %v3401, %v3400
    %v3404 = vpack.c.b16 %v3402, %v3402
    %v3407 = vsel %vm197, %v3394, 0
    %v3410 = vsel %vm197, %v3395, 0
    %v3413 = vsel %vm197, %v3396, 0
    %v3416 = vsel %vm207, %v3404, 0
    %3418 = vmatpush.bf16.msra.mxu0 0
    %3419 = vmatpush.bf16.msra.mxu0 0
    %3420 = vmatpush.bf16.msra.mxu0 0
    %3421 = vmatpush.bf16.msra.mxu0 0
    %3422 = vmatpush.bf16.msra.mxu0 0
    %3423 = vmatpush.bf16.msra.mxu0 0
    %3424 = vmatpush.bf16.msra.mxu0 %v3416
    %3425 = vmatpush.bf16.msra.mxu0 %v3403
    %3426 = vmatmul.bf16.gmra.mxu0 %v3407
    %v3427 = vpop.f32.mrf.mxu0
    %v3428 = vadd.f32 0.0, %v3427
    %v3429 = vpop.f32.mrf.mxu0
    %v3430 = vadd.f32 0.0, %v3429
    %3431 = vmatmul.bf16.gmra.mxu0 %v3410
    %v3432 = vpop.f32.mrf.mxu0
    %v3433 = vadd.f32 0.0, %v3432
    %v3434 = vpop.f32.mrf.mxu0
    %v3435 = vadd.f32 0.0, %v3434
    %3436 = vmatmul.bf16.gmra.mxu0 %v3413
    %v3437 = vpop.f32.mrf.mxu0
    %v3438 = vadd.f32 0.0, %v3437
    %v3439 = vpop.f32.mrf.mxu0
    %v3440 = vadd.f32 0.0, %v3439
    %3441 = vdwg.mxu0
    %v3442 = vadd.f32 %v3367, %v3428
    %v3443 = vadd.f32 %v3368, %v3430
    %v3444 = vadd.f32 %v3369, %v3433
    %v3445 = vadd.f32 %v3370, %v3435
    %v3446 = vadd.f32 %v3371, %v3438
    %v3447 = vadd.f32 %v3372, %v3440
    %v3448 = vld [vmem:[%s2960] sm:$0xf]
    %v3449 = vld [vmem:[%s2960 + $0x4] sm:$0xf]
    %v3450 = vld [vmem:[%s2960 + $0x8] sm:$0xf]
    %v3451 = vld [vmem:[%s2960 + $0xc] sm:$0xf]
    %v3452 = vld [vmem:[%s2960 + $0x10] sm:$0xf]
    %v3453 = vld [vmem:[%s2960 + $0x14] sm:$0xf]
    %v3454 = vld [vmem:[%s544] sm:$0xf]
    %v3455 = vld [vmem:[%s544 + $0x4] sm:$0xf]
    %v3456 = vld [vmem:[%s544 + $0x8] sm:$0xf]
    %v3463 = vunpack.c.l.b16 %v3448
    %v3464 = vunpack.c.l.b16 %v3449
    %v3465 = vunpack.c.l.b16 %v3450
    %v3466 = vunpack.c.l.b16 %v3451
    %v3467 = vunpack.c.l.b16 %v3452
    %v3468 = vunpack.c.l.b16 %v3453
    %v3469 = vpack.c.b16 %v3464, %v3463
    %v3470 = vpack.c.b16 %v3466, %v3465
    %v3471 = vpack.c.b16 %v3468, %v3467
    %v3475 = vunpack.c.l.b16 %v3454
    %v3476 = vunpack.c.l.b16 %v3455
    %v3477 = vunpack.c.l.b16 %v3456
    %v3478 = vpack.c.b16 %v3476, %v3475
    %v3479 = vpack.c.b16 %v3477, %v3477
    %v3482 = vsel %vm197, %v3469, 0
    %v3485 = vsel %vm197, %v3470, 0
    %v3488 = vsel %vm197, %v3471, 0
    %v3491 = vsel %vm207, %v3479, 0
    %3493 = vmatpush.bf16.msra.mxu0 0
    %3494 = vmatpush.bf16.msra.mxu0 0
    %3495 = vmatpush.bf16.msra.mxu0 0
    %3496 = vmatpush.bf16.msra.mxu0 0
    %3497 = vmatpush.bf16.msra.mxu0 0
    %3498 = vmatpush.bf16.msra.mxu0 0
    %3499 = vmatpush.bf16.msra.mxu0 %v3491
    %3500 = vmatpush.bf16.msra.mxu0 %v3478
    %3501 = vmatmul.bf16.gmra.mxu0 %v3482
    %v3502 = vpop.f32.mrf.mxu0
    %v3503 = vadd.f32 0.0, %v3502
    %v3504 = vpop.f32.mrf.mxu0
    %v3505 = vadd.f32 0.0, %v3504
    %3506 = vmatmul.bf16.gmra.mxu0 %v3485
    %v3507 = vpop.f32.mrf.mxu0
    %v3508 = vadd.f32 0.0, %v3507
    %v3509 = vpop.f32.mrf.mxu0
    %v3510 = vadd.f32 0.0, %v3509
    %3511 = vmatmul.bf16.gmra.mxu0 %v3488
    %v3512 = vpop.f32.mrf.mxu0
    %v3513 = vadd.f32 0.0, %v3512
    %v3514 = vpop.f32.mrf.mxu0
    %v3515 = vadd.f32 0.0, %v3514
    %3516 = vdwg.mxu0
    %v3517 = vadd.f32 %v3442, %v3503
    %v3518 = vadd.f32 %v3443, %v3505
    %v3519 = vadd.f32 %v3444, %v3508
    %v3520 = vadd.f32 %v3445, %v3510
    %v3521 = vadd.f32 %v3446, %v3513
    %v3522 = vadd.f32 %v3447, %v3515
    %s3523 = sadd.s32 %s51, 6
    %s3524 = smul.u32 %s3523, 8
    %s3525 = sadd.s32 %s52, %s3524
    %s3526 = smul.addr %s3525, 4
    %s3527 = scalar_lea.vmem [#allocation2], %s3526
    %v3528 = vld [vmem:[%s3527] sm:$0xf]
    %v3529 = vld [vmem:[%s3527 + $0x4] sm:$0xf]
    %v3530 = vld [vmem:[%s3527 + $0x8] sm:$0xf]
    %v3531 = vld [vmem:[%s3527 + $0xc] sm:$0xf]
    %v3532 = vld [vmem:[%s3527 + $0x10] sm:$0xf]
    %v3533 = vld [vmem:[%s3527 + $0x14] sm:$0xf]
    %v3534 = vld [vmem:[%s625] sm:$0xf]
    %v3535 = vld [vmem:[%s625 + $0x4] sm:$0xf]
    %v3536 = vld [vmem:[%s625 + $0x8] sm:$0xf]
    %v3543 = vunpack.c.l.b16 %v3528
    %v3544 = vunpack.c.l.b16 %v3529
    %v3545 = vunpack.c.l.b16 %v3530
    %v3546 = vunpack.c.l.b16 %v3531
    %v3547 = vunpack.c.l.b16 %v3532
    %v3548 = vunpack.c.l.b16 %v3533
    %v3549 = vpack.c.b16 %v3544, %v3543
    %v3550 = vpack.c.b16 %v3546, %v3545
    %v3551 = vpack.c.b16 %v3548, %v3547
    %v3555 = vunpack.c.l.b16 %v3534
    %v3556 = vunpack.c.l.b16 %v3535
    %v3557 = vunpack.c.l.b16 %v3536
    %v3558 = vpack.c.b16 %v3556, %v3555
    %v3559 = vpack.c.b16 %v3557, %v3557
    %v3562 = vsel %vm197, %v3549, 0
    %v3565 = vsel %vm197, %v3550, 0
    %v3568 = vsel %vm197, %v3551, 0
    %v3571 = vsel %vm207, %v3559, 0
    %3573 = vmatpush.bf16.msra.mxu0 0
    %3574 = vmatpush.bf16.msra.mxu0 0
    %3575 = vmatpush.bf16.msra.mxu0 0
    %3576 = vmatpush.bf16.msra.mxu0 0
    %3577 = vmatpush.bf16.msra.mxu0 0
    %3578 = vmatpush.bf16.msra.mxu0 0
    %3579 = vmatpush.bf16.msra.mxu0 %v3571
    %3580 = vmatpush.bf16.msra.mxu0 %v3558
    %3581 = vmatmul.bf16.gmra.mxu0 %v3562
    %v3582 = vpop.f32.mrf.mxu0
    %v3583 = vadd.f32 0.0, %v3582
    %v3584 = vpop.f32.mrf.mxu0
    %v3585 = vadd.f32 0.0, %v3584
    %3586 = vmatmul.bf16.gmra.mxu0 %v3565
    %v3587 = vpop.f32.mrf.mxu0
    %v3588 = vadd.f32 0.0, %v3587
    %v3589 = vpop.f32.mrf.mxu0
    %v3590 = vadd.f32 0.0, %v3589
    %3591 = vmatmul.bf16.gmra.mxu0 %v3568
    %v3592 = vpop.f32.mrf.mxu0
    %v3593 = vadd.f32 0.0, %v3592
    %v3594 = vpop.f32.mrf.mxu0
    %v3595 = vadd.f32 0.0, %v3594
    %3596 = vdwg.mxu0
    %v3597 = vadd.f32 %v3517, %v3583
    %v3598 = vadd.f32 %v3518, %v3585
    %v3599 = vadd.f32 %v3519, %v3588
    %v3600 = vadd.f32 %v3520, %v3590
    %v3601 = vadd.f32 %v3521, %v3593
    %v3602 = vadd.f32 %v3522, %v3595
    %s3603 = sadd.s32 %s159, %s3524
    %s3604 = smul.addr %s3603, 4
    %s3605 = scalar_lea.vmem [#allocation2], %s3604
    %v3606 = vld [vmem:[%s3605] sm:$0xf]
    %v3607 = vld [vmem:[%s3605 + $0x4] sm:$0xf]
    %v3608 = vld [vmem:[%s3605 + $0x8] sm:$0xf]
    %v3609 = vld [vmem:[%s3605 + $0xc] sm:$0xf]
    %v3610 = vld [vmem:[%s3605 + $0x10] sm:$0xf]
    %v3611 = vld [vmem:[%s3605 + $0x14] sm:$0xf]
    %v3612 = vld [vmem:[%s704] sm:$0xf]
    %v3613 = vld [vmem:[%s704 + $0x4] sm:$0xf]
    %v3614 = vld [vmem:[%s704 + $0x8] sm:$0xf]
    %v3621 = vunpack.c.l.b16 %v3606
    %v3622 = vunpack.c.l.b16 %v3607
    %v3623 = vunpack.c.l.b16 %v3608
    %v3624 = vunpack.c.l.b16 %v3609
    %v3625 = vunpack.c.l.b16 %v3610
    %v3626 = vunpack.c.l.b16 %v3611
    %v3627 = vpack.c.b16 %v3622, %v3621
    %v3628 = vpack.c.b16 %v3624, %v3623
    %v3629 = vpack.c.b16 %v3626, %v3625
    %v3633 = vunpack.c.l.b16 %v3612
    %v3634 = vunpack.c.l.b16 %v3613
    %v3635 = vunpack.c.l.b16 %v3614
    %v3636 = vpack.c.b16 %v3634, %v3633
    %v3637 = vpack.c.b16 %v3635, %v3635
    %v3640 = vsel %vm197, %v3627, 0
    %v3643 = vsel %vm197, %v3628, 0
    %v3646 = vsel %vm197, %v3629, 0
    %v3649 = vsel %vm207, %v3637, 0
    %3651 = vmatpush.bf16.msra.mxu0 0
    %3652 = vmatpush.bf16.msra.mxu0 0
    %3653 = vmatpush.bf16.msra.mxu0 0
    %3654 = vmatpush.bf16.msra.mxu0 0
    %3655 = vmatpush.bf16.msra.mxu0 0
    %3656 = vmatpush.bf16.msra.mxu0 0
    %3657 = vmatpush.bf16.msra.mxu0 %v3649
    %3658 = vmatpush.bf16.msra.mxu0 %v3636
    %3659 = vmatmul.bf16.gmra.mxu0 %v3640
    %v3660 = vpop.f32.mrf.mxu0
    %v3661 = vadd.f32 0.0, %v3660
    %v3662 = vpop.f32.mrf.mxu0
    %v3663 = vadd.f32 0.0, %v3662
    %3664 = vmatmul.bf16.gmra.mxu0 %v3643
    %v3665 = vpop.f32.mrf.mxu0
    %v3666 = vadd.f32 0.0, %v3665
    %v3667 = vpop.f32.mrf.mxu0
    %v3668 = vadd.f32 0.0, %v3667
    %3669 = vmatmul.bf16.gmra.mxu0 %v3646
    %v3670 = vpop.f32.mrf.mxu0
    %v3671 = vadd.f32 0.0, %v3670
    %v3672 = vpop.f32.mrf.mxu0
    %v3673 = vadd.f32 0.0, %v3672
    %3674 = vdwg.mxu0
    %v3675 = vadd.f32 %v3597, %v3661
    %v3676 = vadd.f32 %v3598, %v3663
    %v3677 = vadd.f32 %v3599, %v3666
    %v3678 = vadd.f32 %v3600, %v3668
    %v3679 = vadd.f32 %v3601, %v3671
    %v3680 = vadd.f32 %v3602, %v3673
    %s3681 = sadd.s32 %s295, %s3524
    %s3682 = smul.addr %s3681, 4
    %s3683 = scalar_lea.vmem [#allocation2], %s3682
    %v3684 = vld [vmem:[%s3683] sm:$0xf]
    %v3685 = vld [vmem:[%s3683 + $0x4] sm:$0xf]
    %v3686 = vld [vmem:[%s3683 + $0x8] sm:$0xf]
    %v3687 = vld [vmem:[%s3683 + $0xc] sm:$0xf]
    %v3688 = vld [vmem:[%s3683 + $0x10] sm:$0xf]
    %v3689 = vld [vmem:[%s3683 + $0x14] sm:$0xf]
    %v3690 = vld [vmem:[%s783] sm:$0xf]
    %v3691 = vld [vmem:[%s783 + $0x4] sm:$0xf]
    %v3692 = vld [vmem:[%s783 + $0x8] sm:$0xf]
    %v3699 = vunpack.c.l.b16 %v3684
    %v3700 = vunpack.c.l.b16 %v3685
    %v3701 = vunpack.c.l.b16 %v3686
    %v3702 = vunpack.c.l.b16 %v3687
    %v3703 = vunpack.c.l.b16 %v3688
    %v3704 = vunpack.c.l.b16 %v3689
    %v3705 = vpack.c.b16 %v3700, %v3699
    %v3706 = vpack.c.b16 %v3702, %v3701
    %v3707 = vpack.c.b16 %v3704, %v3703
    %v3711 = vunpack.c.l.b16 %v3690
    %v3712 = vunpack.c.l.b16 %v3691
    %v3713 = vunpack.c.l.b16 %v3692
    %v3714 = vpack.c.b16 %v3712, %v3711
    %v3715 = vpack.c.b16 %v3713, %v3713
    %v3718 = vsel %vm197, %v3705, 0
    %v3721 = vsel %vm197, %v3706, 0
    %v3724 = vsel %vm197, %v3707, 0
    %v3727 = vsel %vm207, %v3715, 0
    %3729 = vmatpush.bf16.msra.mxu0 0
    %3730 = vmatpush.bf16.msra.mxu0 0
    %3731 = vmatpush.bf16.msra.mxu0 0
    %3732 = vmatpush.bf16.msra.mxu0 0
    %3733 = vmatpush.bf16.msra.mxu0 0
    %3734 = vmatpush.bf16.msra.mxu0 0
    %3735 = vmatpush.bf16.msra.mxu0 %v3727
    %3736 = vmatpush.bf16.msra.mxu0 %v3714
    %3737 = vmatmul.bf16.gmra.mxu0 %v3718
    %v3738 = vpop.f32.mrf.mxu0
    %v3739 = vadd.f32 0.0, %v3738
    %v3740 = vpop.f32.mrf.mxu0
    %v3741 = vadd.f32 0.0, %v3740
    %3742 = vmatmul.bf16.gmra.mxu0 %v3721
    %v3743 = vpop.f32.mrf.mxu0
    %v3744 = vadd.f32 0.0, %v3743
    %v3745 = vpop.f32.mrf.mxu0
    %v3746 = vadd.f32 0.0, %v3745
    %3747 = vmatmul.bf16.gmra.mxu0 %v3724
    %v3748 = vpop.f32.mrf.mxu0
    %v3749 = vadd.f32 0.0, %v3748
    %v3750 = vpop.f32.mrf.mxu0
    %v3751 = vadd.f32 0.0, %v3750
    %3752 = vdwg.mxu0
    %v3753 = vadd.f32 %v3675, %v3739
    %v3754 = vadd.f32 %v3676, %v3741
    %v3755 = vadd.f32 %v3677, %v3744
    %v3756 = vadd.f32 %v3678, %v3746
    %v3757 = vadd.f32 %v3679, %v3749
    %v3758 = vadd.f32 %v3680, %v3751
    %v3759 = vadd.f32 %v3753, %v854
    %v3760 = vadd.f32 %v3754, %v854
    %v3761 = vadd.f32 %v3755, %v854
    %v3762 = vadd.f32 %v3756, %v854
    %v3763 = vadd.f32 %v3757, %v854
    %v3764 = vadd.f32 %v3758, %v854
    %v3765 = vsel %vm868, %v3759, 0.0
    %v3766 = vsel %vm869, %v3760, 0.0
    %v3767 = vsel %vm870, %v3761, 0.0
    %v3768 = vsel %vm871, %v3762, 0.0
    %v3769 = vsel %vm872, %v3763, 0.0
    %v3770 = vsel %vm873, %v3764, 0.0
    %v3771 = vadd.f32 %v3765, %v3766
    %v3772 = vadd.f32 %v3771, %v3767
    %v3773 = vadd.f32 %v3772, %v3768
    %v3774 = vadd.f32 %v3773, %v3769
    %v3775 = vadd.f32 %v3774, %v3770
    %v3776 = vrot.slane %v3775, 4
    %v3777 = vadd.f32 %v3775, %v3776
    %v3778 = vrot.slane %v3777, 2
    %v3779 = vadd.f32 %v3777, %v3778
    %v3780 = vrot.slane %v3779, 1
    %v3781 = vadd.f32 %v3779, %v3780
    %v3782 = vadd.f32 %v3059, %v3781
    %v3783 = vmul.f32 %v3765, %v3765
    %v3784 = vmul.f32 %v3766, %v3766
    %v3785 = vmul.f32 %v3767, %v3767
    %v3786 = vmul.f32 %v3768, %v3768
    %v3787 = vmul.f32 %v3769, %v3769
    %v3788 = vmul.f32 %v3770, %v3770
    %v3789 = vadd.f32 %v3783, %v3784
    %v3790 = vadd.f32 %v3789, %v3785
    %v3791 = vadd.f32 %v3790, %v3786
    %v3792 = vadd.f32 %v3791, %v3787
    %v3793 = vadd.f32 %v3792, %v3788
    %v3794 = vrot.slane %v3793, 4
    %v3795 = vadd.f32 %v3793, %v3794
    %v3796 = vrot.slane %v3795, 2
    %v3797 = vadd.f32 %v3795, %v3796
    %v3798 = vrot.slane %v3797, 1
    %v3799 = vadd.f32 %v3797, %v3798
    %v3800 = vadd.f32 %v3077, %v3799
    %s3801 = scalar_lea.vmem [#allocation7], 192
    %3802 = vst [vmem:[%s3801] sm:$0xff] %v3759
    %3803 = vst [vmem:[%s3801 + $0x8] sm:$0xff] %v3760
    %3804 = vst [vmem:[%s3801 + $0x10] sm:$0xff] %v3761
    %3805 = vst [vmem:[%s3801 + $0x18] sm:$0xff] %v3762
    %3806 = vst [vmem:[%s3801 + $0x20] sm:$0xff] %v3763
    %3807 = vst [vmem:[%s3801 + $0x28] sm:$0xff] %v3764
    %v3808 = vld [vmem:[%s2804] sm:$0xf]
    %v3809 = vld [vmem:[%s2804 + $0x4] sm:$0xf]
    %v3810 = vld [vmem:[%s2804 + $0x8] sm:$0xf]
    %v3811 = vld [vmem:[%s2804 + $0xc] sm:$0xf]
    %v3812 = vld [vmem:[%s2804 + $0x10] sm:$0xf]
    %v3813 = vld [vmem:[%s2804 + $0x14] sm:$0xf]
    %v3814 = vld [vmem:[#allocation5] sm:$0xf]
    %v3815 = vld [vmem:[#allocation5 + $0x4] sm:$0xf]
    %v3816 = vld [vmem:[#allocation5 + $0x8] sm:$0xf]
    %v3817 = vld [vmem:[%s2882] sm:$0xf]
    %v3818 = vld [vmem:[%s2882 + $0x4] sm:$0xf]
    %v3819 = vld [vmem:[%s2882 + $0x8] sm:$0xf]
    %v3820 = vld [vmem:[%s2882 + $0xc] sm:$0xf]
    %v3821 = vld [vmem:[%s2882 + $0x10] sm:$0xf]
    %v3822 = vld [vmem:[%s2882 + $0x14] sm:$0xf]
    %v3823 = vld [vmem:[%s169] sm:$0xf]
    %v3824 = vld [vmem:[%s169 + $0x4] sm:$0xf]
    %v3825 = vld [vmem:[%s169 + $0x8] sm:$0xf]
    %v3832 = vunpack.c.l.b16 %v3817
    %v3833 = vunpack.c.l.b16 %v3818
    %v3834 = vunpack.c.l.b16 %v3819
    %v3835 = vunpack.c.l.b16 %v3820
    %v3836 = vunpack.c.l.b16 %v3821
    %v3837 = vunpack.c.l.b16 %v3822
    %v3838 = vpack.c.b16 %v3833, %v3832
    %v3839 = vpack.c.b16 %v3835, %v3834
    %v3840 = vpack.c.b16 %v3837, %v3836
    %v3844 = vunpack.c.l.b16 %v3823
    %v3845 = vunpack.c.l.b16 %v3824
    %v3846 = vunpack.c.l.b16 %v3825
    %v3847 = vpack.c.b16 %v3845, %v3844
    %v3848 = vpack.c.b16 %v3846, %v3846
    %v3851 = vsel %vm197, %v3838, 0
    %v3854 = vsel %vm197, %v3839, 0
    %v3857 = vsel %vm197, %v3840, 0
    %v3860 = vsel %vm207, %v3848, 0
    %3862 = vmatpush.bf16.msra.mxu0 0
    %3863 = vmatpush.bf16.msra.mxu0 0
    %3864 = vmatpush.bf16.msra.mxu0 0
    %3865 = vmatpush.bf16.msra.mxu0 0
    %3866 = vmatpush.bf16.msra.mxu0 0
    %3867 = vmatpush.bf16.msra.mxu0 0
    %3868 = vmatpush.bf16.msra.mxu0 %v3860
    %3869 = vmatpush.bf16.msra.mxu0 %v3847
    %3870 = vmatmul.bf16.gmra.mxu0 %v3851
    %v3871 = vpop.f32.mrf.mxu0
    %v3872 = vadd.f32 0.0, %v3871
    %v3873 = vpop.f32.mrf.mxu0
    %v3874 = vadd.f32 0.0, %v3873
    %3875 = vmatmul.bf16.gmra.mxu0 %v3854
    %v3876 = vpop.f32.mrf.mxu0
    %v3877 = vadd.f32 0.0, %v3876
    %v3878 = vpop.f32.mrf.mxu0
    %v3879 = vadd.f32 0.0, %v3878
    %3880 = vmatmul.bf16.gmra.mxu0 %v3857
    %v3881 = vpop.f32.mrf.mxu0
    %v3882 = vadd.f32 0.0, %v3881
    %v3883 = vpop.f32.mrf.mxu0
    %v3884 = vadd.f32 0.0, %v3883
    %3885 = vdwg.mxu0
    %v3892 = vunpack.c.l.b16 %v3808
    %v3893 = vunpack.c.l.b16 %v3809
    %v3894 = vunpack.c.l.b16 %v3810
    %v3895 = vunpack.c.l.b16 %v3811
    %v3896 = vunpack.c.l.b16 %v3812
    %v3897 = vunpack.c.l.b16 %v3813
    %v3898 = vpack.c.b16 %v3893, %v3892
    %v3899 = vpack.c.b16 %v3895, %v3894
    %v3900 = vpack.c.b16 %v3897, %v3896
    %v3904 = vunpack.c.l.b16 %v3814
    %v3905 = vunpack.c.l.b16 %v3815
    %v3906 = vunpack.c.l.b16 %v3816
    %v3907 = vpack.c.b16 %v3905, %v3904
    %v3908 = vpack.c.b16 %v3906, %v3906
    %v3911 = vsel %vm197, %v3898, 0
    %v3914 = vsel %vm197, %v3899, 0
    %v3917 = vsel %vm197, %v3900, 0
    %v3920 = vsel %vm207, %v3908, 0
    %3922 = vmatpush.bf16.msra.mxu0 0
    %3923 = vmatpush.bf16.msra.mxu0 0
    %3924 = vmatpush.bf16.msra.mxu0 0
    %3925 = vmatpush.bf16.msra.mxu0 0
    %3926 = vmatpush.bf16.msra.mxu0 0
    %3927 = vmatpush.bf16.msra.mxu0 0
    %3928 = vmatpush.bf16.msra.mxu0 %v3920
    %3929 = vmatpush.bf16.msra.mxu0 %v3907
    %3930 = vmatmul.bf16.gmra.mxu0 %v3911
    %v3931 = vpop.f32.mrf.mxu0
    %v3932 = vadd.f32 %v3872, %v3931
    %v3933 = vpop.f32.mrf.mxu0
    %v3934 = vadd.f32 %v3874, %v3933
    %3935 = vmatmul.bf16.gmra.mxu0 %v3914
    %v3936 = vpop.f32.mrf.mxu0
    %v3937 = vadd.f32 %v3877, %v3936
    %v3938 = vpop.f32.mrf.mxu0
    %v3939 = vadd.f32 %v3879, %v3938
    %3940 = vmatmul.bf16.gmra.mxu0 %v3917
    %v3941 = vpop.f32.mrf.mxu0
    %v3942 = vadd.f32 %v3882, %v3941
    %v3943 = vpop.f32.mrf.mxu0
    %v3944 = vadd.f32 %v3884, %v3943
    %3945 = vdwg.mxu0
    %v3946 = vld [vmem:[%s2960] sm:$0xf]
    %v3947 = vld [vmem:[%s2960 + $0x4] sm:$0xf]
    %v3948 = vld [vmem:[%s2960 + $0x8] sm:$0xf]
    %v3949 = vld [vmem:[%s2960 + $0xc] sm:$0xf]
    %v3950 = vld [vmem:[%s2960 + $0x10] sm:$0xf]
    %v3951 = vld [vmem:[%s2960 + $0x14] sm:$0xf]
    %v3952 = vld [vmem:[%s305] sm:$0xf]
    %v3953 = vld [vmem:[%s305 + $0x4] sm:$0xf]
    %v3954 = vld [vmem:[%s305 + $0x8] sm:$0xf]
    %v3961 = vunpack.c.l.b16 %v3946
    %v3962 = vunpack.c.l.b16 %v3947
    %v3963 = vunpack.c.l.b16 %v3948
    %v3964 = vunpack.c.l.b16 %v3949
    %v3965 = vunpack.c.l.b16 %v3950
    %v3966 = vunpack.c.l.b16 %v3951
    %v3967 = vpack.c.b16 %v3962, %v3961
    %v3968 = vpack.c.b16 %v3964, %v3963
    %v3969 = vpack.c.b16 %v3966, %v3965
    %v3973 = vunpack.c.l.b16 %v3952
    %v3974 = vunpack.c.l.b16 %v3953
    %v3975 = vunpack.c.l.b16 %v3954
    %v3976 = vpack.c.b16 %v3974, %v3973
    %v3977 = vpack.c.b16 %v3975, %v3975
    %v3980 = vsel %vm197, %v3967, 0
    %v3983 = vsel %vm197, %v3968, 0
    %v3986 = vsel %vm197, %v3969, 0
    %v3989 = vsel %vm207, %v3977, 0
    %3991 = vmatpush.bf16.msra.mxu0 0
    %3992 = vmatpush.bf16.msra.mxu0 0
    %3993 = vmatpush.bf16.msra.mxu0 0
    %3994 = vmatpush.bf16.msra.mxu0 0
    %3995 = vmatpush.bf16.msra.mxu0 0
    %3996 = vmatpush.bf16.msra.mxu0 0
    %3997 = vmatpush.bf16.msra.mxu0 %v3989
    %3998 = vmatpush.bf16.msra.mxu0 %v3976
    %3999 = vmatmul.bf16.gmra.mxu0 %v3980
    %v4000 = vpop.f32.mrf.mxu0
    %v4001 = vadd.f32 0.0, %v4000
    %v4002 = vpop.f32.mrf.mxu0
    %v4003 = vadd.f32 0.0, %v4002
    %4004 = vmatmul.bf16.gmra.mxu0 %v3983
    %v4005 = vpop.f32.mrf.mxu0
    %v4006 = vadd.f32 0.0, %v4005
    %v4007 = vpop.f32.mrf.mxu0
    %v4008 = vadd.f32 0.0, %v4007
    %4009 = vmatmul.bf16.gmra.mxu0 %v3986
    %v4010 = vpop.f32.mrf.mxu0
    %v4011 = vadd.f32 0.0, %v4010
    %v4012 = vpop.f32.mrf.mxu0
    %v4013 = vadd.f32 0.0, %v4012
    %4014 = vdwg.mxu0
    %v4015 = vadd.f32 %v3932, %v4001
    %v4016 = vadd.f32 %v3934, %v4003
    %v4017 = vadd.f32 %v3937, %v4006
    %v4018 = vadd.f32 %v3939, %v4008
    %v4019 = vadd.f32 %v3942, %v4011
    %v4020 = vadd.f32 %v3944, %v4013
    %v4021 = vld [vmem:[%s3527] sm:$0xf]
    %v4022 = vld [vmem:[%s3527 + $0x4] sm:$0xf]
    %v4023 = vld [vmem:[%s3527 + $0x8] sm:$0xf]
    %v4024 = vld [vmem:[%s3527 + $0xc] sm:$0xf]
    %v4025 = vld [vmem:[%s3527 + $0x10] sm:$0xf]
    %v4026 = vld [vmem:[%s3527 + $0x14] sm:$0xf]
    %v4027 = vld [vmem:[%s386] sm:$0xf]
    %v4028 = vld [vmem:[%s386 + $0x4] sm:$0xf]
    %v4029 = vld [vmem:[%s386 + $0x8] sm:$0xf]
    %v4036 = vunpack.c.l.b16 %v4021
    %v4037 = vunpack.c.l.b16 %v4022
    %v4038 = vunpack.c.l.b16 %v4023
    %v4039 = vunpack.c.l.b16 %v4024
    %v4040 = vunpack.c.l.b16 %v4025
    %v4041 = vunpack.c.l.b16 %v4026
    %v4042 = vpack.c.b16 %v4037, %v4036
    %v4043 = vpack.c.b16 %v4039, %v4038
    %v4044 = vpack.c.b16 %v4041, %v4040
    %v4048 = vunpack.c.l.b16 %v4027
    %v4049 = vunpack.c.l.b16 %v4028
    %v4050 = vunpack.c.l.b16 %v4029
    %v4051 = vpack.c.b16 %v4049, %v4048
    %v4052 = vpack.c.b16 %v4050, %v4050
    %v4055 = vsel %vm197, %v4042, 0
    %v4058 = vsel %vm197, %v4043, 0
    %v4061 = vsel %vm197, %v4044, 0
    %v4064 = vsel %vm207, %v4052, 0
    %4066 = vmatpush.bf16.msra.mxu0 0
    %4067 = vmatpush.bf16.msra.mxu0 0
    %4068 = vmatpush.bf16.msra.mxu0 0
    %4069 = vmatpush.bf16.msra.mxu0 0
    %4070 = vmatpush.bf16.msra.mxu0 0
    %4071 = vmatpush.bf16.msra.mxu0 0
    %4072 = vmatpush.bf16.msra.mxu0 %v4064
    %4073 = vmatpush.bf16.msra.mxu0 %v4051
    %4074 = vmatmul.bf16.gmra.mxu0 %v4055
    %v4075 = vpop.f32.mrf.mxu0
    %v4076 = vadd.f32 0.0, %v4075
    %v4077 = vpop.f32.mrf.mxu0
    %v4078 = vadd.f32 0.0, %v4077
    %4079 = vmatmul.bf16.gmra.mxu0 %v4058
    %v4080 = vpop.f32.mrf.mxu0
    %v4081 = vadd.f32 0.0, %v4080
    %v4082 = vpop.f32.mrf.mxu0
    %v4083 = vadd.f32 0.0, %v4082
    %4084 = vmatmul.bf16.gmra.mxu0 %v4061
    %v4085 = vpop.f32.mrf.mxu0
    %v4086 = vadd.f32 0.0, %v4085
    %v4087 = vpop.f32.mrf.mxu0
    %v4088 = vadd.f32 0.0, %v4087
    %4089 = vdwg.mxu0
    %v4090 = vadd.f32 %v4015, %v4076
    %v4091 = vadd.f32 %v4016, %v4078
    %v4092 = vadd.f32 %v4017, %v4081
    %v4093 = vadd.f32 %v4018, %v4083
    %v4094 = vadd.f32 %v4019, %v4086
    %v4095 = vadd.f32 %v4020, %v4088
    %v4096 = vld [vmem:[%s3605] sm:$0xf]
    %v4097 = vld [vmem:[%s3605 + $0x4] sm:$0xf]
    %v4098 = vld [vmem:[%s3605 + $0x8] sm:$0xf]
    %v4099 = vld [vmem:[%s3605 + $0xc] sm:$0xf]
    %v4100 = vld [vmem:[%s3605 + $0x10] sm:$0xf]
    %v4101 = vld [vmem:[%s3605 + $0x14] sm:$0xf]
    %v4102 = vld [vmem:[%s465] sm:$0xf]
    %v4103 = vld [vmem:[%s465 + $0x4] sm:$0xf]
    %v4104 = vld [vmem:[%s465 + $0x8] sm:$0xf]
    %v4111 = vunpack.c.l.b16 %v4096
    %v4112 = vunpack.c.l.b16 %v4097
    %v4113 = vunpack.c.l.b16 %v4098
    %v4114 = vunpack.c.l.b16 %v4099
    %v4115 = vunpack.c.l.b16 %v4100
    %v4116 = vunpack.c.l.b16 %v4101
    %v4117 = vpack.c.b16 %v4112, %v4111
    %v4118 = vpack.c.b16 %v4114, %v4113
    %v4119 = vpack.c.b16 %v4116, %v4115
    %v4123 = vunpack.c.l.b16 %v4102
    %v4124 = vunpack.c.l.b16 %v4103
    %v4125 = vunpack.c.l.b16 %v4104
    %v4126 = vpack.c.b16 %v4124, %v4123
    %v4127 = vpack.c.b16 %v4125, %v4125
    %v4130 = vsel %vm197, %v4117, 0
    %v4133 = vsel %vm197, %v4118, 0
    %v4136 = vsel %vm197, %v4119, 0
    %v4139 = vsel %vm207, %v4127, 0
    %4141 = vmatpush.bf16.msra.mxu0 0
    %4142 = vmatpush.bf16.msra.mxu0 0
    %4143 = vmatpush.bf16.msra.mxu0 0
    %4144 = vmatpush.bf16.msra.mxu0 0
    %4145 = vmatpush.bf16.msra.mxu0 0
    %4146 = vmatpush.bf16.msra.mxu0 0
    %4147 = vmatpush.bf16.msra.mxu0 %v4139
    %4148 = vmatpush.bf16.msra.mxu0 %v4126
    %4149 = vmatmul.bf16.gmra.mxu0 %v4130
    %v4150 = vpop.f32.mrf.mxu0
    %v4151 = vadd.f32 0.0, %v4150
    %v4152 = vpop.f32.mrf.mxu0
    %v4153 = vadd.f32 0.0, %v4152
    %4154 = vmatmul.bf16.gmra.mxu0 %v4133
    %v4155 = vpop.f32.mrf.mxu0
    %v4156 = vadd.f32 0.0, %v4155
    %v4157 = vpop.f32.mrf.mxu0
    %v4158 = vadd.f32 0.0, %v4157
    %4159 = vmatmul.bf16.gmra.mxu0 %v4136
    %v4160 = vpop.f32.mrf.mxu0
    %v4161 = vadd.f32 0.0, %v4160
    %v4162 = vpop.f32.mrf.mxu0
    %v4163 = vadd.f32 0.0, %v4162
    %4164 = vdwg.mxu0
    %v4165 = vadd.f32 %v4090, %v4151
    %v4166 = vadd.f32 %v4091, %v4153
    %v4167 = vadd.f32 %v4092, %v4156
    %v4168 = vadd.f32 %v4093, %v4158
    %v4169 = vadd.f32 %v4094, %v4161
    %v4170 = vadd.f32 %v4095, %v4163
    %v4171 = vld [vmem:[%s3683] sm:$0xf]
    %v4172 = vld [vmem:[%s3683 + $0x4] sm:$0xf]
    %v4173 = vld [vmem:[%s3683 + $0x8] sm:$0xf]
    %v4174 = vld [vmem:[%s3683 + $0xc] sm:$0xf]
    %v4175 = vld [vmem:[%s3683 + $0x10] sm:$0xf]
    %v4176 = vld [vmem:[%s3683 + $0x14] sm:$0xf]
    %v4177 = vld [vmem:[%s544] sm:$0xf]
    %v4178 = vld [vmem:[%s544 + $0x4] sm:$0xf]
    %v4179 = vld [vmem:[%s544 + $0x8] sm:$0xf]
    %v4186 = vunpack.c.l.b16 %v4171
    %v4187 = vunpack.c.l.b16 %v4172
    %v4188 = vunpack.c.l.b16 %v4173
    %v4189 = vunpack.c.l.b16 %v4174
    %v4190 = vunpack.c.l.b16 %v4175
    %v4191 = vunpack.c.l.b16 %v4176
    %v4192 = vpack.c.b16 %v4187, %v4186
    %v4193 = vpack.c.b16 %v4189, %v4188
    %v4194 = vpack.c.b16 %v4191, %v4190
    %v4198 = vunpack.c.l.b16 %v4177
    %v4199 = vunpack.c.l.b16 %v4178
    %v4200 = vunpack.c.l.b16 %v4179
    %v4201 = vpack.c.b16 %v4199, %v4198
    %v4202 = vpack.c.b16 %v4200, %v4200
    %v4205 = vsel %vm197, %v4192, 0
    %v4208 = vsel %vm197, %v4193, 0
    %v4211 = vsel %vm197, %v4194, 0
    %v4214 = vsel %vm207, %v4202, 0
    %4216 = vmatpush.bf16.msra.mxu0 0
    %4217 = vmatpush.bf16.msra.mxu0 0
    %4218 = vmatpush.bf16.msra.mxu0 0
    %4219 = vmatpush.bf16.msra.mxu0 0
    %4220 = vmatpush.bf16.msra.mxu0 0
    %4221 = vmatpush.bf16.msra.mxu0 0
    %4222 = vmatpush.bf16.msra.mxu0 %v4214
    %4223 = vmatpush.bf16.msra.mxu0 %v4201
    %4224 = vmatmul.bf16.gmra.mxu0 %v4205
    %v4225 = vpop.f32.mrf.mxu0
    %v4226 = vadd.f32 0.0, %v4225
    %v4227 = vpop.f32.mrf.mxu0
    %v4228 = vadd.f32 0.0, %v4227
    %4229 = vmatmul.bf16.gmra.mxu0 %v4208
    %v4230 = vpop.f32.mrf.mxu0
    %v4231 = vadd.f32 0.0, %v4230
    %v4232 = vpop.f32.mrf.mxu0
    %v4233 = vadd.f32 0.0, %v4232
    %4234 = vmatmul.bf16.gmra.mxu0 %v4211
    %v4235 = vpop.f32.mrf.mxu0
    %v4236 = vadd.f32 0.0, %v4235
    %v4237 = vpop.f32.mrf.mxu0
    %v4238 = vadd.f32 0.0, %v4237
    %4239 = vdwg.mxu0
    %v4240 = vadd.f32 %v4165, %v4226
    %v4241 = vadd.f32 %v4166, %v4228
    %v4242 = vadd.f32 %v4167, %v4231
    %v4243 = vadd.f32 %v4168, %v4233
    %v4244 = vadd.f32 %v4169, %v4236
    %v4245 = vadd.f32 %v4170, %v4238
    %s4246 = sadd.s32 %s51, 7
    %s4247 = smul.u32 %s4246, 8
    %s4248 = sadd.s32 %s52, %s4247
    %s4249 = smul.addr %s4248, 4
    %s4250 = scalar_lea.vmem [#allocation2], %s4249
    %v4251 = vld [vmem:[%s4250] sm:$0xf]
    %v4252 = vld [vmem:[%s4250 + $0x4] sm:$0xf]
    %v4253 = vld [vmem:[%s4250 + $0x8] sm:$0xf]
    %v4254 = vld [vmem:[%s4250 + $0xc] sm:$0xf]
    %v4255 = vld [vmem:[%s4250 + $0x10] sm:$0xf]
    %v4256 = vld [vmem:[%s4250 + $0x14] sm:$0xf]
    %v4257 = vld [vmem:[%s625] sm:$0xf]
    %v4258 = vld [vmem:[%s625 + $0x4] sm:$0xf]
    %v4259 = vld [vmem:[%s625 + $0x8] sm:$0xf]
    %v4266 = vunpack.c.l.b16 %v4251
    %v4267 = vunpack.c.l.b16 %v4252
    %v4268 = vunpack.c.l.b16 %v4253
    %v4269 = vunpack.c.l.b16 %v4254
    %v4270 = vunpack.c.l.b16 %v4255
    %v4271 = vunpack.c.l.b16 %v4256
    %v4272 = vpack.c.b16 %v4267, %v4266
    %v4273 = vpack.c.b16 %v4269, %v4268
    %v4274 = vpack.c.b16 %v4271, %v4270
    %v4278 = vunpack.c.l.b16 %v4257
    %v4279 = vunpack.c.l.b16 %v4258
    %v4280 = vunpack.c.l.b16 %v4259
    %v4281 = vpack.c.b16 %v4279, %v4278
    %v4282 = vpack.c.b16 %v4280, %v4280
    %v4285 = vsel %vm197, %v4272, 0
    %v4288 = vsel %vm197, %v4273, 0
    %v4291 = vsel %vm197, %v4274, 0
    %v4294 = vsel %vm207, %v4282, 0
    %4296 = vmatpush.bf16.msra.mxu0 0
    %4297 = vmatpush.bf16.msra.mxu0 0
    %4298 = vmatpush.bf16.msra.mxu0 0
    %4299 = vmatpush.bf16.msra.mxu0 0
    %4300 = vmatpush.bf16.msra.mxu0 0
    %4301 = vmatpush.bf16.msra.mxu0 0
    %4302 = vmatpush.bf16.msra.mxu0 %v4294
    %4303 = vmatpush.bf16.msra.mxu0 %v4281
    %4304 = vmatmul.bf16.gmra.mxu0 %v4285
    %v4305 = vpop.f32.mrf.mxu0
    %v4306 = vadd.f32 0.0, %v4305
    %v4307 = vpop.f32.mrf.mxu0
    %v4308 = vadd.f32 0.0, %v4307
    %4309 = vmatmul.bf16.gmra.mxu0 %v4288
    %v4310 = vpop.f32.mrf.mxu0
    %v4311 = vadd.f32 0.0, %v4310
    %v4312 = vpop.f32.mrf.mxu0
    %v4313 = vadd.f32 0.0, %v4312
    %4314 = vmatmul.bf16.gmra.mxu0 %v4291
    %v4315 = vpop.f32.mrf.mxu0
    %v4316 = vadd.f32 0.0, %v4315
    %v4317 = vpop.f32.mrf.mxu0
    %v4318 = vadd.f32 0.0, %v4317
    %4319 = vdwg.mxu0
    %v4320 = vadd.f32 %v4240, %v4306
    %v4321 = vadd.f32 %v4241, %v4308
    %v4322 = vadd.f32 %v4242, %v4311
    %v4323 = vadd.f32 %v4243, %v4313
    %v4324 = vadd.f32 %v4244, %v4316
    %v4325 = vadd.f32 %v4245, %v4318
    %s4326 = sadd.s32 %s159, %s4247
    %s4327 = smul.addr %s4326, 4
    %s4328 = scalar_lea.vmem [#allocation2], %s4327
    %v4329 = vld [vmem:[%s4328] sm:$0xf]
    %v4330 = vld [vmem:[%s4328 + $0x4] sm:$0xf]
    %v4331 = vld [vmem:[%s4328 + $0x8] sm:$0xf]
    %v4332 = vld [vmem:[%s4328 + $0xc] sm:$0xf]
    %v4333 = vld [vmem:[%s4328 + $0x10] sm:$0xf]
    %v4334 = vld [vmem:[%s4328 + $0x14] sm:$0xf]
    %v4335 = vld [vmem:[%s704] sm:$0xf]
    %v4336 = vld [vmem:[%s704 + $0x4] sm:$0xf]
    %v4337 = vld [vmem:[%s704 + $0x8] sm:$0xf]
    %v4344 = vunpack.c.l.b16 %v4329
    %v4345 = vunpack.c.l.b16 %v4330
    %v4346 = vunpack.c.l.b16 %v4331
    %v4347 = vunpack.c.l.b16 %v4332
    %v4348 = vunpack.c.l.b16 %v4333
    %v4349 = vunpack.c.l.b16 %v4334
    %v4350 = vpack.c.b16 %v4345, %v4344
    %v4351 = vpack.c.b16 %v4347, %v4346
    %v4352 = vpack.c.b16 %v4349, %v4348
    %v4356 = vunpack.c.l.b16 %v4335
    %v4357 = vunpack.c.l.b16 %v4336
    %v4358 = vunpack.c.l.b16 %v4337
    %v4359 = vpack.c.b16 %v4357, %v4356
    %v4360 = vpack.c.b16 %v4358, %v4358
    %v4363 = vsel %vm197, %v4350, 0
    %v4366 = vsel %vm197, %v4351, 0
    %v4369 = vsel %vm197, %v4352, 0
    %v4372 = vsel %vm207, %v4360, 0
    %4374 = vmatpush.bf16.msra.mxu0 0
    %4375 = vmatpush.bf16.msra.mxu0 0
    %4376 = vmatpush.bf16.msra.mxu0 0
    %4377 = vmatpush.bf16.msra.mxu0 0
    %4378 = vmatpush.bf16.msra.mxu0 0
    %4379 = vmatpush.bf16.msra.mxu0 0
    %4380 = vmatpush.bf16.msra.mxu0 %v4372
    %4381 = vmatpush.bf16.msra.mxu0 %v4359
    %4382 = vmatmul.bf16.gmra.mxu0 %v4363
    %v4383 = vpop.f32.mrf.mxu0
    %v4384 = vadd.f32 0.0, %v4383
    %v4385 = vpop.f32.mrf.mxu0
    %v4386 = vadd.f32 0.0, %v4385
    %4387 = vmatmul.bf16.gmra.mxu0 %v4366
    %v4388 = vpop.f32.mrf.mxu0
    %v4389 = vadd.f32 0.0, %v4388
    %v4390 = vpop.f32.mrf.mxu0
    %v4391 = vadd.f32 0.0, %v4390
    %4392 = vmatmul.bf16.gmra.mxu0 %v4369
    %v4393 = vpop.f32.mrf.mxu0
    %v4394 = vadd.f32 0.0, %v4393
    %v4395 = vpop.f32.mrf.mxu0
    %v4396 = vadd.f32 0.0, %v4395
    %4397 = vdwg.mxu0
    %v4398 = vadd.f32 %v4320, %v4384
    %v4399 = vadd.f32 %v4321, %v4386
    %v4400 = vadd.f32 %v4322, %v4389
    %v4401 = vadd.f32 %v4323, %v4391
    %v4402 = vadd.f32 %v4324, %v4394
    %v4403 = vadd.f32 %v4325, %v4396
    %s4404 = sadd.s32 %s295, %s4247
    %s4405 = smul.addr %s4404, 4
    %s4406 = scalar_lea.vmem [#allocation2], %s4405
    %v4407 = vld [vmem:[%s4406] sm:$0xf]
    %v4408 = vld [vmem:[%s4406 + $0x4] sm:$0xf]
    %v4409 = vld [vmem:[%s4406 + $0x8] sm:$0xf]
    %v4410 = vld [vmem:[%s4406 + $0xc] sm:$0xf]
    %v4411 = vld [vmem:[%s4406 + $0x10] sm:$0xf]
    %v4412 = vld [vmem:[%s4406 + $0x14] sm:$0xf]
    %v4413 = vld [vmem:[%s783] sm:$0xf]
    %v4414 = vld [vmem:[%s783 + $0x4] sm:$0xf]
    %v4415 = vld [vmem:[%s783 + $0x8] sm:$0xf]
    %v4422 = vunpack.c.l.b16 %v4407
    %v4423 = vunpack.c.l.b16 %v4408
    %v4424 = vunpack.c.l.b16 %v4409
    %v4425 = vunpack.c.l.b16 %v4410
    %v4426 = vunpack.c.l.b16 %v4411
    %v4427 = vunpack.c.l.b16 %v4412
    %v4428 = vpack.c.b16 %v4423, %v4422
    %v4429 = vpack.c.b16 %v4425, %v4424
    %v4430 = vpack.c.b16 %v4427, %v4426
    %v4434 = vunpack.c.l.b16 %v4413
    %v4435 = vunpack.c.l.b16 %v4414
    %v4436 = vunpack.c.l.b16 %v4415
    %v4437 = vpack.c.b16 %v4435, %v4434
    %v4438 = vpack.c.b16 %v4436, %v4436
    %v4441 = vsel %vm197, %v4428, 0
    %v4444 = vsel %vm197, %v4429, 0
    %v4447 = vsel %vm197, %v4430, 0
    %v4450 = vsel %vm207, %v4438, 0
    %4452 = vmatpush.bf16.msra.mxu0 0
    %4453 = vmatpush.bf16.msra.mxu0 0
    %4454 = vmatpush.bf16.msra.mxu0 0
    %4455 = vmatpush.bf16.msra.mxu0 0
    %4456 = vmatpush.bf16.msra.mxu0 0
    %4457 = vmatpush.bf16.msra.mxu0 0
    %4458 = vmatpush.bf16.msra.mxu0 %v4450
    %4459 = vmatpush.bf16.msra.mxu0 %v4437
    %4460 = vmatmul.bf16.gmra.mxu0 %v4441
    %v4461 = vpop.f32.mrf.mxu0
    %v4462 = vadd.f32 0.0, %v4461
    %v4463 = vpop.f32.mrf.mxu0
    %v4464 = vadd.f32 0.0, %v4463
    %4465 = vmatmul.bf16.gmra.mxu0 %v4444
    %v4466 = vpop.f32.mrf.mxu0
    %v4467 = vadd.f32 0.0, %v4466
    %v4468 = vpop.f32.mrf.mxu0
    %v4469 = vadd.f32 0.0, %v4468
    %4470 = vmatmul.bf16.gmra.mxu0 %v4447
    %v4471 = vpop.f32.mrf.mxu0
    %v4472 = vadd.f32 0.0, %v4471
    %v4473 = vpop.f32.mrf.mxu0
    %v4474 = vadd.f32 0.0, %v4473
    %4475 = vdwg.mxu0
    %v4476 = vadd.f32 %v4398, %v4462
    %v4477 = vadd.f32 %v4399, %v4464
    %v4478 = vadd.f32 %v4400, %v4467
    %v4479 = vadd.f32 %v4401, %v4469
    %v4480 = vadd.f32 %v4402, %v4472
    %v4481 = vadd.f32 %v4403, %v4474
    %v4482 = vadd.f32 %v4476, %v854
    %v4483 = vadd.f32 %v4477, %v854
    %v4484 = vadd.f32 %v4478, %v854
    %v4485 = vadd.f32 %v4479, %v854
    %v4486 = vadd.f32 %v4480, %v854
    %v4487 = vadd.f32 %v4481, %v854
    %v4488 = vsel %vm868, %v4482, 0.0
    %v4489 = vsel %vm869, %v4483, 0.0
    %v4490 = vsel %vm870, %v4484, 0.0
    %v4491 = vsel %vm871, %v4485, 0.0
    %v4492 = vsel %vm872, %v4486, 0.0
    %v4493 = vsel %vm873, %v4487, 0.0
    %v4494 = vadd.f32 %v4488, %v4489
    %v4495 = vadd.f32 %v4494, %v4490
    %v4496 = vadd.f32 %v4495, %v4491
    %v4497 = vadd.f32 %v4496, %v4492
    %v4498 = vadd.f32 %v4497, %v4493
    %v4499 = vrot.slane %v4498, 4
    %v4500 = vadd.f32 %v4498, %v4499
    %v4501 = vrot.slane %v4500, 2
    %v4502 = vadd.f32 %v4500, %v4501
    %v4503 = vrot.slane %v4502, 1
    %v4504 = vadd.f32 %v4502, %v4503
    %v4505 = vadd.f32 %v3782, %v4504
    %v4506 = vmul.f32 %v4488, %v4488
    %v4507 = vmul.f32 %v4489, %v4489
    %v4508 = vmul.f32 %v4490, %v4490
    %v4509 = vmul.f32 %v4491, %v4491
    %v4510 = vmul.f32 %v4492, %v4492
    %v4511 = vmul.f32 %v4493, %v4493
    %v4512 = vadd.f32 %v4506, %v4507
    %v4513 = vadd.f32 %v4512, %v4508
    %v4514 = vadd.f32 %v4513, %v4509
    %v4515 = vadd.f32 %v4514, %v4510
    %v4516 = vadd.f32 %v4515, %v4511
    %v4517 = vrot.slane %v4516, 4
    %v4518 = vadd.f32 %v4516, %v4517
    %v4519 = vrot.slane %v4518, 2
    %v4520 = vadd.f32 %v4518, %v4519
    %v4521 = vrot.slane %v4520, 1
    %v4522 = vadd.f32 %v4520, %v4521
    %v4523 = vadd.f32 %v3800, %v4522
    %s4524 = scalar_lea.vmem [#allocation7], 240
    %4525 = vst [vmem:[%s4524] sm:$0xff] %v4482
    %4526 = vst [vmem:[%s4524 + $0x8] sm:$0xff] %v4483
    %4527 = vst [vmem:[%s4524 + $0x10] sm:$0xff] %v4484
    %4528 = vst [vmem:[%s4524 + $0x18] sm:$0xff] %v4485
    %4529 = vst [vmem:[%s4524 + $0x20] sm:$0xff] %v4486
    %4530 = vst [vmem:[%s4524 + $0x28] sm:$0xff] %v4487
    %v4531 = vld [vmem:[#allocation8] sm:$0x3]
    %vm4532 = vcmask 1040384
    %v4533 = vsel %vm4532, %v4505, %v4523
    %v4534 = vadd.f32 %v4531, %v4533
    %4535 = vst [vmem:[#allocation8] sm:$0x3] %v4534
    // Predicated region
    $region26: #{tpu_custom_call.1} parent=1 // pred_check
      _
    $region27: #{tpu_custom_call.1} parent=1 // pred_check_branch
      %4537 = sbr.rel (0) target = $region29
    $region28: #{tpu_custom_call.1} parent=1 // pred_region
      %4539 = vsyncadd [#allocation4], 0
      %s4540 = sshll.u32 [#allocation7], 4
      %s4541 = int_to_ptr.vmem [resolvable:$true] %s4540
      %s4542 = sshll.u32 %s3, 4
      %s4543 = int_to_ptr.hbm [resolvable:$true] %s4542
      %4548 = dma.vmem_to_hbm [thread:$0]  %s4541, 4608, %s4543, [#allocation4], 128, 128, 8
    $region29: #{tpu_custom_call.1} parent=1 // pred_fallthru
      _
    // Predicated region
    $region30: #{tpu_custom_call.1} parent=1 // pred_check
      _
    $region31: #{tpu_custom_call.1} parent=1 // pred_check_branch
      %4550 = sbr.rel (0) target = $region33
    $region32: #{tpu_custom_call.1} parent=1 // pred_region
      %4552 = vsyncadd [#allocation9], 0
      %s4554 = sshll.u32 [#allocation8], 4
      %s4555 = int_to_ptr.vmem [resolvable:$true] %s4554
      %s4556 = sshll.u32 %s4, 4
      %s4557 = int_to_ptr.hbm [resolvable:$true] %s4556
      %4559 = dma.vmem_to_hbm [thread:$0]  %s4555, 32, %s4557, [#allocation9]
    $region33: #{tpu_custom_call.1} parent=1 // pred_fallthru
      _
    // Predicated region
    $region34: #{tpu_custom_call.1} parent=1 // pred_check
      _
    $region35: #{tpu_custom_call.1} parent=1 // pred_check_branch
      %4561 = sbr.rel (0) target = $region37
    $region36: #{tpu_custom_call.1} parent=1 // pred_region
      %4563 = dma.done [#allocation4], 4608
    $region37: #{tpu_custom_call.1} parent=1 // pred_fallthru
      _
    // Predicated region
    $region38: #{tpu_custom_call.1} parent=1 // pred_check
      _
    $region39: #{tpu_custom_call.1} parent=1 // pred_check_branch
      %4565 = sbr.rel (0) target = $region41
    $region40: #{tpu_custom_call.1} parent=1 // pred_region
      %4567 = dma.done [#allocation9], 32
    $region41: #{tpu_custom_call.1} parent=1 // pred_fallthru
      _
    %4568 = vsyncpa [#allocation3], 1
    %4569 = vsyncpa [#allocation6], 1
    %4570 = vsyncpa [#allocation4], 1
    %4571 = vsyncpa [#allocation9], 1

</llo_original>
